<compile_context>
chip_gen: v7x
topology: tpu7x:2x2x1
jax: 0.10.0
libtpu: 0.0.40
codegen_flags: <defaults>
</compile_context>

<pallas_src>
import functools

import jax
import jax.numpy as jnp
from jax import lax
from jax.experimental import pallas as pl
from jax.experimental.pallas import tpu as pltpu


def _round_up(x, m):
    return ((x + m - 1) // m) * m


# ---------------------------------------------------------------------------
# Kernel factory: S, B (padded), Hp, Fo are compile-time Python ints.
# ---------------------------------------------------------------------------
def make_lstm_fc_kernel(S, B, Hp, Fo, act_dtype):
    def kernel(x_ref,      # (S*B, Fk)   time-major, flattened, zero-padded
               wih0_ref,   # (Fk, 4*Hp)
               whh0_ref,   # (Hp, 4*Hp)
               b0_ref,     # (1, 4*Hp)   f32 (b_ih + b_hh, layer 0)
               wih1_ref,   # (Hp, 4*Hp)
               whh1_ref,   # (Hp, 4*Hp)
               b1_ref,     # (1, 4*Hp)   f32 (b_ih + b_hh, layer 1)
               wfc_ref,    # (Hp, Fo)
               bfc_ref,    # (1, Fo)     f32
               out_ref):   # (S*B, Fo)   f32
        mm_dtype = whh0_ref.dtype   # matmul operand dtype (f32 or bf16)

        # Hoist all weights out of the recurrence (tiny, stay resident).
        wih0 = wih0_ref[...]
        whh0 = whh0_ref[...]
        wih1 = wih1_ref[...]
        whh1 = whh1_ref[...]
        wfc = wfc_ref[...]

        # ---- Layer-0 input projection for ALL timesteps (no recurrent dep) --
        xproj = (jnp.dot(x_ref[...], wih0, preferred_element_type=jnp.float32)
                 + jnp.broadcast_to(b0_ref[...], (S * B, 4 * Hp)))      # f32

        # Hoisted bias broadcast for layer 1 (JAX does not CSE broadcasts).
        b1_b = jnp.broadcast_to(b1_ref[...], (B, 4 * Hp))               # f32

        def gate_act(gates, c):
            # gates: (B, 4*Hp) f32, PyTorch order (i, f, g, o).  Each gate sits
            # in its own 128-lane group -> slices are free static views.
            # Nonlinearities optionally run in bf16 (v6e/v7x EUP fast path);
            # c/h state math stays f32.
            ga = gates.astype(act_dtype)
            i = jax.nn.sigmoid(ga[:, 0 * Hp:1 * Hp]).astype(jnp.float32)
            f = jax.nn.sigmoid(ga[:, 1 * Hp:2 * Hp]).astype(jnp.float32)
            g = jnp.tanh(ga[:, 2 * Hp:3 * Hp]).astype(jnp.float32)
            o = jax.nn.sigmoid(ga[:, 3 * Hp:4 * Hp]).astype(jnp.float32)
            c_new = f * c + i * g
            h_new = o * jnp.tanh(c_new)
            return h_new, c_new

        zeros = jnp.zeros((B, Hp), jnp.float32)
        h1 = c1 = h2 = c2 = zeros
        h2_steps = []

        # ---- Fully unrolled recurrence (S is a small trace-time constant) ----
        # 3 thin MXU matmuls per step; the h2_prev @ W_hh1 one is issued first
        # so the scheduler can overlap it with layer-0's matmul + gate math.
        for t in range(S):
            g1_rec = jnp.dot(h2.astype(mm_dtype), whh1,
                             preferred_element_type=jnp.float32)

            # Layer 0: recurrent matmul only; input term precomputed above.
            g0 = (xproj[t * B:(t + 1) * B, :]
                  + jnp.dot(h1.astype(mm_dtype), whh0,
                            preferred_element_type=jnp.float32))
            h1, c1 = gate_act(g0, c1)

            # Layer 1: no per-step concatenate; two independent thin matmuls.
            g1 = (jnp.dot(h1.astype(mm_dtype), wih1,
                          preferred_element_type=jnp.float32)
                  + g1_rec + b1_b)
            h2, c2 = gate_act(g1, c2)

            h2_steps.append(h2)

        # ---- fc head applied once to all timesteps + one lane-dense store ----
        h2_all = jnp.concatenate(h2_steps, axis=0)                      # (S*B, Hp)
        y = (jnp.dot(h2_all.astype(mm_dtype), wfc,
                     preferred_element_type=jnp.float32)
             + jnp.broadcast_to(bfc_ref[...], (S * B, Fo)))
        out_ref[...] = y.astype(out_ref.dtype)

    return kernel


# ---------------------------------------------------------------------------
# Wrapper: batch_first (B, S, F) in/out, like the PyTorch module.
# ---------------------------------------------------------------------------
def _pad_gate_cols(w, H, Hp):
    """(rows, 4H) -> (rows, 4Hp); gate g's H columns land at [g*Hp, g*Hp+H)."""
    rows = w.shape[0]
    return jnp.pad(w.reshape(rows, 4, H),
                   ((0, 0), (0, 0), (0, Hp - H))).reshape(rows, 4 * Hp)


@functools.partial(jax.jit, static_argnames=("matmul_dtype", "bf16_activations"))
def lstm_model_forward(x, params, matmul_dtype=jnp.float32,
                       bf16_activations=False):
    B, S, F = x.shape
    H = params["whh0"].shape[0]

    # Padded sizes: each gate gets its own 128-lane group, the fc output is
    # lane-dense, and the x contraction dim is sublane-aligned.
    Hp = _round_up(H, 128)          # 96  -> 128
    Fo = _round_up(F, 128)          # 51  -> 128 (output lanes)
    Fk = _round_up(F, 16)           # 51  -> 64  (contraction dim)
    # bf16 vregs pack 16 sublanes; f32 pack 8.  Pad batch accordingly so the
    # per-step h.astype(bf16) cast needs no relayout.
    b_align = 16 if matmul_dtype == jnp.bfloat16 else 8
    B_pad = _round_up(B, b_align)

    # Input: pad batch + feature, go time-major, flatten to (S*B_pad, Fk).
    x_p = jnp.pad(x, ((0, B_pad - B), (0, 0), (0, Fk - F)))
    x_tm = jnp.transpose(x_p, (1, 0, 2)).reshape(S * B_pad, Fk).astype(matmul_dtype)

    # Weights: zero-pad gate columns into 128-lane groups and H/F dims.  Zero
    # padding is exact (padded c/h lanes stay identically zero through time).
    wih0 = jnp.pad(_pad_gate_cols(params["wih0"], H, Hp),
                   ((0, Fk - F), (0, 0))).astype(matmul_dtype)
    whh0 = jnp.pad(_pad_gate_cols(params["whh0"], H, Hp),
                   ((0, Hp - H), (0, 0))).astype(matmul_dtype)
    wih1 = jnp.pad(_pad_gate_cols(params["wih1"], H, Hp),
                   ((0, Hp - H), (0, 0))).astype(matmul_dtype)
    whh1 = jnp.pad(_pad_gate_cols(params["whh1"], H, Hp),
                   ((0, Hp - H), (0, 0))).astype(matmul_dtype)
    b0 = _pad_gate_cols(params["b0"], H, Hp).astype(jnp.float32)
    b1 = _pad_gate_cols(params["b1"], H, Hp).astype(jnp.float32)
    wfc = jnp.pad(params["wfc"], ((0, Hp - H), (0, Fo - F))).astype(matmul_dtype)
    bfc = jnp.pad(params["bfc"], ((0, 0), (0, Fo - F))).astype(jnp.float32)

    act_dtype = jnp.bfloat16 if bf16_activations else jnp.float32
    kernel = make_lstm_fc_kernel(S, B_pad, Hp, Fo, act_dtype)

    out2d = pl.pallas_call(
        kernel,
        out_shape=jax.ShapeDtypeStruct((S * B_pad, Fo), jnp.float32),
        in_specs=[pl.BlockSpec(memory_space=pltpu.MemorySpace.VMEM)] * 9,
        out_specs=pl.BlockSpec(memory_space=pltpu.MemorySpace.VMEM),
    )(x_tm, wih0, whh0, b0, wih1, whh1, b1, wfc, bfc)

    out = out2d.reshape(S, B_pad, Fo).transpose(1, 0, 2)[:B, :, :F]     # (B,S,F)
    return out.astype(x.dtype)


# ---------------------------------------------------------------------------
# Pure-JAX reference (PyTorch LSTM semantics), for correctness check.
# ---------------------------------------------------------------------------
def lstm_model_ref(x, params):
    H = params["whh0"].shape[0]

    def cell(x_t, h, c, wih, whh, b):
        gates = x_t @ wih + h @ whh + b
        i = jax.nn.sigmoid(gates[:, 0 * H:1 * H])
        f = jax.nn.sigmoid(gates[:, 1 * H:2 * H])
        g = jnp.tanh(gates[:, 2 * H:3 * H])
        o = jax.nn.sigmoid(gates[:, 3 * H:4 * H])
        c = f * c + i * g
        h = o * jnp.tanh(c)
        return h, c

    B, S, F = x.shape

    def scan_fn(carry, x_t):
        h1, c1, h2, c2 = carry
        h1, c1 = cell(x_t, h1, c1, params["wih0"], params["whh0"], params["b0"])
        h2, c2 = cell(h1, h2, c2, params["wih1"], params["whh1"], params["b1"])
        y = h2 @ params["wfc"] + params["bfc"]
        return (h1, c1, h2, c2), y

    zeros = jnp.zeros((B, H), jnp.float32)
    _, ys = lax.scan(scan_fn, (zeros, zeros, zeros, zeros),
                     jnp.transpose(x, (1, 0, 2)))
    return jnp.transpose(ys, (1, 0, 2))


# ---------------------------------------------------------------------------
# Deterministic parameter init (PyTorch-style uniform(-1/sqrt(H), 1/sqrt(H))).
# ---------------------------------------------------------------------------
def init_params(key, feature_dim, hidden):
    k = 1.0 / jnp.sqrt(jnp.float32(hidden))
    keys = jax.random.split(key, 12)

    def u(kk, shape):
        return jax.random.uniform(kk, shape, jnp.float32, -k, k)

    wih0 = u(keys[0], (feature_dim, 4 * hidden))
    whh0 = u(keys[1], (hidden, 4 * hidden))
    b0 = (u(keys[2], (4 * hidden,)) + u(keys[3], (4 * hidden,))).reshape(1, 4 * hidden)
    wih1 = u(keys[4], (hidden, 4 * hidden))
    whh1 = u(keys[5], (hidden, 4 * hidden))
    b1 = (u(keys[6], (4 * hidden,)) + u(keys[7], (4 * hidden,))).reshape(1, 4 * hidden)
    wfc = u(keys[8], (hidden, feature_dim))
    bfc = u(keys[9], (feature_dim,)).reshape(1, feature_dim)

    return dict(wih0=wih0, whh0=whh0, b0=b0,
                wih1=wih1, whh1=whh1, b1=b1,
                wfc=wfc, bfc=bfc)


if __name__ == "__main__":
    # Module defaults: feature_dimension=51, hidden_size=96, num_layers=2.
    B, S, F, H = 2, 8, 51, 96

    key = jax.random.PRNGKey(0)
    k_param, k_x = jax.random.split(key)
    params = init_params(k_param, F, H)
    x = jax.random.normal(k_x, (B, S, F), jnp.float32)

    ref = jax.block_until_ready(lstm_model_ref(x, params))

    # f32 path: strict check against the reference (use this on v5e too).
    out_f32 = jax.block_until_ready(lstm_model_forward(x, params))
    assert out_f32.shape == (B, S, F), out_f32.shape
    err_f32 = float(jnp.max(jnp.abs(out_f32 - ref)))
    assert err_f32 < 1e-4, err_f32

    # bf16 MXU operands, f32 gate math (v5e-safe fast path).
    out_bf16 = jax.block_until_ready(
        lstm_model_forward(x, params, matmul_dtype=jnp.bfloat16))
    err_bf16 = float(jnp.max(jnp.abs(out_bf16 - ref)))
    assert err_bf16 < 5e-2, err_bf16

    # bf16 MXU operands + bf16 gate nonlinearities (v6e/v7x EUP fast path).
    out_bf16a = jax.block_until_ready(
        lstm_model_forward(x, params, matmul_dtype=jnp.bfloat16,
                           bf16_activations=True))
    err_bf16a = float(jnp.max(jnp.abs(out_bf16a - ref)))
    assert err_bf16a < 1e-1, err_bf16a

    print("KERNEL_OK")
</pallas_src>

<mosaic_0001>
module attributes {stable_mosaic.version = 11 : i64} {
  func.func @kernel(%arg0: memref<64x64xf32, #tpu.memory_space<vmem>>, %arg1: memref<64x512xf32, #tpu.memory_space<vmem>>, %arg2: memref<128x512xf32, #tpu.memory_space<vmem>>, %arg3: memref<1x512xf32, #tpu.memory_space<vmem>>, %arg4: memref<128x512xf32, #tpu.memory_space<vmem>>, %arg5: memref<128x512xf32, #tpu.memory_space<vmem>>, %arg6: memref<1x512xf32, #tpu.memory_space<vmem>>, %arg7: memref<128x128xf32, #tpu.memory_space<vmem>>, %arg8: memref<1x128xf32, #tpu.memory_space<vmem>>, %arg9: memref<64x128xf32, #tpu.memory_space<vmem>>) attributes {dimension_semantics = [], scalar_prefetch = 0 : i64, scratch_operands = 0 : i64, tpu.core_type = #tpu.core_type<tc>} {
    %c0 = arith.constant 0 : index
    %c0_0 = arith.constant 0 : index
    %0 = vector.load %arg1[%c0, %c0_0] : memref<64x512xf32, #tpu.memory_space<vmem>>, vector<64x512xf32>
    %c0_1 = arith.constant 0 : index
    %c0_2 = arith.constant 0 : index
    %1 = vector.load %arg2[%c0_1, %c0_2] : memref<128x512xf32, #tpu.memory_space<vmem>>, vector<128x512xf32>
    %c0_3 = arith.constant 0 : index
    %c0_4 = arith.constant 0 : index
    %2 = vector.load %arg4[%c0_3, %c0_4] : memref<128x512xf32, #tpu.memory_space<vmem>>, vector<128x512xf32>
    %c0_5 = arith.constant 0 : index
    %c0_6 = arith.constant 0 : index
    %3 = vector.load %arg5[%c0_5, %c0_6] : memref<128x512xf32, #tpu.memory_space<vmem>>, vector<128x512xf32>
    %c0_7 = arith.constant 0 : index
    %c0_8 = arith.constant 0 : index
    %4 = vector.load %arg7[%c0_7, %c0_8] : memref<128x128xf32, #tpu.memory_space<vmem>>, vector<128x128xf32>
    %c0_9 = arith.constant 0 : index
    %c0_10 = arith.constant 0 : index
    %5 = vector.load %arg0[%c0_9, %c0_10] : memref<64x64xf32, #tpu.memory_space<vmem>>, vector<64x64xf32>
    %cst = arith.constant dense<0.000000e+00> : vector<64x512xf32>
    %6 = tpu.matmul %5, %0, %cst {dimension_numbers = #tpu.dot_dimension_numbers<[1], [0], [0], [1], [0, 0, 1, 1], [], []>} : vector<64x64xf32>, vector<64x512xf32>, vector<64x512xf32> -> vector<64x512xf32>
    %c0_11 = arith.constant 0 : index
    %c0_12 = arith.constant 0 : index
    %7 = vector.load %arg3[%c0_11, %c0_12] : memref<1x512xf32, #tpu.memory_space<vmem>>, vector<1x512xf32>
    %8 = vector.shape_cast %7 : vector<1x512xf32> to vector<1x512xf32>
    %9 = vector.broadcast %8 : vector<1x512xf32> to vector<64x512xf32>
    %10 = arith.addf %6, %9 : vector<64x512xf32>
    %c0_13 = arith.constant 0 : index
    %c0_14 = arith.constant 0 : index
    %11 = vector.load %arg6[%c0_13, %c0_14] : memref<1x512xf32, #tpu.memory_space<vmem>>, vector<1x512xf32>
    %12 = vector.shape_cast %11 : vector<1x512xf32> to vector<1x512xf32>
    %13 = vector.broadcast %12 : vector<1x512xf32> to vector<8x512xf32>
    %cst_15 = arith.constant 0.000000e+00 : f32
    %14 = vector.broadcast %cst_15 : f32 to vector<8x128xf32>
    %cst_16 = arith.constant dense<0.000000e+00> : vector<8x512xf32>
    %15 = tpu.matmul %14, %3, %cst_16 {dimension_numbers = #tpu.dot_dimension_numbers<[1], [0], [0], [1], [0, 0, 1, 1], [], []>} : vector<8x128xf32>, vector<128x512xf32>, vector<8x512xf32> -> vector<8x512xf32>
    %16 = vector.extract_strided_slice %10 {offsets = [0, 0], sizes = [8, 512], strides = [1, 1]} : vector<64x512xf32> to vector<8x512xf32>
    %cst_17 = arith.constant dense<0.000000e+00> : vector<8x512xf32>
    %17 = tpu.matmul %14, %1, %cst_17 {dimension_numbers = #tpu.dot_dimension_numbers<[1], [0], [0], [1], [0, 0, 1, 1], [], []>} : vector<8x128xf32>, vector<128x512xf32>, vector<8x512xf32> -> vector<8x512xf32>
    %18 = arith.addf %16, %17 : vector<8x512xf32>
    %19 = vector.extract_strided_slice %18 {offsets = [0, 0], sizes = [8, 128], strides = [1, 1]} : vector<8x512xf32> to vector<8x128xf32>
    %20 = arith.negf %19 : vector<8x128xf32>
    %21 = math.exp %20 : vector<8x128xf32>
    %cst_18 = arith.constant 1.000000e+00 : f32
    %22 = vector.broadcast %cst_18 : f32 to vector<8x128xf32>
    %23 = arith.addf %22, %21 : vector<8x128xf32>
    %24 = arith.divf %22, %23 : vector<8x128xf32>
    %25 = vector.extract_strided_slice %18 {offsets = [0, 128], sizes = [8, 128], strides = [1, 1]} : vector<8x512xf32> to vector<8x128xf32>
    %26 = arith.negf %25 : vector<8x128xf32>
    %27 = math.exp %26 : vector<8x128xf32>
    %cst_19 = arith.constant 1.000000e+00 : f32
    %28 = vector.broadcast %cst_19 : f32 to vector<8x128xf32>
    %29 = arith.addf %28, %27 : vector<8x128xf32>
    %30 = arith.divf %28, %29 : vector<8x128xf32>
    %31 = vector.extract_strided_slice %18 {offsets = [0, 256], sizes = [8, 128], strides = [1, 1]} : vector<8x512xf32> to vector<8x128xf32>
    %32 = math.tanh %31 : vector<8x128xf32>
    %33 = vector.extract_strided_slice %18 {offsets = [0, 384], sizes = [8, 128], strides = [1, 1]} : vector<8x512xf32> to vector<8x128xf32>
    %34 = arith.negf %33 : vector<8x128xf32>
    %35 = math.exp %34 : vector<8x128xf32>
    %cst_20 = arith.constant 1.000000e+00 : f32
    %36 = vector.broadcast %cst_20 : f32 to vector<8x128xf32>
    %37 = arith.addf %36, %35 : vector<8x128xf32>
    %38 = arith.divf %36, %37 : vector<8x128xf32>
    %39 = arith.mulf %30, %14 : vector<8x128xf32>
    %40 = arith.mulf %24, %32 : vector<8x128xf32>
    %41 = arith.addf %39, %40 : vector<8x128xf32>
    %42 = math.tanh %41 : vector<8x128xf32>
    %43 = arith.mulf %38, %42 : vector<8x128xf32>
    %cst_21 = arith.constant dense<0.000000e+00> : vector<8x512xf32>
    %44 = tpu.matmul %43, %2, %cst_21 {dimension_numbers = #tpu.dot_dimension_numbers<[1], [0], [0], [1], [0, 0, 1, 1], [], []>} : vector<8x128xf32>, vector<128x512xf32>, vector<8x512xf32> -> vector<8x512xf32>
    %45 = arith.addf %44, %15 : vector<8x512xf32>
    %46 = arith.addf %45, %13 : vector<8x512xf32>
    %47 = vector.extract_strided_slice %46 {offsets = [0, 0], sizes = [8, 128], strides = [1, 1]} : vector<8x512xf32> to vector<8x128xf32>
    %48 = arith.negf %47 : vector<8x128xf32>
    %49 = math.exp %48 : vector<8x128xf32>
    %cst_22 = arith.constant 1.000000e+00 : f32
    %50 = vector.broadcast %cst_22 : f32 to vector<8x128xf32>
    %51 = arith.addf %50, %49 : vector<8x128xf32>
    %52 = arith.divf %50, %51 : vector<8x128xf32>
    %53 = vector.extract_strided_slice %46 {offsets = [0, 128], sizes = [8, 128], strides = [1, 1]} : vector<8x512xf32> to vector<8x128xf32>
    %54 = arith.negf %53 : vector<8x128xf32>
    %55 = math.exp %54 : vector<8x128xf32>
    %cst_23 = arith.constant 1.000000e+00 : f32
    %56 = vector.broadcast %cst_23 : f32 to vector<8x128xf32>
    %57 = arith.addf %56, %55 : vector<8x128xf32>
    %58 = arith.divf %56, %57 : vector<8x128xf32>
    %59 = vector.extract_strided_slice %46 {offsets = [0, 256], sizes = [8, 128], strides = [1, 1]} : vector<8x512xf32> to vector<8x128xf32>
    %60 = math.tanh %59 : vector<8x128xf32>
    %61 = vector.extract_strided_slice %46 {offsets = [0, 384], sizes = [8, 128], strides = [1, 1]} : vector<8x512xf32> to vector<8x128xf32>
    %62 = arith.negf %61 : vector<8x128xf32>
    %63 = math.exp %62 : vector<8x128xf32>
    %cst_24 = arith.constant 1.000000e+00 : f32
    %64 = vector.broadcast %cst_24 : f32 to vector<8x128xf32>
    %65 = arith.addf %64, %63 : vector<8x128xf32>
    %66 = arith.divf %64, %65 : vector<8x128xf32>
    %67 = arith.mulf %58, %14 : vector<8x128xf32>
    %68 = arith.mulf %52, %60 : vector<8x128xf32>
    %69 = arith.addf %67, %68 : vector<8x128xf32>
    %70 = math.tanh %69 : vector<8x128xf32>
    %71 = arith.mulf %66, %70 : vector<8x128xf32>
    %cst_25 = arith.constant dense<0.000000e+00> : vector<8x512xf32>
    %72 = tpu.matmul %71, %3, %cst_25 {dimension_numbers = #tpu.dot_dimension_numbers<[1], [0], [0], [1], [0, 0, 1, 1], [], []>} : vector<8x128xf32>, vector<128x512xf32>, vector<8x512xf32> -> vector<8x512xf32>
    %73 = vector.extract_strided_slice %10 {offsets = [8, 0], sizes = [8, 512], strides = [1, 1]} : vector<64x512xf32> to vector<8x512xf32>
    %cst_26 = arith.constant dense<0.000000e+00> : vector<8x512xf32>
    %74 = tpu.matmul %43, %1, %cst_26 {dimension_numbers = #tpu.dot_dimension_numbers<[1], [0], [0], [1], [0, 0, 1, 1], [], []>} : vector<8x128xf32>, vector<128x512xf32>, vector<8x512xf32> -> vector<8x512xf32>
    %75 = arith.addf %73, %74 : vector<8x512xf32>
    %76 = vector.extract_strided_slice %75 {offsets = [0, 0], sizes = [8, 128], strides = [1, 1]} : vector<8x512xf32> to vector<8x128xf32>
    %77 = arith.negf %76 : vector<8x128xf32>
    %78 = math.exp %77 : vector<8x128xf32>
    %cst_27 = arith.constant 1.000000e+00 : f32
    %79 = vector.broadcast %cst_27 : f32 to vector<8x128xf32>
    %80 = arith.addf %79, %78 : vector<8x128xf32>
    %81 = arith.divf %79, %80 : vector<8x128xf32>
    %82 = vector.extract_strided_slice %75 {offsets = [0, 128], sizes = [8, 128], strides = [1, 1]} : vector<8x512xf32> to vector<8x128xf32>
    %83 = arith.negf %82 : vector<8x128xf32>
    %84 = math.exp %83 : vector<8x128xf32>
    %cst_28 = arith.constant 1.000000e+00 : f32
    %85 = vector.broadcast %cst_28 : f32 to vector<8x128xf32>
    %86 = arith.addf %85, %84 : vector<8x128xf32>
    %87 = arith.divf %85, %86 : vector<8x128xf32>
    %88 = vector.extract_strided_slice %75 {offsets = [0, 256], sizes = [8, 128], strides = [1, 1]} : vector<8x512xf32> to vector<8x128xf32>
    %89 = math.tanh %88 : vector<8x128xf32>
    %90 = vector.extract_strided_slice %75 {offsets = [0, 384], sizes = [8, 128], strides = [1, 1]} : vector<8x512xf32> to vector<8x128xf32>
    %91 = arith.negf %90 : vector<8x128xf32>
    %92 = math.exp %91 : vector<8x128xf32>
    %cst_29 = arith.constant 1.000000e+00 : f32
    %93 = vector.broadcast %cst_29 : f32 to vector<8x128xf32>
    %94 = arith.addf %93, %92 : vector<8x128xf32>
    %95 = arith.divf %93, %94 : vector<8x128xf32>
    %96 = arith.mulf %87, %41 : vector<8x128xf32>
    %97 = arith.mulf %81, %89 : vector<8x128xf32>
    %98 = arith.addf %96, %97 : vector<8x128xf32>
    %99 = math.tanh %98 : vector<8x128xf32>
    %100 = arith.mulf %95, %99 : vector<8x128xf32>
    %cst_30 = arith.constant dense<0.000000e+00> : vector<8x512xf32>
    %101 = tpu.matmul %100, %2, %cst_30 {dimension_numbers = #tpu.dot_dimension_numbers<[1], [0], [0], [1], [0, 0, 1, 1], [], []>} : vector<8x128xf32>, vector<128x512xf32>, vector<8x512xf32> -> vector<8x512xf32>
    %102 = arith.addf %101, %72 : vector<8x512xf32>
    %103 = arith.addf %102, %13 : vector<8x512xf32>
    %104 = vector.extract_strided_slice %103 {offsets = [0, 0], sizes = [8, 128], strides = [1, 1]} : vector<8x512xf32> to vector<8x128xf32>
    %105 = arith.negf %104 : vector<8x128xf32>
    %106 = math.exp %105 : vector<8x128xf32>
    %cst_31 = arith.constant 1.000000e+00 : f32
    %107 = vector.broadcast %cst_31 : f32 to vector<8x128xf32>
    %108 = arith.addf %107, %106 : vector<8x128xf32>
    %109 = arith.divf %107, %108 : vector<8x128xf32>
    %110 = vector.extract_strided_slice %103 {offsets = [0, 128], sizes = [8, 128], strides = [1, 1]} : vector<8x512xf32> to vector<8x128xf32>
    %111 = arith.negf %110 : vector<8x128xf32>
    %112 = math.exp %111 : vector<8x128xf32>
    %cst_32 = arith.constant 1.000000e+00 : f32
    %113 = vector.broadcast %cst_32 : f32 to vector<8x128xf32>
    %114 = arith.addf %113, %112 : vector<8x128xf32>
    %115 = arith.divf %113, %114 : vector<8x128xf32>
    %116 = vector.extract_strided_slice %103 {offsets = [0, 256], sizes = [8, 128], strides = [1, 1]} : vector<8x512xf32> to vector<8x128xf32>
    %117 = math.tanh %116 : vector<8x128xf32>
    %118 = vector.extract_strided_slice %103 {offsets = [0, 384], sizes = [8, 128], strides = [1, 1]} : vector<8x512xf32> to vector<8x128xf32>
    %119 = arith.negf %118 : vector<8x128xf32>
    %120 = math.exp %119 : vector<8x128xf32>
    %cst_33 = arith.constant 1.000000e+00 : f32
    %121 = vector.broadcast %cst_33 : f32 to vector<8x128xf32>
    %122 = arith.addf %121, %120 : vector<8x128xf32>
    %123 = arith.divf %121, %122 : vector<8x128xf32>
    %124 = arith.mulf %115, %69 : vector<8x128xf32>
    %125 = arith.mulf %109, %117 : vector<8x128xf32>
    %126 = arith.addf %124, %125 : vector<8x128xf32>
    %127 = math.tanh %126 : vector<8x128xf32>
    %128 = arith.mulf %123, %127 : vector<8x128xf32>
    %cst_34 = arith.constant dense<0.000000e+00> : vector<8x512xf32>
    %129 = tpu.matmul %128, %3, %cst_34 {dimension_numbers = #tpu.dot_dimension_numbers<[1], [0], [0], [1], [0, 0, 1, 1], [], []>} : vector<8x128xf32>, vector<128x512xf32>, vector<8x512xf32> -> vector<8x512xf32>
    %130 = vector.extract_strided_slice %10 {offsets = [16, 0], sizes = [8, 512], strides = [1, 1]} : vector<64x512xf32> to vector<8x512xf32>
    %cst_35 = arith.constant dense<0.000000e+00> : vector<8x512xf32>
    %131 = tpu.matmul %100, %1, %cst_35 {dimension_numbers = #tpu.dot_dimension_numbers<[1], [0], [0], [1], [0, 0, 1, 1], [], []>} : vector<8x128xf32>, vector<128x512xf32>, vector<8x512xf32> -> vector<8x512xf32>
    %132 = arith.addf %130, %131 : vector<8x512xf32>
    %133 = vector.extract_strided_slice %132 {offsets = [0, 0], sizes = [8, 128], strides = [1, 1]} : vector<8x512xf32> to vector<8x128xf32>
    %134 = arith.negf %133 : vector<8x128xf32>
    %135 = math.exp %134 : vector<8x128xf32>
    %cst_36 = arith.constant 1.000000e+00 : f32
    %136 = vector.broadcast %cst_36 : f32 to vector<8x128xf32>
    %137 = arith.addf %136, %135 : vector<8x128xf32>
    %138 = arith.divf %136, %137 : vector<8x128xf32>
    %139 = vector.extract_strided_slice %132 {offsets = [0, 128], sizes = [8, 128], strides = [1, 1]} : vector<8x512xf32> to vector<8x128xf32>
    %140 = arith.negf %139 : vector<8x128xf32>
    %141 = math.exp %140 : vector<8x128xf32>
    %cst_37 = arith.constant 1.000000e+00 : f32
    %142 = vector.broadcast %cst_37 : f32 to vector<8x128xf32>
    %143 = arith.addf %142, %141 : vector<8x128xf32>
    %144 = arith.divf %142, %143 : vector<8x128xf32>
    %145 = vector.extract_strided_slice %132 {offsets = [0, 256], sizes = [8, 128], strides = [1, 1]} : vector<8x512xf32> to vector<8x128xf32>
    %146 = math.tanh %145 : vector<8x128xf32>
    %147 = vector.extract_strided_slice %132 {offsets = [0, 384], sizes = [8, 128], strides = [1, 1]} : vector<8x512xf32> to vector<8x128xf32>
    %148 = arith.negf %147 : vector<8x128xf32>
    %149 = math.exp %148 : vector<8x128xf32>
    %cst_38 = arith.constant 1.000000e+00 : f32
    %150 = vector.broadcast %cst_38 : f32 to vector<8x128xf32>
    %151 = arith.addf %150, %149 : vector<8x128xf32>
    %152 = arith.divf %150, %151 : vector<8x128xf32>
    %153 = arith.mulf %144, %98 : vector<8x128xf32>
    %154 = arith.mulf %138, %146 : vector<8x128xf32>
    %155 = arith.addf %153, %154 : vector<8x128xf32>
    %156 = math.tanh %155 : vector<8x128xf32>
    %157 = arith.mulf %152, %156 : vector<8x128xf32>
    %cst_39 = arith.constant dense<0.000000e+00> : vector<8x512xf32>
    %158 = tpu.matmul %157, %2, %cst_39 {dimension_numbers = #tpu.dot_dimension_numbers<[1], [0], [0], [1], [0, 0, 1, 1], [], []>} : vector<8x128xf32>, vector<128x512xf32>, vector<8x512xf32> -> vector<8x512xf32>
    %159 = arith.addf %158, %129 : vector<8x512xf32>
    %160 = arith.addf %159, %13 : vector<8x512xf32>
    %161 = vector.extract_strided_slice %160 {offsets = [0, 0], sizes = [8, 128], strides = [1, 1]} : vector<8x512xf32> to vector<8x128xf32>
    %162 = arith.negf %161 : vector<8x128xf32>
    %163 = math.exp %162 : vector<8x128xf32>
    %cst_40 = arith.constant 1.000000e+00 : f32
    %164 = vector.broadcast %cst_40 : f32 to vector<8x128xf32>
    %165 = arith.addf %164, %163 : vector<8x128xf32>
    %166 = arith.divf %164, %165 : vector<8x128xf32>
    %167 = vector.extract_strided_slice %160 {offsets = [0, 128], sizes = [8, 128], strides = [1, 1]} : vector<8x512xf32> to vector<8x128xf32>
    %168 = arith.negf %167 : vector<8x128xf32>
    %169 = math.exp %168 : vector<8x128xf32>
    %cst_41 = arith.constant 1.000000e+00 : f32
    %170 = vector.broadcast %cst_41 : f32 to vector<8x128xf32>
    %171 = arith.addf %170, %169 : vector<8x128xf32>
    %172 = arith.divf %170, %171 : vector<8x128xf32>
    %173 = vector.extract_strided_slice %160 {offsets = [0, 256], sizes = [8, 128], strides = [1, 1]} : vector<8x512xf32> to vector<8x128xf32>
    %174 = math.tanh %173 : vector<8x128xf32>
    %175 = vector.extract_strided_slice %160 {offsets = [0, 384], sizes = [8, 128], strides = [1, 1]} : vector<8x512xf32> to vector<8x128xf32>
    %176 = arith.negf %175 : vector<8x128xf32>
    %177 = math.exp %176 : vector<8x128xf32>
    %cst_42 = arith.constant 1.000000e+00 : f32
    %178 = vector.broadcast %cst_42 : f32 to vector<8x128xf32>
    %179 = arith.addf %178, %177 : vector<8x128xf32>
    %180 = arith.divf %178, %179 : vector<8x128xf32>
    %181 = arith.mulf %172, %126 : vector<8x128xf32>
    %182 = arith.mulf %166, %174 : vector<8x128xf32>
    %183 = arith.addf %181, %182 : vector<8x128xf32>
    %184 = math.tanh %183 : vector<8x128xf32>
    %185 = arith.mulf %180, %184 : vector<8x128xf32>
    %cst_43 = arith.constant dense<0.000000e+00> : vector<8x512xf32>
    %186 = tpu.matmul %185, %3, %cst_43 {dimension_numbers = #tpu.dot_dimension_numbers<[1], [0], [0], [1], [0, 0, 1, 1], [], []>} : vector<8x128xf32>, vector<128x512xf32>, vector<8x512xf32> -> vector<8x512xf32>
    %187 = vector.extract_strided_slice %10 {offsets = [24, 0], sizes = [8, 512], strides = [1, 1]} : vector<64x512xf32> to vector<8x512xf32>
    %cst_44 = arith.constant dense<0.000000e+00> : vector<8x512xf32>
    %188 = tpu.matmul %157, %1, %cst_44 {dimension_numbers = #tpu.dot_dimension_numbers<[1], [0], [0], [1], [0, 0, 1, 1], [], []>} : vector<8x128xf32>, vector<128x512xf32>, vector<8x512xf32> -> vector<8x512xf32>
    %189 = arith.addf %187, %188 : vector<8x512xf32>
    %190 = vector.extract_strided_slice %189 {offsets = [0, 0], sizes = [8, 128], strides = [1, 1]} : vector<8x512xf32> to vector<8x128xf32>
    %191 = arith.negf %190 : vector<8x128xf32>
    %192 = math.exp %191 : vector<8x128xf32>
    %cst_45 = arith.constant 1.000000e+00 : f32
    %193 = vector.broadcast %cst_45 : f32 to vector<8x128xf32>
    %194 = arith.addf %193, %192 : vector<8x128xf32>
    %195 = arith.divf %193, %194 : vector<8x128xf32>
    %196 = vector.extract_strided_slice %189 {offsets = [0, 128], sizes = [8, 128], strides = [1, 1]} : vector<8x512xf32> to vector<8x128xf32>
    %197 = arith.negf %196 : vector<8x128xf32>
    %198 = math.exp %197 : vector<8x128xf32>
    %cst_46 = arith.constant 1.000000e+00 : f32
    %199 = vector.broadcast %cst_46 : f32 to vector<8x128xf32>
    %200 = arith.addf %199, %198 : vector<8x128xf32>
    %201 = arith.divf %199, %200 : vector<8x128xf32>
    %202 = vector.extract_strided_slice %189 {offsets = [0, 256], sizes = [8, 128], strides = [1, 1]} : vector<8x512xf32> to vector<8x128xf32>
    %203 = math.tanh %202 : vector<8x128xf32>
    %204 = vector.extract_strided_slice %189 {offsets = [0, 384], sizes = [8, 128], strides = [1, 1]} : vector<8x512xf32> to vector<8x128xf32>
    %205 = arith.negf %204 : vector<8x128xf32>
    %206 = math.exp %205 : vector<8x128xf32>
    %cst_47 = arith.constant 1.000000e+00 : f32
    %207 = vector.broadcast %cst_47 : f32 to vector<8x128xf32>
    %208 = arith.addf %207, %206 : vector<8x128xf32>
    %209 = arith.divf %207, %208 : vector<8x128xf32>
    %210 = arith.mulf %201, %155 : vector<8x128xf32>
    %211 = arith.mulf %195, %203 : vector<8x128xf32>
    %212 = arith.addf %210, %211 : vector<8x128xf32>
    %213 = math.tanh %212 : vector<8x128xf32>
    %214 = arith.mulf %209, %213 : vector<8x128xf32>
    %cst_48 = arith.constant dense<0.000000e+00> : vector<8x512xf32>
    %215 = tpu.matmul %214, %2, %cst_48 {dimension_numbers = #tpu.dot_dimension_numbers<[1], [0], [0], [1], [0, 0, 1, 1], [], []>} : vector<8x128xf32>, vector<128x512xf32>, vector<8x512xf32> -> vector<8x512xf32>
    %216 = arith.addf %215, %186 : vector<8x512xf32>
    %217 = arith.addf %216, %13 : vector<8x512xf32>
    %218 = vector.extract_strided_slice %217 {offsets = [0, 0], sizes = [8, 128], strides = [1, 1]} : vector<8x512xf32> to vector<8x128xf32>
    %219 = arith.negf %218 : vector<8x128xf32>
    %220 = math.exp %219 : vector<8x128xf32>
    %cst_49 = arith.constant 1.000000e+00 : f32
    %221 = vector.broadcast %cst_49 : f32 to vector<8x128xf32>
    %222 = arith.addf %221, %220 : vector<8x128xf32>
    %223 = arith.divf %221, %222 : vector<8x128xf32>
    %224 = vector.extract_strided_slice %217 {offsets = [0, 128], sizes = [8, 128], strides = [1, 1]} : vector<8x512xf32> to vector<8x128xf32>
    %225 = arith.negf %224 : vector<8x128xf32>
    %226 = math.exp %225 : vector<8x128xf32>
    %cst_50 = arith.constant 1.000000e+00 : f32
    %227 = vector.broadcast %cst_50 : f32 to vector<8x128xf32>
    %228 = arith.addf %227, %226 : vector<8x128xf32>
    %229 = arith.divf %227, %228 : vector<8x128xf32>
    %230 = vector.extract_strided_slice %217 {offsets = [0, 256], sizes = [8, 128], strides = [1, 1]} : vector<8x512xf32> to vector<8x128xf32>
    %231 = math.tanh %230 : vector<8x128xf32>
    %232 = vector.extract_strided_slice %217 {offsets = [0, 384], sizes = [8, 128], strides = [1, 1]} : vector<8x512xf32> to vector<8x128xf32>
    %233 = arith.negf %232 : vector<8x128xf32>
    %234 = math.exp %233 : vector<8x128xf32>
    %cst_51 = arith.constant 1.000000e+00 : f32
    %235 = vector.broadcast %cst_51 : f32 to vector<8x128xf32>
    %236 = arith.addf %235, %234 : vector<8x128xf32>
    %237 = arith.divf %235, %236 : vector<8x128xf32>
    %238 = arith.mulf %229, %183 : vector<8x128xf32>
    %239 = arith.mulf %223, %231 : vector<8x128xf32>
    %240 = arith.addf %238, %239 : vector<8x128xf32>
    %241 = math.tanh %240 : vector<8x128xf32>
    %242 = arith.mulf %237, %241 : vector<8x128xf32>
    %cst_52 = arith.constant dense<0.000000e+00> : vector<8x512xf32>
    %243 = tpu.matmul %242, %3, %cst_52 {dimension_numbers = #tpu.dot_dimension_numbers<[1], [0], [0], [1], [0, 0, 1, 1], [], []>} : vector<8x128xf32>, vector<128x512xf32>, vector<8x512xf32> -> vector<8x512xf32>
    %244 = vector.extract_strided_slice %10 {offsets = [32, 0], sizes = [8, 512], strides = [1, 1]} : vector<64x512xf32> to vector<8x512xf32>
    %cst_53 = arith.constant dense<0.000000e+00> : vector<8x512xf32>
    %245 = tpu.matmul %214, %1, %cst_53 {dimension_numbers = #tpu.dot_dimension_numbers<[1], [0], [0], [1], [0, 0, 1, 1], [], []>} : vector<8x128xf32>, vector<128x512xf32>, vector<8x512xf32> -> vector<8x512xf32>
    %246 = arith.addf %244, %245 : vector<8x512xf32>
    %247 = vector.extract_strided_slice %246 {offsets = [0, 0], sizes = [8, 128], strides = [1, 1]} : vector<8x512xf32> to vector<8x128xf32>
    %248 = arith.negf %247 : vector<8x128xf32>
    %249 = math.exp %248 : vector<8x128xf32>
    %cst_54 = arith.constant 1.000000e+00 : f32
    %250 = vector.broadcast %cst_54 : f32 to vector<8x128xf32>
    %251 = arith.addf %250, %249 : vector<8x128xf32>
    %252 = arith.divf %250, %251 : vector<8x128xf32>
    %253 = vector.extract_strided_slice %246 {offsets = [0, 128], sizes = [8, 128], strides = [1, 1]} : vector<8x512xf32> to vector<8x128xf32>
    %254 = arith.negf %253 : vector<8x128xf32>
    %255 = math.exp %254 : vector<8x128xf32>
    %cst_55 = arith.constant 1.000000e+00 : f32
    %256 = vector.broadcast %cst_55 : f32 to vector<8x128xf32>
    %257 = arith.addf %256, %255 : vector<8x128xf32>
    %258 = arith.divf %256, %257 : vector<8x128xf32>
    %259 = vector.extract_strided_slice %246 {offsets = [0, 256], sizes = [8, 128], strides = [1, 1]} : vector<8x512xf32> to vector<8x128xf32>
    %260 = math.tanh %259 : vector<8x128xf32>
    %261 = vector.extract_strided_slice %246 {offsets = [0, 384], sizes = [8, 128], strides = [1, 1]} : vector<8x512xf32> to vector<8x128xf32>
    %262 = arith.negf %261 : vector<8x128xf32>
    %263 = math.exp %262 : vector<8x128xf32>
    %cst_56 = arith.constant 1.000000e+00 : f32
    %264 = vector.broadcast %cst_56 : f32 to vector<8x128xf32>
    %265 = arith.addf %264, %263 : vector<8x128xf32>
    %266 = arith.divf %264, %265 : vector<8x128xf32>
    %267 = arith.mulf %258, %212 : vector<8x128xf32>
    %268 = arith.mulf %252, %260 : vector<8x128xf32>
    %269 = arith.addf %267, %268 : vector<8x128xf32>
    %270 = math.tanh %269 : vector<8x128xf32>
    %271 = arith.mulf %266, %270 : vector<8x128xf32>
    %cst_57 = arith.constant dense<0.000000e+00> : vector<8x512xf32>
    %272 = tpu.matmul %271, %2, %cst_57 {dimension_numbers = #tpu.dot_dimension_numbers<[1], [0], [0], [1], [0, 0, 1, 1], [], []>} : vector<8x128xf32>, vector<128x512xf32>, vector<8x512xf32> -> vector<8x512xf32>
    %273 = arith.addf %272, %243 : vector<8x512xf32>
    %274 = arith.addf %273, %13 : vector<8x512xf32>
    %275 = vector.extract_strided_slice %274 {offsets = [0, 0], sizes = [8, 128], strides = [1, 1]} : vector<8x512xf32> to vector<8x128xf32>
    %276 = arith.negf %275 : vector<8x128xf32>
    %277 = math.exp %276 : vector<8x128xf32>
    %cst_58 = arith.constant 1.000000e+00 : f32
    %278 = vector.broadcast %cst_58 : f32 to vector<8x128xf32>
    %279 = arith.addf %278, %277 : vector<8x128xf32>
    %280 = arith.divf %278, %279 : vector<8x128xf32>
    %281 = vector.extract_strided_slice %274 {offsets = [0, 128], sizes = [8, 128], strides = [1, 1]} : vector<8x512xf32> to vector<8x128xf32>
    %282 = arith.negf %281 : vector<8x128xf32>
    %283 = math.exp %282 : vector<8x128xf32>
    %cst_59 = arith.constant 1.000000e+00 : f32
    %284 = vector.broadcast %cst_59 : f32 to vector<8x128xf32>
    %285 = arith.addf %284, %283 : vector<8x128xf32>
    %286 = arith.divf %284, %285 : vector<8x128xf32>
    %287 = vector.extract_strided_slice %274 {offsets = [0, 256], sizes = [8, 128], strides = [1, 1]} : vector<8x512xf32> to vector<8x128xf32>
    %288 = math.tanh %287 : vector<8x128xf32>
    %289 = vector.extract_strided_slice %274 {offsets = [0, 384], sizes = [8, 128], strides = [1, 1]} : vector<8x512xf32> to vector<8x128xf32>
    %290 = arith.negf %289 : vector<8x128xf32>
    %291 = math.exp %290 : vector<8x128xf32>
    %cst_60 = arith.constant 1.000000e+00 : f32
    %292 = vector.broadcast %cst_60 : f32 to vector<8x128xf32>
    %293 = arith.addf %292, %291 : vector<8x128xf32>
    %294 = arith.divf %292, %293 : vector<8x128xf32>
    %295 = arith.mulf %286, %240 : vector<8x128xf32>
    %296 = arith.mulf %280, %288 : vector<8x128xf32>
    %297 = arith.addf %295, %296 : vector<8x128xf32>
    %298 = math.tanh %297 : vector<8x128xf32>
    %299 = arith.mulf %294, %298 : vector<8x128xf32>
    %cst_61 = arith.constant dense<0.000000e+00> : vector<8x512xf32>
    %300 = tpu.matmul %299, %3, %cst_61 {dimension_numbers = #tpu.dot_dimension_numbers<[1], [0], [0], [1], [0, 0, 1, 1], [], []>} : vector<8x128xf32>, vector<128x512xf32>, vector<8x512xf32> -> vector<8x512xf32>
    %301 = vector.extract_strided_slice %10 {offsets = [40, 0], sizes = [8, 512], strides = [1, 1]} : vector<64x512xf32> to vector<8x512xf32>
    %cst_62 = arith.constant dense<0.000000e+00> : vector<8x512xf32>
    %302 = tpu.matmul %271, %1, %cst_62 {dimension_numbers = #tpu.dot_dimension_numbers<[1], [0], [0], [1], [0, 0, 1, 1], [], []>} : vector<8x128xf32>, vector<128x512xf32>, vector<8x512xf32> -> vector<8x512xf32>
    %303 = arith.addf %301, %302 : vector<8x512xf32>
    %304 = vector.extract_strided_slice %303 {offsets = [0, 0], sizes = [8, 128], strides = [1, 1]} : vector<8x512xf32> to vector<8x128xf32>
    %305 = arith.negf %304 : vector<8x128xf32>
    %306 = math.exp %305 : vector<8x128xf32>
    %cst_63 = arith.constant 1.000000e+00 : f32
    %307 = vector.broadcast %cst_63 : f32 to vector<8x128xf32>
    %308 = arith.addf %307, %306 : vector<8x128xf32>
    %309 = arith.divf %307, %308 : vector<8x128xf32>
    %310 = vector.extract_strided_slice %303 {offsets = [0, 128], sizes = [8, 128], strides = [1, 1]} : vector<8x512xf32> to vector<8x128xf32>
    %311 = arith.negf %310 : vector<8x128xf32>
    %312 = math.exp %311 : vector<8x128xf32>
    %cst_64 = arith.constant 1.000000e+00 : f32
    %313 = vector.broadcast %cst_64 : f32 to vector<8x128xf32>
    %314 = arith.addf %313, %312 : vector<8x128xf32>
    %315 = arith.divf %313, %314 : vector<8x128xf32>
    %316 = vector.extract_strided_slice %303 {offsets = [0, 256], sizes = [8, 128], strides = [1, 1]} : vector<8x512xf32> to vector<8x128xf32>
    %317 = math.tanh %316 : vector<8x128xf32>
    %318 = vector.extract_strided_slice %303 {offsets = [0, 384], sizes = [8, 128], strides = [1, 1]} : vector<8x512xf32> to vector<8x128xf32>
    %319 = arith.negf %318 : vector<8x128xf32>
    %320 = math.exp %319 : vector<8x128xf32>
    %cst_65 = arith.constant 1.000000e+00 : f32
    %321 = vector.broadcast %cst_65 : f32 to vector<8x128xf32>
    %322 = arith.addf %321, %320 : vector<8x128xf32>
    %323 = arith.divf %321, %322 : vector<8x128xf32>
    %324 = arith.mulf %315, %269 : vector<8x128xf32>
    %325 = arith.mulf %309, %317 : vector<8x128xf32>
    %326 = arith.addf %324, %325 : vector<8x128xf32>
    %327 = math.tanh %326 : vector<8x128xf32>
    %328 = arith.mulf %323, %327 : vector<8x128xf32>
    %cst_66 = arith.constant dense<0.000000e+00> : vector<8x512xf32>
    %329 = tpu.matmul %328, %2, %cst_66 {dimension_numbers = #tpu.dot_dimension_numbers<[1], [0], [0], [1], [0, 0, 1, 1], [], []>} : vector<8x128xf32>, vector<128x512xf32>, vector<8x512xf32> -> vector<8x512xf32>
    %330 = arith.addf %329, %300 : vector<8x512xf32>
    %331 = arith.addf %330, %13 : vector<8x512xf32>
    %332 = vector.extract_strided_slice %331 {offsets = [0, 0], sizes = [8, 128], strides = [1, 1]} : vector<8x512xf32> to vector<8x128xf32>
    %333 = arith.negf %332 : vector<8x128xf32>
    %334 = math.exp %333 : vector<8x128xf32>
    %cst_67 = arith.constant 1.000000e+00 : f32
    %335 = vector.broadcast %cst_67 : f32 to vector<8x128xf32>
    %336 = arith.addf %335, %334 : vector<8x128xf32>
    %337 = arith.divf %335, %336 : vector<8x128xf32>
    %338 = vector.extract_strided_slice %331 {offsets = [0, 128], sizes = [8, 128], strides = [1, 1]} : vector<8x512xf32> to vector<8x128xf32>
    %339 = arith.negf %338 : vector<8x128xf32>
    %340 = math.exp %339 : vector<8x128xf32>
    %cst_68 = arith.constant 1.000000e+00 : f32
    %341 = vector.broadcast %cst_68 : f32 to vector<8x128xf32>
    %342 = arith.addf %341, %340 : vector<8x128xf32>
    %343 = arith.divf %341, %342 : vector<8x128xf32>
    %344 = vector.extract_strided_slice %331 {offsets = [0, 256], sizes = [8, 128], strides = [1, 1]} : vector<8x512xf32> to vector<8x128xf32>
    %345 = math.tanh %344 : vector<8x128xf32>
    %346 = vector.extract_strided_slice %331 {offsets = [0, 384], sizes = [8, 128], strides = [1, 1]} : vector<8x512xf32> to vector<8x128xf32>
    %347 = arith.negf %346 : vector<8x128xf32>
    %348 = math.exp %347 : vector<8x128xf32>
    %cst_69 = arith.constant 1.000000e+00 : f32
    %349 = vector.broadcast %cst_69 : f32 to vector<8x128xf32>
    %350 = arith.addf %349, %348 : vector<8x128xf32>
    %351 = arith.divf %349, %350 : vector<8x128xf32>
    %352 = arith.mulf %343, %297 : vector<8x128xf32>
    %353 = arith.mulf %337, %345 : vector<8x128xf32>
    %354 = arith.addf %352, %353 : vector<8x128xf32>
    %355 = math.tanh %354 : vector<8x128xf32>
    %356 = arith.mulf %351, %355 : vector<8x128xf32>
    %cst_70 = arith.constant dense<0.000000e+00> : vector<8x512xf32>
    %357 = tpu.matmul %356, %3, %cst_70 {dimension_numbers = #tpu.dot_dimension_numbers<[1], [0], [0], [1], [0, 0, 1, 1], [], []>} : vector<8x128xf32>, vector<128x512xf32>, vector<8x512xf32> -> vector<8x512xf32>
    %358 = vector.extract_strided_slice %10 {offsets = [48, 0], sizes = [8, 512], strides = [1, 1]} : vector<64x512xf32> to vector<8x512xf32>
    %cst_71 = arith.constant dense<0.000000e+00> : vector<8x512xf32>
    %359 = tpu.matmul %328, %1, %cst_71 {dimension_numbers = #tpu.dot_dimension_numbers<[1], [0], [0], [1], [0, 0, 1, 1], [], []>} : vector<8x128xf32>, vector<128x512xf32>, vector<8x512xf32> -> vector<8x512xf32>
    %360 = arith.addf %358, %359 : vector<8x512xf32>
    %361 = vector.extract_strided_slice %360 {offsets = [0, 0], sizes = [8, 128], strides = [1, 1]} : vector<8x512xf32> to vector<8x128xf32>
    %362 = arith.negf %361 : vector<8x128xf32>
    %363 = math.exp %362 : vector<8x128xf32>
    %cst_72 = arith.constant 1.000000e+00 : f32
    %364 = vector.broadcast %cst_72 : f32 to vector<8x128xf32>
    %365 = arith.addf %364, %363 : vector<8x128xf32>
    %366 = arith.divf %364, %365 : vector<8x128xf32>
    %367 = vector.extract_strided_slice %360 {offsets = [0, 128], sizes = [8, 128], strides = [1, 1]} : vector<8x512xf32> to vector<8x128xf32>
    %368 = arith.negf %367 : vector<8x128xf32>
    %369 = math.exp %368 : vector<8x128xf32>
    %cst_73 = arith.constant 1.000000e+00 : f32
    %370 = vector.broadcast %cst_73 : f32 to vector<8x128xf32>
    %371 = arith.addf %370, %369 : vector<8x128xf32>
    %372 = arith.divf %370, %371 : vector<8x128xf32>
    %373 = vector.extract_strided_slice %360 {offsets = [0, 256], sizes = [8, 128], strides = [1, 1]} : vector<8x512xf32> to vector<8x128xf32>
    %374 = math.tanh %373 : vector<8x128xf32>
    %375 = vector.extract_strided_slice %360 {offsets = [0, 384], sizes = [8, 128], strides = [1, 1]} : vector<8x512xf32> to vector<8x128xf32>
    %376 = arith.negf %375 : vector<8x128xf32>
    %377 = math.exp %376 : vector<8x128xf32>
    %cst_74 = arith.constant 1.000000e+00 : f32
    %378 = vector.broadcast %cst_74 : f32 to vector<8x128xf32>
    %379 = arith.addf %378, %377 : vector<8x128xf32>
    %380 = arith.divf %378, %379 : vector<8x128xf32>
    %381 = arith.mulf %372, %326 : vector<8x128xf32>
    %382 = arith.mulf %366, %374 : vector<8x128xf32>
    %383 = arith.addf %381, %382 : vector<8x128xf32>
    %384 = math.tanh %383 : vector<8x128xf32>
    %385 = arith.mulf %380, %384 : vector<8x128xf32>
    %cst_75 = arith.constant dense<0.000000e+00> : vector<8x512xf32>
    %386 = tpu.matmul %385, %2, %cst_75 {dimension_numbers = #tpu.dot_dimension_numbers<[1], [0], [0], [1], [0, 0, 1, 1], [], []>} : vector<8x128xf32>, vector<128x512xf32>, vector<8x512xf32> -> vector<8x512xf32>
    %387 = arith.addf %386, %357 : vector<8x512xf32>
    %388 = arith.addf %387, %13 : vector<8x512xf32>
    %389 = vector.extract_strided_slice %388 {offsets = [0, 0], sizes = [8, 128], strides = [1, 1]} : vector<8x512xf32> to vector<8x128xf32>
    %390 = arith.negf %389 : vector<8x128xf32>
    %391 = math.exp %390 : vector<8x128xf32>
    %cst_76 = arith.constant 1.000000e+00 : f32
    %392 = vector.broadcast %cst_76 : f32 to vector<8x128xf32>
    %393 = arith.addf %392, %391 : vector<8x128xf32>
    %394 = arith.divf %392, %393 : vector<8x128xf32>
    %395 = vector.extract_strided_slice %388 {offsets = [0, 128], sizes = [8, 128], strides = [1, 1]} : vector<8x512xf32> to vector<8x128xf32>
    %396 = arith.negf %395 : vector<8x128xf32>
    %397 = math.exp %396 : vector<8x128xf32>
    %cst_77 = arith.constant 1.000000e+00 : f32
    %398 = vector.broadcast %cst_77 : f32 to vector<8x128xf32>
    %399 = arith.addf %398, %397 : vector<8x128xf32>
    %400 = arith.divf %398, %399 : vector<8x128xf32>
    %401 = vector.extract_strided_slice %388 {offsets = [0, 256], sizes = [8, 128], strides = [1, 1]} : vector<8x512xf32> to vector<8x128xf32>
    %402 = math.tanh %401 : vector<8x128xf32>
    %403 = vector.extract_strided_slice %388 {offsets = [0, 384], sizes = [8, 128], strides = [1, 1]} : vector<8x512xf32> to vector<8x128xf32>
    %404 = arith.negf %403 : vector<8x128xf32>
    %405 = math.exp %404 : vector<8x128xf32>
    %cst_78 = arith.constant 1.000000e+00 : f32
    %406 = vector.broadcast %cst_78 : f32 to vector<8x128xf32>
    %407 = arith.addf %406, %405 : vector<8x128xf32>
    %408 = arith.divf %406, %407 : vector<8x128xf32>
    %409 = arith.mulf %400, %354 : vector<8x128xf32>
    %410 = arith.mulf %394, %402 : vector<8x128xf32>
    %411 = arith.addf %409, %410 : vector<8x128xf32>
    %412 = math.tanh %411 : vector<8x128xf32>
    %413 = arith.mulf %408, %412 : vector<8x128xf32>
    %cst_79 = arith.constant dense<0.000000e+00> : vector<8x512xf32>
    %414 = tpu.matmul %413, %3, %cst_79 {dimension_numbers = #tpu.dot_dimension_numbers<[1], [0], [0], [1], [0, 0, 1, 1], [], []>} : vector<8x128xf32>, vector<128x512xf32>, vector<8x512xf32> -> vector<8x512xf32>
    %415 = vector.extract_strided_slice %10 {offsets = [56, 0], sizes = [8, 512], strides = [1, 1]} : vector<64x512xf32> to vector<8x512xf32>
    %cst_80 = arith.constant dense<0.000000e+00> : vector<8x512xf32>
    %416 = tpu.matmul %385, %1, %cst_80 {dimension_numbers = #tpu.dot_dimension_numbers<[1], [0], [0], [1], [0, 0, 1, 1], [], []>} : vector<8x128xf32>, vector<128x512xf32>, vector<8x512xf32> -> vector<8x512xf32>
    %417 = arith.addf %415, %416 : vector<8x512xf32>
    %418 = vector.extract_strided_slice %417 {offsets = [0, 0], sizes = [8, 128], strides = [1, 1]} : vector<8x512xf32> to vector<8x128xf32>
    %419 = arith.negf %418 : vector<8x128xf32>
    %420 = math.exp %419 : vector<8x128xf32>
    %cst_81 = arith.constant 1.000000e+00 : f32
    %421 = vector.broadcast %cst_81 : f32 to vector<8x128xf32>
    %422 = arith.addf %421, %420 : vector<8x128xf32>
    %423 = arith.divf %421, %422 : vector<8x128xf32>
    %424 = vector.extract_strided_slice %417 {offsets = [0, 128], sizes = [8, 128], strides = [1, 1]} : vector<8x512xf32> to vector<8x128xf32>
    %425 = arith.negf %424 : vector<8x128xf32>
    %426 = math.exp %425 : vector<8x128xf32>
    %cst_82 = arith.constant 1.000000e+00 : f32
    %427 = vector.broadcast %cst_82 : f32 to vector<8x128xf32>
    %428 = arith.addf %427, %426 : vector<8x128xf32>
    %429 = arith.divf %427, %428 : vector<8x128xf32>
    %430 = vector.extract_strided_slice %417 {offsets = [0, 256], sizes = [8, 128], strides = [1, 1]} : vector<8x512xf32> to vector<8x128xf32>
    %431 = math.tanh %430 : vector<8x128xf32>
    %432 = vector.extract_strided_slice %417 {offsets = [0, 384], sizes = [8, 128], strides = [1, 1]} : vector<8x512xf32> to vector<8x128xf32>
    %433 = arith.negf %432 : vector<8x128xf32>
    %434 = math.exp %433 : vector<8x128xf32>
    %cst_83 = arith.constant 1.000000e+00 : f32
    %435 = vector.broadcast %cst_83 : f32 to vector<8x128xf32>
    %436 = arith.addf %435, %434 : vector<8x128xf32>
    %437 = arith.divf %435, %436 : vector<8x128xf32>
    %438 = arith.mulf %429, %383 : vector<8x128xf32>
    %439 = arith.mulf %423, %431 : vector<8x128xf32>
    %440 = arith.addf %438, %439 : vector<8x128xf32>
    %441 = math.tanh %440 : vector<8x128xf32>
    %442 = arith.mulf %437, %441 : vector<8x128xf32>
    %cst_84 = arith.constant dense<0.000000e+00> : vector<8x512xf32>
    %443 = tpu.matmul %442, %2, %cst_84 {dimension_numbers = #tpu.dot_dimension_numbers<[1], [0], [0], [1], [0, 0, 1, 1], [], []>} : vector<8x128xf32>, vector<128x512xf32>, vector<8x512xf32> -> vector<8x512xf32>
    %444 = arith.addf %443, %414 : vector<8x512xf32>
    %445 = arith.addf %444, %13 : vector<8x512xf32>
    %446 = vector.extract_strided_slice %445 {offsets = [0, 0], sizes = [8, 128], strides = [1, 1]} : vector<8x512xf32> to vector<8x128xf32>
    %447 = arith.negf %446 : vector<8x128xf32>
    %448 = math.exp %447 : vector<8x128xf32>
    %cst_85 = arith.constant 1.000000e+00 : f32
    %449 = vector.broadcast %cst_85 : f32 to vector<8x128xf32>
    %450 = arith.addf %449, %448 : vector<8x128xf32>
    %451 = arith.divf %449, %450 : vector<8x128xf32>
    %452 = vector.extract_strided_slice %445 {offsets = [0, 128], sizes = [8, 128], strides = [1, 1]} : vector<8x512xf32> to vector<8x128xf32>
    %453 = arith.negf %452 : vector<8x128xf32>
    %454 = math.exp %453 : vector<8x128xf32>
    %cst_86 = arith.constant 1.000000e+00 : f32
    %455 = vector.broadcast %cst_86 : f32 to vector<8x128xf32>
    %456 = arith.addf %455, %454 : vector<8x128xf32>
    %457 = arith.divf %455, %456 : vector<8x128xf32>
    %458 = vector.extract_strided_slice %445 {offsets = [0, 256], sizes = [8, 128], strides = [1, 1]} : vector<8x512xf32> to vector<8x128xf32>
    %459 = math.tanh %458 : vector<8x128xf32>
    %460 = vector.extract_strided_slice %445 {offsets = [0, 384], sizes = [8, 128], strides = [1, 1]} : vector<8x512xf32> to vector<8x128xf32>
    %461 = arith.negf %460 : vector<8x128xf32>
    %462 = math.exp %461 : vector<8x128xf32>
    %cst_87 = arith.constant 1.000000e+00 : f32
    %463 = vector.broadcast %cst_87 : f32 to vector<8x128xf32>
    %464 = arith.addf %463, %462 : vector<8x128xf32>
    %465 = arith.divf %463, %464 : vector<8x128xf32>
    %466 = arith.mulf %457, %411 : vector<8x128xf32>
    %467 = arith.mulf %451, %459 : vector<8x128xf32>
    %468 = arith.addf %466, %467 : vector<8x128xf32>
    %469 = math.tanh %468 : vector<8x128xf32>
    %470 = arith.mulf %465, %469 : vector<8x128xf32>
    %471 = tpu.concatenate %71, %128, %185, %242, %299, %356, %413, %470 in 0 : vector<8x128xf32>, vector<8x128xf32>, vector<8x128xf32>, vector<8x128xf32>, vector<8x128xf32>, vector<8x128xf32>, vector<8x128xf32>, vector<8x128xf32> -> vector<64x128xf32>
    %cst_88 = arith.constant dense<0.000000e+00> : vector<64x128xf32>
    %472 = tpu.matmul %471, %4, %cst_88 {dimension_numbers = #tpu.dot_dimension_numbers<[1], [0], [0], [1], [0, 0, 1, 1], [], []>} : vector<64x128xf32>, vector<128x128xf32>, vector<64x128xf32> -> vector<64x128xf32>
    %c0_89 = arith.constant 0 : index
    %c0_90 = arith.constant 0 : index
    %473 = vector.load %arg8[%c0_89, %c0_90] : memref<1x128xf32, #tpu.memory_space<vmem>>, vector<1x128xf32>
    %474 = vector.shape_cast %473 : vector<1x128xf32> to vector<1x128xf32>
    %475 = vector.broadcast %474 : vector<1x128xf32> to vector<64x128xf32>
    %476 = arith.addf %472, %475 : vector<64x128xf32>
    %c0_91 = arith.constant 0 : index
    %c0_92 = arith.constant 0 : index
    %477 = vector.load %arg9[%c0_91, %c0_92] : memref<64x128xf32, #tpu.memory_space<vmem>>, vector<64x128xf32>
    tpu.vector_store %arg9[%c0_91, %c0_92], %476 {strides = array<i32>} : memref<64x128xf32, #tpu.memory_space<vmem>>, vector<64x128xf32>,
    return
  }
}

</mosaic_0001>

<llo_original>
// kernel: lstm_model_forward.1
$region0: #{lstm_model_forward.1}
  #allocation0 [shape = 'u32[]', space=smem, size = 0x4, offset = 0x4, fixed_abs, tag = 'smem constant byte address 0x4 - core index']
  #allocation1 [shape = 'u32[144,128]{1,0:T(1,128)}', space=vmem, size = 0x12000, scoped, tag = 'internal scratch']
  %s0 = inlined_call_operand.vmem [shape: f32[64,64], index: 0, kind: input, shape index: {}]
  %s1 = inlined_call_operand.vmem [shape: f32[64,512], index: 1, kind: input, shape index: {}]
  %s2 = inlined_call_operand.vmem [shape: f32[128,512], index: 2, kind: input, shape index: {}]
  %s3 = inlined_call_operand.vmem [shape: f32[1,512], index: 3, kind: input, shape index: {}]
  %s4 = inlined_call_operand.vmem [shape: f32[128,512], index: 4, kind: input, shape index: {}]
  %s5 = inlined_call_operand.vmem [shape: f32[128,512], index: 5, kind: input, shape index: {}]
  %s6 = inlined_call_operand.vmem [shape: f32[1,512], index: 6, kind: input, shape index: {}]
  %s7 = inlined_call_operand.vmem [shape: f32[128,128], index: 7, kind: input, shape index: {}]
  %s8 = inlined_call_operand.vmem [shape: f32[1,128], index: 8, kind: input, shape index: {}]
  %s9 = inlined_call_operand.vmem [shape: f32[64,128], index: 9, kind: output, shape index: {}]
  %s10 = sld [smem:[#allocation0]]
  $region46: #{lstm_model_forward.1} parent=0
    _
  %s12 = ssub.s32 1, %s10
  %s13 = scalar_select 0, %s12, %s10
  // Predicated region
  $region2: #{lstm_model_forward.1} parent=0 // pred_check
    _
  $region3: #{lstm_model_forward.1} parent=0 // pred_check_branch
    %15 = sbr.rel (0) target = $region5
  $region4: #{lstm_model_forward.1} parent=0 // pred_region
    _
  $region5: #{lstm_model_forward.1} parent=0 // pred_fallthru
    _
  // Predicated region
  $region6: #{lstm_model_forward.1} parent=0 // pred_check
    _
  $region7: #{lstm_model_forward.1} parent=0 // pred_check_branch
    %17 = sbr.rel (0) target = $region9
  $region8: #{lstm_model_forward.1} parent=0 // pred_region
    _
  $region9: #{lstm_model_forward.1} parent=0 // pred_fallthru
    _
  // Predicated region
  $region10: #{lstm_model_forward.1} parent=0 // pred_check
    _
  $region11: #{lstm_model_forward.1} parent=0 // pred_check_branch
    %19 = sbr.rel (0) target = $region13
  $region12: #{lstm_model_forward.1} parent=0 // pred_region
    _
  $region13: #{lstm_model_forward.1} parent=0 // pred_fallthru
    _
  // Predicated region
  $region14: #{lstm_model_forward.1} parent=0 // pred_check
    _
  $region15: #{lstm_model_forward.1} parent=0 // pred_check_branch
    %21 = sbr.rel (0) target = $region17
  $region16: #{lstm_model_forward.1} parent=0 // pred_region
    _
  $region17: #{lstm_model_forward.1} parent=0 // pred_fallthru
    _
  // Predicated region
  $region18: #{lstm_model_forward.1} parent=0 // pred_check
    _
  $region19: #{lstm_model_forward.1} parent=0 // pred_check_branch
    %23 = sbr.rel (0) target = $region21
  $region20: #{lstm_model_forward.1} parent=0 // pred_region
    _
  $region21: #{lstm_model_forward.1} parent=0 // pred_fallthru
    _
  // Predicated region
  $region22: #{lstm_model_forward.1} parent=0 // pred_check
    _
  $region23: #{lstm_model_forward.1} parent=0 // pred_check_branch
    %25 = sbr.rel (0) target = $region25
  $region24: #{lstm_model_forward.1} parent=0 // pred_region
    _
  $region25: #{lstm_model_forward.1} parent=0 // pred_fallthru
    _
  // Predicated region
  $region26: #{lstm_model_forward.1} parent=0 // pred_check
    _
  $region27: #{lstm_model_forward.1} parent=0 // pred_check_branch
    %27 = sbr.rel (0) target = $region29
  $region28: #{lstm_model_forward.1} parent=0 // pred_region
    _
  $region29: #{lstm_model_forward.1} parent=0 // pred_fallthru
    _
  // Predicated region
  $region30: #{lstm_model_forward.1} parent=0 // pred_check
    _
  $region31: #{lstm_model_forward.1} parent=0 // pred_check_branch
    %29 = sbr.rel (0) target = $region33
  $region32: #{lstm_model_forward.1} parent=0 // pred_region
    _
  $region33: #{lstm_model_forward.1} parent=0 // pred_fallthru
    _
  // Predicated region
  $region34: #{lstm_model_forward.1} parent=0 // pred_check
    _
  $region35: #{lstm_model_forward.1} parent=0 // pred_check_branch
    %31 = sbr.rel (0) target = $region37
  $region36: #{lstm_model_forward.1} parent=0 // pred_region
    _
  $region37: #{lstm_model_forward.1} parent=0 // pred_fallthru
    _
  %v32 = vld [vmem:[%s1] sm:$0xff]
  %v33 = vld [vmem:[%s1 + $0x8] sm:$0xff]
  %v34 = vld [vmem:[%s1 + $0x10] sm:$0xff]
  %v35 = vld [vmem:[%s1 + $0x18] sm:$0xff]
  %v36 = vld [vmem:[%s1 + $0x20] sm:$0xff]
  %v37 = vld [vmem:[%s1 + $0x28] sm:$0xff]
  %v38 = vld [vmem:[%s1 + $0x30] sm:$0xff]
  %v39 = vld [vmem:[%s1 + $0x38] sm:$0xff]
  %v40 = vld [vmem:[%s1 + $0x40] sm:$0xff]
  %v41 = vld [vmem:[%s1 + $0x48] sm:$0xff]
  %v42 = vld [vmem:[%s1 + $0x50] sm:$0xff]
  %v43 = vld [vmem:[%s1 + $0x58] sm:$0xff]
  %v44 = vld [vmem:[%s1 + $0x60] sm:$0xff]
  %v45 = vld [vmem:[%s1 + $0x68] sm:$0xff]
  %v46 = vld [vmem:[%s1 + $0x70] sm:$0xff]
  %v47 = vld [vmem:[%s1 + $0x78] sm:$0xff]
  %v48 = vld [vmem:[%s1 + $0x80] sm:$0xff]
  %v49 = vld [vmem:[%s1 + $0x88] sm:$0xff]
  %v50 = vld [vmem:[%s1 + $0x90] sm:$0xff]
  %v51 = vld [vmem:[%s1 + $0x98] sm:$0xff]
  %v52 = vld [vmem:[%s1 + $0xa0] sm:$0xff]
  %v53 = vld [vmem:[%s1 + $0xa8] sm:$0xff]
  %v54 = vld [vmem:[%s1 + $0xb0] sm:$0xff]
  %v55 = vld [vmem:[%s1 + $0xb8] sm:$0xff]
  %v56 = vld [vmem:[%s1 + $0xc0] sm:$0xff]
  %v57 = vld [vmem:[%s1 + $0xc8] sm:$0xff]
  %v58 = vld [vmem:[%s1 + $0xd0] sm:$0xff]
  %v59 = vld [vmem:[%s1 + $0xd8] sm:$0xff]
  %v60 = vld [vmem:[%s1 + $0xe0] sm:$0xff]
  %v61 = vld [vmem:[%s1 + $0xe8] sm:$0xff]
  %v62 = vld [vmem:[%s1 + $0xf0] sm:$0xff]
  %v63 = vld [vmem:[%s1 + $0xf8] sm:$0xff]
  %v64 = vld [vmem:[%s2] sm:$0xff]
  %v65 = vld [vmem:[%s2 + $0x8] sm:$0xff]
  %v66 = vld [vmem:[%s2 + $0x10] sm:$0xff]
  %v67 = vld [vmem:[%s2 + $0x18] sm:$0xff]
  %v68 = vld [vmem:[%s2 + $0x20] sm:$0xff]
  %v69 = vld [vmem:[%s2 + $0x28] sm:$0xff]
  %v70 = vld [vmem:[%s2 + $0x30] sm:$0xff]
  %v71 = vld [vmem:[%s2 + $0x38] sm:$0xff]
  %v72 = vld [vmem:[%s2 + $0x40] sm:$0xff]
  %v73 = vld [vmem:[%s2 + $0x48] sm:$0xff]
  %v74 = vld [vmem:[%s2 + $0x50] sm:$0xff]
  %v75 = vld [vmem:[%s2 + $0x58] sm:$0xff]
  %v76 = vld [vmem:[%s2 + $0x60] sm:$0xff]
  %v77 = vld [vmem:[%s2 + $0x68] sm:$0xff]
  %v78 = vld [vmem:[%s2 + $0x70] sm:$0xff]
  %v79 = vld [vmem:[%s2 + $0x78] sm:$0xff]
  %v80 = vld [vmem:[%s2 + $0x80] sm:$0xff]
  %v81 = vld [vmem:[%s2 + $0x88] sm:$0xff]
  %v82 = vld [vmem:[%s2 + $0x90] sm:$0xff]
  %v83 = vld [vmem:[%s2 + $0x98] sm:$0xff]
  %v84 = vld [vmem:[%s2 + $0xa0] sm:$0xff]
  %v85 = vld [vmem:[%s2 + $0xa8] sm:$0xff]
  %v86 = vld [vmem:[%s2 + $0xb0] sm:$0xff]
  %v87 = vld [vmem:[%s2 + $0xb8] sm:$0xff]
  %v88 = vld [vmem:[%s2 + $0xc0] sm:$0xff]
  %v89 = vld [vmem:[%s2 + $0xc8] sm:$0xff]
  %v90 = vld [vmem:[%s2 + $0xd0] sm:$0xff]
  %v91 = vld [vmem:[%s2 + $0xd8] sm:$0xff]
  %v92 = vld [vmem:[%s2 + $0xe0] sm:$0xff]
  %v93 = vld [vmem:[%s2 + $0xe8] sm:$0xff]
  %v94 = vld [vmem:[%s2 + $0xf0] sm:$0xff]
  %v95 = vld [vmem:[%s2 + $0xf8] sm:$0xff]
  %v96 = vld [vmem:[%s2 + $0x100] sm:$0xff]
  %v97 = vld [vmem:[%s2 + $0x108] sm:$0xff]
  %v98 = vld [vmem:[%s2 + $0x110] sm:$0xff]
  %v99 = vld [vmem:[%s2 + $0x118] sm:$0xff]
  %v100 = vld [vmem:[%s2 + $0x120] sm:$0xff]
  %v101 = vld [vmem:[%s2 + $0x128] sm:$0xff]
  %v102 = vld [vmem:[%s2 + $0x130] sm:$0xff]
  %v103 = vld [vmem:[%s2 + $0x138] sm:$0xff]
  %v104 = vld [vmem:[%s2 + $0x140] sm:$0xff]
  %v105 = vld [vmem:[%s2 + $0x148] sm:$0xff]
  %v106 = vld [vmem:[%s2 + $0x150] sm:$0xff]
  %v107 = vld [vmem:[%s2 + $0x158] sm:$0xff]
  %v108 = vld [vmem:[%s2 + $0x160] sm:$0xff]
  %v109 = vld [vmem:[%s2 + $0x168] sm:$0xff]
  %v110 = vld [vmem:[%s2 + $0x170] sm:$0xff]
  %v111 = vld [vmem:[%s2 + $0x178] sm:$0xff]
  %v112 = vld [vmem:[%s2 + $0x180] sm:$0xff]
  %v113 = vld [vmem:[%s2 + $0x188] sm:$0xff]
  %v114 = vld [vmem:[%s2 + $0x190] sm:$0xff]
  %v115 = vld [vmem:[%s2 + $0x198] sm:$0xff]
  %v116 = vld [vmem:[%s2 + $0x1a0] sm:$0xff]
  %v117 = vld [vmem:[%s2 + $0x1a8] sm:$0xff]
  %v118 = vld [vmem:[%s2 + $0x1b0] sm:$0xff]
  %v119 = vld [vmem:[%s2 + $0x1b8] sm:$0xff]
  %v120 = vld [vmem:[%s2 + $0x1c0] sm:$0xff]
  %v121 = vld [vmem:[%s2 + $0x1c8] sm:$0xff]
  %v122 = vld [vmem:[%s2 + $0x1d0] sm:$0xff]
  %v123 = vld [vmem:[%s2 + $0x1d8] sm:$0xff]
  %v124 = vld [vmem:[%s2 + $0x1e0] sm:$0xff]
  %v125 = vld [vmem:[%s2 + $0x1e8] sm:$0xff]
  %v126 = vld [vmem:[%s2 + $0x1f0] sm:$0xff]
  %v127 = vld [vmem:[%s2 + $0x1f8] sm:$0xff]
  %v128 = vld [vmem:[%s4] sm:$0xff]
  %v129 = vld [vmem:[%s4 + $0x8] sm:$0xff]
  %v130 = vld [vmem:[%s4 + $0x10] sm:$0xff]
  %v131 = vld [vmem:[%s4 + $0x18] sm:$0xff]
  %v132 = vld [vmem:[%s4 + $0x20] sm:$0xff]
  %v133 = vld [vmem:[%s4 + $0x28] sm:$0xff]
  %v134 = vld [vmem:[%s4 + $0x30] sm:$0xff]
  %v135 = vld [vmem:[%s4 + $0x38] sm:$0xff]
  %v136 = vld [vmem:[%s4 + $0x40] sm:$0xff]
  %v137 = vld [vmem:[%s4 + $0x48] sm:$0xff]
  %v138 = vld [vmem:[%s4 + $0x50] sm:$0xff]
  %v139 = vld [vmem:[%s4 + $0x58] sm:$0xff]
  %v140 = vld [vmem:[%s4 + $0x60] sm:$0xff]
  %v141 = vld [vmem:[%s4 + $0x68] sm:$0xff]
  %v142 = vld [vmem:[%s4 + $0x70] sm:$0xff]
  %v143 = vld [vmem:[%s4 + $0x78] sm:$0xff]
  %v144 = vld [vmem:[%s4 + $0x80] sm:$0xff]
  %v145 = vld [vmem:[%s4 + $0x88] sm:$0xff]
  %v146 = vld [vmem:[%s4 + $0x90] sm:$0xff]
  %v147 = vld [vmem:[%s4 + $0x98] sm:$0xff]
  %v148 = vld [vmem:[%s4 + $0xa0] sm:$0xff]
  %v149 = vld [vmem:[%s4 + $0xa8] sm:$0xff]
  %v150 = vld [vmem:[%s4 + $0xb0] sm:$0xff]
  %v151 = vld [vmem:[%s4 + $0xb8] sm:$0xff]
  %v152 = vld [vmem:[%s4 + $0xc0] sm:$0xff]
  %v153 = vld [vmem:[%s4 + $0xc8] sm:$0xff]
  %v154 = vld [vmem:[%s4 + $0xd0] sm:$0xff]
  %v155 = vld [vmem:[%s4 + $0xd8] sm:$0xff]
  %v156 = vld [vmem:[%s4 + $0xe0] sm:$0xff]
  %v157 = vld [vmem:[%s4 + $0xe8] sm:$0xff]
  %v158 = vld [vmem:[%s4 + $0xf0] sm:$0xff]
  %v159 = vld [vmem:[%s4 + $0xf8] sm:$0xff]
  %v160 = vld [vmem:[%s4 + $0x100] sm:$0xff]
  %v161 = vld [vmem:[%s4 + $0x108] sm:$0xff]
  %v162 = vld [vmem:[%s4 + $0x110] sm:$0xff]
  %v163 = vld [vmem:[%s4 + $0x118] sm:$0xff]
  %v164 = vld [vmem:[%s4 + $0x120] sm:$0xff]
  %v165 = vld [vmem:[%s4 + $0x128] sm:$0xff]
  %v166 = vld [vmem:[%s4 + $0x130] sm:$0xff]
  %v167 = vld [vmem:[%s4 + $0x138] sm:$0xff]
  %v168 = vld [vmem:[%s4 + $0x140] sm:$0xff]
  %v169 = vld [vmem:[%s4 + $0x148] sm:$0xff]
  %v170 = vld [vmem:[%s4 + $0x150] sm:$0xff]
  %v171 = vld [vmem:[%s4 + $0x158] sm:$0xff]
  %v172 = vld [vmem:[%s4 + $0x160] sm:$0xff]
  %v173 = vld [vmem:[%s4 + $0x168] sm:$0xff]
  %v174 = vld [vmem:[%s4 + $0x170] sm:$0xff]
  %v175 = vld [vmem:[%s4 + $0x178] sm:$0xff]
  %v176 = vld [vmem:[%s4 + $0x180] sm:$0xff]
  %v177 = vld [vmem:[%s4 + $0x188] sm:$0xff]
  %v178 = vld [vmem:[%s4 + $0x190] sm:$0xff]
  %v179 = vld [vmem:[%s4 + $0x198] sm:$0xff]
  %v180 = vld [vmem:[%s4 + $0x1a0] sm:$0xff]
  %v181 = vld [vmem:[%s4 + $0x1a8] sm:$0xff]
  %v182 = vld [vmem:[%s4 + $0x1b0] sm:$0xff]
  %v183 = vld [vmem:[%s4 + $0x1b8] sm:$0xff]
  %v184 = vld [vmem:[%s4 + $0x1c0] sm:$0xff]
  %v185 = vld [vmem:[%s4 + $0x1c8] sm:$0xff]
  %v186 = vld [vmem:[%s4 + $0x1d0] sm:$0xff]
  %v187 = vld [vmem:[%s4 + $0x1d8] sm:$0xff]
  %v188 = vld [vmem:[%s4 + $0x1e0] sm:$0xff]
  %v189 = vld [vmem:[%s4 + $0x1e8] sm:$0xff]
  %v190 = vld [vmem:[%s4 + $0x1f0] sm:$0xff]
  %v191 = vld [vmem:[%s4 + $0x1f8] sm:$0xff]
  %v192 = vld [vmem:[%s5] sm:$0xff]
  %v193 = vld [vmem:[%s5 + $0x8] sm:$0xff]
  %v194 = vld [vmem:[%s5 + $0x10] sm:$0xff]
  %v195 = vld [vmem:[%s5 + $0x18] sm:$0xff]
  %v196 = vld [vmem:[%s5 + $0x20] sm:$0xff]
  %v197 = vld [vmem:[%s5 + $0x28] sm:$0xff]
  %v198 = vld [vmem:[%s5 + $0x30] sm:$0xff]
  %v199 = vld [vmem:[%s5 + $0x38] sm:$0xff]
  %v200 = vld [vmem:[%s5 + $0x40] sm:$0xff]
  %v201 = vld [vmem:[%s5 + $0x48] sm:$0xff]
  %v202 = vld [vmem:[%s5 + $0x50] sm:$0xff]
  %v203 = vld [vmem:[%s5 + $0x58] sm:$0xff]
  %v204 = vld [vmem:[%s5 + $0x60] sm:$0xff]
  %v205 = vld [vmem:[%s5 + $0x68] sm:$0xff]
  %v206 = vld [vmem:[%s5 + $0x70] sm:$0xff]
  %v207 = vld [vmem:[%s5 + $0x78] sm:$0xff]
  %v208 = vld [vmem:[%s5 + $0x80] sm:$0xff]
  %v209 = vld [vmem:[%s5 + $0x88] sm:$0xff]
  %v210 = vld [vmem:[%s5 + $0x90] sm:$0xff]
  %v211 = vld [vmem:[%s5 + $0x98] sm:$0xff]
  %v212 = vld [vmem:[%s5 + $0xa0] sm:$0xff]
  %v213 = vld [vmem:[%s5 + $0xa8] sm:$0xff]
  %v214 = vld [vmem:[%s5 + $0xb0] sm:$0xff]
  %v215 = vld [vmem:[%s5 + $0xb8] sm:$0xff]
  %v216 = vld [vmem:[%s5 + $0xc0] sm:$0xff]
  %v217 = vld [vmem:[%s5 + $0xc8] sm:$0xff]
  %v218 = vld [vmem:[%s5 + $0xd0] sm:$0xff]
  %v219 = vld [vmem:[%s5 + $0xd8] sm:$0xff]
  %v220 = vld [vmem:[%s5 + $0xe0] sm:$0xff]
  %v221 = vld [vmem:[%s5 + $0xe8] sm:$0xff]
  %v222 = vld [vmem:[%s5 + $0xf0] sm:$0xff]
  %v223 = vld [vmem:[%s5 + $0xf8] sm:$0xff]
  %v224 = vld [vmem:[%s5 + $0x100] sm:$0xff]
  %v225 = vld [vmem:[%s5 + $0x108] sm:$0xff]
  %v226 = vld [vmem:[%s5 + $0x110] sm:$0xff]
  %v227 = vld [vmem:[%s5 + $0x118] sm:$0xff]
  %v228 = vld [vmem:[%s5 + $0x120] sm:$0xff]
  %v229 = vld [vmem:[%s5 + $0x128] sm:$0xff]
  %v230 = vld [vmem:[%s5 + $0x130] sm:$0xff]
  %v231 = vld [vmem:[%s5 + $0x138] sm:$0xff]
  %v232 = vld [vmem:[%s5 + $0x140] sm:$0xff]
  %v233 = vld [vmem:[%s5 + $0x148] sm:$0xff]
  %v234 = vld [vmem:[%s5 + $0x150] sm:$0xff]
  %v235 = vld [vmem:[%s5 + $0x158] sm:$0xff]
  %v236 = vld [vmem:[%s5 + $0x160] sm:$0xff]
  %v237 = vld [vmem:[%s5 + $0x168] sm:$0xff]
  %v238 = vld [vmem:[%s5 + $0x170] sm:$0xff]
  %v239 = vld [vmem:[%s5 + $0x178] sm:$0xff]
  %v240 = vld [vmem:[%s5 + $0x180] sm:$0xff]
  %v241 = vld [vmem:[%s5 + $0x188] sm:$0xff]
  %v242 = vld [vmem:[%s5 + $0x190] sm:$0xff]
  %v243 = vld [vmem:[%s5 + $0x198] sm:$0xff]
  %v244 = vld [vmem:[%s5 + $0x1a0] sm:$0xff]
  %v245 = vld [vmem:[%s5 + $0x1a8] sm:$0xff]
  %v246 = vld [vmem:[%s5 + $0x1b0] sm:$0xff]
  %v247 = vld [vmem:[%s5 + $0x1b8] sm:$0xff]
  %v248 = vld [vmem:[%s5 + $0x1c0] sm:$0xff]
  %v249 = vld [vmem:[%s5 + $0x1c8] sm:$0xff]
  %v250 = vld [vmem:[%s5 + $0x1d0] sm:$0xff]
  %v251 = vld [vmem:[%s5 + $0x1d8] sm:$0xff]
  %v252 = vld [vmem:[%s5 + $0x1e0] sm:$0xff]
  %v253 = vld [vmem:[%s5 + $0x1e8] sm:$0xff]
  %v254 = vld [vmem:[%s5 + $0x1f0] sm:$0xff]
  %v255 = vld [vmem:[%s5 + $0x1f8] sm:$0xff]
  %v256 = vld [vmem:[%s7] sm:$0xff]
  %v257 = vld [vmem:[%s7 + $0x8] sm:$0xff]
  %v258 = vld [vmem:[%s7 + $0x10] sm:$0xff]
  %v259 = vld [vmem:[%s7 + $0x18] sm:$0xff]
  %v260 = vld [vmem:[%s7 + $0x20] sm:$0xff]
  %v261 = vld [vmem:[%s7 + $0x28] sm:$0xff]
  %v262 = vld [vmem:[%s7 + $0x30] sm:$0xff]
  %v263 = vld [vmem:[%s7 + $0x38] sm:$0xff]
  %v264 = vld [vmem:[%s7 + $0x40] sm:$0xff]
  %v265 = vld [vmem:[%s7 + $0x48] sm:$0xff]
  %v266 = vld [vmem:[%s7 + $0x50] sm:$0xff]
  %v267 = vld [vmem:[%s7 + $0x58] sm:$0xff]
  %v268 = vld [vmem:[%s7 + $0x60] sm:$0xff]
  %v269 = vld [vmem:[%s7 + $0x68] sm:$0xff]
  %v270 = vld [vmem:[%s7 + $0x70] sm:$0xff]
  %v271 = vld [vmem:[%s7 + $0x78] sm:$0xff]
  %v272 = vld [vmem:[%s0] sm:$0xff]
  %v273 = vld [vmem:[%s0 + $0x8] sm:$0xff]
  %v274 = vld [vmem:[%s0 + $0x10] sm:$0xff]
  %v275 = vld [vmem:[%s0 + $0x18] sm:$0xff]
  %v276 = vld [vmem:[%s0 + $0x20] sm:$0xff]
  %v277 = vld [vmem:[%s0 + $0x28] sm:$0xff]
  %v278 = vld [vmem:[%s0 + $0x30] sm:$0xff]
  %v279 = vld [vmem:[%s0 + $0x38] sm:$0xff]
  %v280 = vld [vmem:[%s3] sm:$0xf]
  %v282 = vlaneseq
  %v283 = vshrl.u32 %v282, 7
  %v284 = vsub.s32 0, %v283
  %v285 = vrot.slane %v280, %v284
  %v286 = vlaneseq
  %v287 = vshrl.u32 %v286, 7
  %v288 = vsub.s32 1, %v287
  %v289 = vrot.slane %v280, %v288
  %v290 = vlaneseq
  %v291 = vshrl.u32 %v290, 7
  %v292 = vsub.s32 2, %v291
  %v293 = vrot.slane %v280, %v292
  %v294 = vlaneseq
  %v295 = vshrl.u32 %v294, 7
  %v296 = vsub.s32 3, %v295
  %v297 = vrot.slane %v280, %v296
  %vm302 = vcmask 523264
  %v304 = vsel %vm302, %v272, 0
  %v307 = vsel %vm302, %v273, 0
  %v310 = vsel %vm302, %v274, 0
  %v313 = vsel %vm302, %v275, 0
  %v316 = vsel %vm302, %v276, 0
  %v319 = vsel %vm302, %v277, 0
  %v322 = vsel %vm302, %v278, 0
  %v325 = vsel %vm302, %v279, 0
  %327 = vmatprep.subr.mxu0 %v33
  %328 = vmatpush1.msra.mxu0 %v32
  %329 = vmatprep.subr.mxu0 %v37
  %330 = vmatpush1.msra.mxu0 %v36
  %331 = vmatprep.subr.mxu0 %v41
  %332 = vmatpush1.msra.mxu0 %v40
  %333 = vmatprep.subr.mxu0 %v45
  %334 = vmatpush1.msra.mxu0 %v44
  %335 = vmatprep.subr.mxu0 %v49
  %336 = vmatpush1.msra.mxu0 %v48
  %337 = vmatprep.subr.mxu0 %v53
  %338 = vmatpush1.msra.mxu0 %v52
  %339 = vmatprep.subr.mxu0 %v57
  %340 = vmatpush1.msra.mxu0 %v56
  %341 = vmatprep.subr.mxu0 %v61
  %342 = vmatpush1.msra.mxu0 %v60
  %343 = vmatprep.subr.mxu0 0.0
  %344 = vmatpush1.msra.mxu0 0.0
  %345 = vmatprep.subr.mxu0 0.0
  %346 = vmatpush1.msra.mxu0 0.0
  %347 = vmatprep.subr.mxu0 0.0
  %348 = vmatpush1.msra.mxu0 0.0
  %349 = vmatprep.subr.mxu0 0.0
  %350 = vmatpush1.msra.mxu0 0.0
  %351 = vmatprep.subr.mxu0 0.0
  %352 = vmatpush1.msra.mxu0 0.0
  %353 = vmatprep.subr.mxu0 0.0
  %354 = vmatpush1.msra.mxu0 0.0
  %355 = vmatprep.subr.mxu0 0.0
  %356 = vmatpush1.msra.mxu0 0.0
  %357 = vmatprep.subr.mxu0 0.0
  %358 = vmatpush1.msra.mxu0 0.0
  %359 = vmatprep.subr.mxu0 0.0
  %360 = vmatpush1.msra.mxu0 0.0
  %361 = vmatprep.subr.mxu0 0.0
  %362 = vmatpush1.msra.mxu0 0.0
  %363 = vmatprep.subr.mxu0 0.0
  %364 = vmatpush1.msra.mxu0 0.0
  %365 = vmatprep.subr.mxu0 0.0
  %366 = vmatpush1.msra.mxu0 0.0
  %367 = vmatprep.subr.mxu0 0.0
  %368 = vmatpush1.msra.mxu0 0.0
  %369 = vmatprep.subr.mxu0 0.0
  %370 = vmatpush1.msra.mxu0 0.0
  %371 = vmatprep.subr.mxu0 0.0
  %372 = vmatpush1.msra.mxu0 0.0
  %373 = vmatprep.subr.mxu0 0.0
  %374 = vmatpush1.msra.mxu0 0.0
  %375 = vmatprep.subr.mxu0 0.0
  %376 = vmatpush1.msra.mxu0 0.0
  %377 = vmatprep.subr.mxu0 0.0
  %378 = vmatpush1.msra.mxu0 0.0
  %379 = vmatprep.subr.mxu0 0.0
  %380 = vmatpush1.msra.mxu0 0.0
  %381 = vmatprep.subr.mxu0 0.0
  %382 = vmatpush1.msra.mxu0 0.0
  %383 = vmatprep.subr.mxu0 0.0
  %384 = vmatpush1.msra.mxu0 0.0
  %385 = vmatprep.subr.mxu0 0.0
  %386 = vmatpush1.msra.mxu0 0.0
  %387 = vmatprep.subr.mxu0 0.0
  %388 = vmatpush1.msra.mxu0 0.0
  %389 = vmatprep.subr.mxu0 0.0
  %390 = vmatpush1.msra.mxu0 0.0
  %391 = vmatprep.mubr.f32.mxu0 0.0
  %392 = vmatmul.mubr.f32.gmra.mrb[0].mxu0 %v304
  %v393 = vpop.f32.mrb[0].mxu0
  %v394 = vadd.f32 %v285, %v393
  %v395 = vpop.f32.mrb[0].mxu0
  %v396 = vadd.f32 %v289, %v395
  %397 = vmatprep.mubr.f32.mxu0 0.0
  %398 = vmatmul.mubr.f32.gmra.mrb[0].mxu0 %v307
  %v399 = vpop.f32.mrb[0].mxu0
  %v400 = vadd.f32 %v285, %v399
  %v401 = vpop.f32.mrb[0].mxu0
  %v402 = vadd.f32 %v289, %v401
  %403 = vmatprep.mubr.f32.mxu0 0.0
  %404 = vmatmul.mubr.f32.gmra.mrb[0].mxu0 %v310
  %v405 = vpop.f32.mrb[0].mxu0
  %v406 = vadd.f32 %v285, %v405
  %v407 = vpop.f32.mrb[0].mxu0
  %v408 = vadd.f32 %v289, %v407
  %409 = vmatprep.mubr.f32.mxu0 0.0
  %410 = vmatmul.mubr.f32.gmra.mrb[0].mxu0 %v313
  %v411 = vpop.f32.mrb[0].mxu0
  %v412 = vadd.f32 %v285, %v411
  %v413 = vpop.f32.mrb[0].mxu0
  %v414 = vadd.f32 %v289, %v413
  %415 = vmatprep.mubr.f32.mxu0 0.0
  %416 = vmatmul.mubr.f32.gmra.mrb[0].mxu0 %v316
  %v417 = vpop.f32.mrb[0].mxu0
  %v418 = vadd.f32 %v285, %v417
  %v419 = vpop.f32.mrb[0].mxu0
  %v420 = vadd.f32 %v289, %v419
  %421 = vmatprep.mubr.f32.mxu0 0.0
  %422 = vmatmul.mubr.f32.gmra.mrb[0].mxu0 %v319
  %v423 = vpop.f32.mrb[0].mxu0
  %v424 = vadd.f32 %v285, %v423
  %v425 = vpop.f32.mrb[0].mxu0
  %v426 = vadd.f32 %v289, %v425
  %427 = vmatprep.mubr.f32.mxu0 0.0
  %428 = vmatmul.mubr.f32.gmra.mrb[0].mxu0 %v322
  %v429 = vpop.f32.mrb[0].mxu0
  %v430 = vadd.f32 %v285, %v429
  %v431 = vpop.f32.mrb[0].mxu0
  %v432 = vadd.f32 %v289, %v431
  %433 = vmatprep.mubr.f32.mxu0 0.0
  %434 = vmatmul.mubr.f32.gmra.mrb[0].mxu0 %v325
  %v435 = vpop.f32.mrb[0].mxu0
  %v436 = vadd.f32 %v285, %v435
  %v437 = vpop.f32.mrb[0].mxu0
  %v438 = vadd.f32 %v289, %v437
  %439 = vdwg.mxu0
  %440 = vmatprep.subr.mxu0 %v35
  %441 = vmatpush1.msra.mxu0 %v34
  %442 = vmatprep.subr.mxu0 %v39
  %443 = vmatpush1.msra.mxu0 %v38
  %444 = vmatprep.subr.mxu0 %v43
  %445 = vmatpush1.msra.mxu0 %v42
  %446 = vmatprep.subr.mxu0 %v47
  %447 = vmatpush1.msra.mxu0 %v46
  %448 = vmatprep.subr.mxu0 %v51
  %449 = vmatpush1.msra.mxu0 %v50
  %450 = vmatprep.subr.mxu0 %v55
  %451 = vmatpush1.msra.mxu0 %v54
  %452 = vmatprep.subr.mxu0 %v59
  %453 = vmatpush1.msra.mxu0 %v58
  %454 = vmatprep.subr.mxu0 %v63
  %455 = vmatpush1.msra.mxu0 %v62
  %456 = vmatprep.subr.mxu0 0.0
  %457 = vmatpush1.msra.mxu0 0.0
  %458 = vmatprep.subr.mxu0 0.0
  %459 = vmatpush1.msra.mxu0 0.0
  %460 = vmatprep.subr.mxu0 0.0
  %461 = vmatpush1.msra.mxu0 0.0
  %462 = vmatprep.subr.mxu0 0.0
  %463 = vmatpush1.msra.mxu0 0.0
  %464 = vmatprep.subr.mxu0 0.0
  %465 = vmatpush1.msra.mxu0 0.0
  %466 = vmatprep.subr.mxu0 0.0
  %467 = vmatpush1.msra.mxu0 0.0
  %468 = vmatprep.subr.mxu0 0.0
  %469 = vmatpush1.msra.mxu0 0.0
  %470 = vmatprep.subr.mxu0 0.0
  %471 = vmatpush1.msra.mxu0 0.0
  %472 = vmatprep.subr.mxu0 0.0
  %473 = vmatpush1.msra.mxu0 0.0
  %474 = vmatprep.subr.mxu0 0.0
  %475 = vmatpush1.msra.mxu0 0.0
  %476 = vmatprep.subr.mxu0 0.0
  %477 = vmatpush1.msra.mxu0 0.0
  %478 = vmatprep.subr.mxu0 0.0
  %479 = vmatpush1.msra.mxu0 0.0
  %480 = vmatprep.subr.mxu0 0.0
  %481 = vmatpush1.msra.mxu0 0.0
  %482 = vmatprep.subr.mxu0 0.0
  %483 = vmatpush1.msra.mxu0 0.0
  %484 = vmatprep.subr.mxu0 0.0
  %485 = vmatpush1.msra.mxu0 0.0
  %486 = vmatprep.subr.mxu0 0.0
  %487 = vmatpush1.msra.mxu0 0.0
  %488 = vmatprep.subr.mxu0 0.0
  %489 = vmatpush1.msra.mxu0 0.0
  %490 = vmatprep.subr.mxu0 0.0
  %491 = vmatpush1.msra.mxu0 0.0
  %492 = vmatprep.subr.mxu0 0.0
  %493 = vmatpush1.msra.mxu0 0.0
  %494 = vmatprep.subr.mxu0 0.0
  %495 = vmatpush1.msra.mxu0 0.0
  %496 = vmatprep.subr.mxu0 0.0
  %497 = vmatpush1.msra.mxu0 0.0
  %498 = vmatprep.subr.mxu0 0.0
  %499 = vmatpush1.msra.mxu0 0.0
  %500 = vmatprep.subr.mxu0 0.0
  %501 = vmatpush1.msra.mxu0 0.0
  %502 = vmatprep.subr.mxu0 0.0
  %503 = vmatpush1.msra.mxu0 0.0
  %504 = vmatprep.mubr.f32.mxu0 0.0
  %505 = vmatmul.mubr.f32.gmra.mrb[0].mxu0 %v304
  %v506 = vpop.f32.mrb[0].mxu0
  %v507 = vadd.f32 %v293, %v506
  %v508 = vpop.f32.mrb[0].mxu0
  %v509 = vadd.f32 %v297, %v508
  %510 = vmatprep.mubr.f32.mxu0 0.0
  %511 = vmatmul.mubr.f32.gmra.mrb[0].mxu0 %v307
  %v512 = vpop.f32.mrb[0].mxu0
  %v513 = vadd.f32 %v293, %v512
  %v514 = vpop.f32.mrb[0].mxu0
  %v515 = vadd.f32 %v297, %v514
  %516 = vmatprep.mubr.f32.mxu0 0.0
  %517 = vmatmul.mubr.f32.gmra.mrb[0].mxu0 %v310
  %v518 = vpop.f32.mrb[0].mxu0
  %v519 = vadd.f32 %v293, %v518
  %v520 = vpop.f32.mrb[0].mxu0
  %v521 = vadd.f32 %v297, %v520
  %522 = vmatprep.mubr.f32.mxu0 0.0
  %523 = vmatmul.mubr.f32.gmra.mrb[0].mxu0 %v313
  %v524 = vpop.f32.mrb[0].mxu0
  %v525 = vadd.f32 %v293, %v524
  %v526 = vpop.f32.mrb[0].mxu0
  %v527 = vadd.f32 %v297, %v526
  %528 = vmatprep.mubr.f32.mxu0 0.0
  %529 = vmatmul.mubr.f32.gmra.mrb[0].mxu0 %v316
  %v530 = vpop.f32.mrb[0].mxu0
  %v531 = vadd.f32 %v293, %v530
  %v532 = vpop.f32.mrb[0].mxu0
  %v533 = vadd.f32 %v297, %v532
  %534 = vmatprep.mubr.f32.mxu0 0.0
  %535 = vmatmul.mubr.f32.gmra.mrb[0].mxu0 %v319
  %v536 = vpop.f32.mrb[0].mxu0
  %v537 = vadd.f32 %v293, %v536
  %v538 = vpop.f32.mrb[0].mxu0
  %v539 = vadd.f32 %v297, %v538
  %540 = vmatprep.mubr.f32.mxu0 0.0
  %541 = vmatmul.mubr.f32.gmra.mrb[0].mxu0 %v322
  %v542 = vpop.f32.mrb[0].mxu0
  %v543 = vadd.f32 %v293, %v542
  %v544 = vpop.f32.mrb[0].mxu0
  %v545 = vadd.f32 %v297, %v544
  %546 = vmatprep.mubr.f32.mxu0 0.0
  %547 = vmatmul.mubr.f32.gmra.mrb[0].mxu0 %v325
  %v548 = vpop.f32.mrb[0].mxu0
  %v549 = vadd.f32 %v293, %v548
  %v550 = vpop.f32.mrb[0].mxu0
  %v551 = vadd.f32 %v297, %v550
  %552 = vdwg.mxu0
  %v553 = vld [vmem:[%s6] sm:$0xf]
  %v555 = vlaneseq
  %v556 = vshrl.u32 %v555, 7
  %v557 = vsub.s32 0, %v556
  %v558 = vrot.slane %v553, %v557
  %v559 = vlaneseq
  %v560 = vshrl.u32 %v559, 7
  %v561 = vsub.s32 1, %v560
  %v562 = vrot.slane %v553, %v561
  %v563 = vlaneseq
  %v564 = vshrl.u32 %v563, 7
  %v565 = vsub.s32 2, %v564
  %v566 = vrot.slane %v553, %v565
  %v567 = vlaneseq
  %v568 = vshrl.u32 %v567, 7
  %v569 = vsub.s32 3, %v568
  %v570 = vrot.slane %v553, %v569
  %575 = vmatprep.subr.mxu0 %v193
  %576 = vmatpush1.msra.mxu0 %v192
  %577 = vmatprep.subr.mxu0 %v197
  %578 = vmatpush1.msra.mxu0 %v196
  %579 = vmatprep.subr.mxu0 %v201
  %580 = vmatpush1.msra.mxu0 %v200
  %581 = vmatprep.subr.mxu0 %v205
  %582 = vmatpush1.msra.mxu0 %v204
  %583 = vmatprep.subr.mxu0 %v209
  %584 = vmatpush1.msra.mxu0 %v208
  %585 = vmatprep.subr.mxu0 %v213
  %586 = vmatpush1.msra.mxu0 %v212
  %587 = vmatprep.subr.mxu0 %v217
  %588 = vmatpush1.msra.mxu0 %v216
  %589 = vmatprep.subr.mxu0 %v221
  %590 = vmatpush1.msra.mxu0 %v220
  %591 = vmatprep.subr.mxu0 %v225
  %592 = vmatpush1.msra.mxu0 %v224
  %593 = vmatprep.subr.mxu0 %v229
  %594 = vmatpush1.msra.mxu0 %v228
  %595 = vmatprep.subr.mxu0 %v233
  %596 = vmatpush1.msra.mxu0 %v232
  %597 = vmatprep.subr.mxu0 %v237
  %598 = vmatpush1.msra.mxu0 %v236
  %599 = vmatprep.subr.mxu0 %v241
  %600 = vmatpush1.msra.mxu0 %v240
  %601 = vmatprep.subr.mxu0 %v245
  %602 = vmatpush1.msra.mxu0 %v244
  %603 = vmatprep.subr.mxu0 %v249
  %604 = vmatpush1.msra.mxu0 %v248
  %605 = vmatprep.subr.mxu0 %v253
  %606 = vmatpush1.msra.mxu0 %v252
  %607 = vmatprep.subr.mxu0 0.0
  %608 = vmatpush1.msra.mxu0 0.0
  %609 = vmatprep.subr.mxu0 0.0
  %610 = vmatpush1.msra.mxu0 0.0
  %611 = vmatprep.subr.mxu0 0.0
  %612 = vmatpush1.msra.mxu0 0.0
  %613 = vmatprep.subr.mxu0 0.0
  %614 = vmatpush1.msra.mxu0 0.0
  %615 = vmatprep.subr.mxu0 0.0
  %616 = vmatpush1.msra.mxu0 0.0
  %617 = vmatprep.subr.mxu0 0.0
  %618 = vmatpush1.msra.mxu0 0.0
  %619 = vmatprep.subr.mxu0 0.0
  %620 = vmatpush1.msra.mxu0 0.0
  %621 = vmatprep.subr.mxu0 0.0
  %622 = vmatpush1.msra.mxu0 0.0
  %623 = vmatprep.subr.mxu0 0.0
  %624 = vmatpush1.msra.mxu0 0.0
  %625 = vmatprep.subr.mxu0 0.0
  %626 = vmatpush1.msra.mxu0 0.0
  %627 = vmatprep.subr.mxu0 0.0
  %628 = vmatpush1.msra.mxu0 0.0
  %629 = vmatprep.subr.mxu0 0.0
  %630 = vmatpush1.msra.mxu0 0.0
  %631 = vmatprep.subr.mxu0 0.0
  %632 = vmatpush1.msra.mxu0 0.0
  %633 = vmatprep.subr.mxu0 0.0
  %634 = vmatpush1.msra.mxu0 0.0
  %635 = vmatprep.subr.mxu0 0.0
  %636 = vmatpush1.msra.mxu0 0.0
  %637 = vmatprep.subr.mxu0 0.0
  %638 = vmatpush1.msra.mxu0 0.0
  %639 = vmatprep.mubr.f32.mxu0 0.0
  %640 = vmatmul.mubr.f32.gmra.mrb[0].mxu0 0.0
  %v641 = vpop.f32.mrb[0].mxu0
  %v642 = vadd.f32 0.0, %v641
  %v643 = vpop.f32.mrb[0].mxu0
  %v644 = vadd.f32 0.0, %v643
  %645 = vdwg.mxu0
  %646 = vmatprep.subr.mxu0 %v195
  %647 = vmatpush1.msra.mxu0 %v194
  %648 = vmatprep.subr.mxu0 %v199
  %649 = vmatpush1.msra.mxu0 %v198
  %650 = vmatprep.subr.mxu0 %v203
  %651 = vmatpush1.msra.mxu0 %v202
  %652 = vmatprep.subr.mxu0 %v207
  %653 = vmatpush1.msra.mxu0 %v206
  %654 = vmatprep.subr.mxu0 %v211
  %655 = vmatpush1.msra.mxu0 %v210
  %656 = vmatprep.subr.mxu0 %v215
  %657 = vmatpush1.msra.mxu0 %v214
  %658 = vmatprep.subr.mxu0 %v219
  %659 = vmatpush1.msra.mxu0 %v218
  %660 = vmatprep.subr.mxu0 %v223
  %661 = vmatpush1.msra.mxu0 %v222
  %662 = vmatprep.subr.mxu0 %v227
  %663 = vmatpush1.msra.mxu0 %v226
  %664 = vmatprep.subr.mxu0 %v231
  %665 = vmatpush1.msra.mxu0 %v230
  %666 = vmatprep.subr.mxu0 %v235
  %667 = vmatpush1.msra.mxu0 %v234
  %668 = vmatprep.subr.mxu0 %v239
  %669 = vmatpush1.msra.mxu0 %v238
  %670 = vmatprep.subr.mxu0 %v243
  %671 = vmatpush1.msra.mxu0 %v242
  %672 = vmatprep.subr.mxu0 %v247
  %673 = vmatpush1.msra.mxu0 %v246
  %674 = vmatprep.subr.mxu0 %v251
  %675 = vmatpush1.msra.mxu0 %v250
  %676 = vmatprep.subr.mxu0 %v255
  %677 = vmatpush1.msra.mxu0 %v254
  %678 = vmatprep.subr.mxu0 0.0
  %679 = vmatpush1.msra.mxu0 0.0
  %680 = vmatprep.subr.mxu0 0.0
  %681 = vmatpush1.msra.mxu0 0.0
  %682 = vmatprep.subr.mxu0 0.0
  %683 = vmatpush1.msra.mxu0 0.0
  %684 = vmatprep.subr.mxu0 0.0
  %685 = vmatpush1.msra.mxu0 0.0
  %686 = vmatprep.subr.mxu0 0.0
  %687 = vmatpush1.msra.mxu0 0.0
  %688 = vmatprep.subr.mxu0 0.0
  %689 = vmatpush1.msra.mxu0 0.0
  %690 = vmatprep.subr.mxu0 0.0
  %691 = vmatpush1.msra.mxu0 0.0
  %692 = vmatprep.subr.mxu0 0.0
  %693 = vmatpush1.msra.mxu0 0.0
  %694 = vmatprep.subr.mxu0 0.0
  %695 = vmatpush1.msra.mxu0 0.0
  %696 = vmatprep.subr.mxu0 0.0
  %697 = vmatpush1.msra.mxu0 0.0
  %698 = vmatprep.subr.mxu0 0.0
  %699 = vmatpush1.msra.mxu0 0.0
  %700 = vmatprep.subr.mxu0 0.0
  %701 = vmatpush1.msra.mxu0 0.0
  %702 = vmatprep.subr.mxu0 0.0
  %703 = vmatpush1.msra.mxu0 0.0
  %704 = vmatprep.subr.mxu0 0.0
  %705 = vmatpush1.msra.mxu0 0.0
  %706 = vmatprep.subr.mxu0 0.0
  %707 = vmatpush1.msra.mxu0 0.0
  %708 = vmatprep.subr.mxu0 0.0
  %709 = vmatpush1.msra.mxu0 0.0
  %710 = vmatprep.mubr.f32.mxu0 0.0
  %711 = vmatmul.mubr.f32.gmra.mrb[0].mxu0 0.0
  %v712 = vpop.f32.mrb[0].mxu0
  %v713 = vadd.f32 0.0, %v712
  %v714 = vpop.f32.mrb[0].mxu0
  %v715 = vadd.f32 0.0, %v714
  %716 = vdwg.mxu0
  %717 = vmatprep.subr.mxu0 %v65
  %718 = vmatpush1.msra.mxu0 %v64
  %719 = vmatprep.subr.mxu0 %v69
  %720 = vmatpush1.msra.mxu0 %v68
  %721 = vmatprep.subr.mxu0 %v73
  %722 = vmatpush1.msra.mxu0 %v72
  %723 = vmatprep.subr.mxu0 %v77
  %724 = vmatpush1.msra.mxu0 %v76
  %725 = vmatprep.subr.mxu0 %v81
  %726 = vmatpush1.msra.mxu0 %v80
  %727 = vmatprep.subr.mxu0 %v85
  %728 = vmatpush1.msra.mxu0 %v84
  %729 = vmatprep.subr.mxu0 %v89
  %730 = vmatpush1.msra.mxu0 %v88
  %731 = vmatprep.subr.mxu0 %v93
  %732 = vmatpush1.msra.mxu0 %v92
  %733 = vmatprep.subr.mxu0 %v97
  %734 = vmatpush1.msra.mxu0 %v96
  %735 = vmatprep.subr.mxu0 %v101
  %736 = vmatpush1.msra.mxu0 %v100
  %737 = vmatprep.subr.mxu0 %v105
  %738 = vmatpush1.msra.mxu0 %v104
  %739 = vmatprep.subr.mxu0 %v109
  %740 = vmatpush1.msra.mxu0 %v108
  %741 = vmatprep.subr.mxu0 %v113
  %742 = vmatpush1.msra.mxu0 %v112
  %743 = vmatprep.subr.mxu0 %v117
  %744 = vmatpush1.msra.mxu0 %v116
  %745 = vmatprep.subr.mxu0 %v121
  %746 = vmatpush1.msra.mxu0 %v120
  %747 = vmatprep.subr.mxu0 %v125
  %748 = vmatpush1.msra.mxu0 %v124
  %749 = vmatprep.subr.mxu0 0.0
  %750 = vmatpush1.msra.mxu0 0.0
  %751 = vmatprep.subr.mxu0 0.0
  %752 = vmatpush1.msra.mxu0 0.0
  %753 = vmatprep.subr.mxu0 0.0
  %754 = vmatpush1.msra.mxu0 0.0
  %755 = vmatprep.subr.mxu0 0.0
  %756 = vmatpush1.msra.mxu0 0.0
  %757 = vmatprep.subr.mxu0 0.0
  %758 = vmatpush1.msra.mxu0 0.0
  %759 = vmatprep.subr.mxu0 0.0
  %760 = vmatpush1.msra.mxu0 0.0
  %761 = vmatprep.subr.mxu0 0.0
  %762 = vmatpush1.msra.mxu0 0.0
  %763 = vmatprep.subr.mxu0 0.0
  %764 = vmatpush1.msra.mxu0 0.0
  %765 = vmatprep.subr.mxu0 0.0
  %766 = vmatpush1.msra.mxu0 0.0
  %767 = vmatprep.subr.mxu0 0.0
  %768 = vmatpush1.msra.mxu0 0.0
  %769 = vmatprep.subr.mxu0 0.0
  %770 = vmatpush1.msra.mxu0 0.0
  %771 = vmatprep.subr.mxu0 0.0
  %772 = vmatpush1.msra.mxu0 0.0
  %773 = vmatprep.subr.mxu0 0.0
  %774 = vmatpush1.msra.mxu0 0.0
  %775 = vmatprep.subr.mxu0 0.0
  %776 = vmatpush1.msra.mxu0 0.0
  %777 = vmatprep.subr.mxu0 0.0
  %778 = vmatpush1.msra.mxu0 0.0
  %779 = vmatprep.subr.mxu0 0.0
  %780 = vmatpush1.msra.mxu0 0.0
  %781 = vmatprep.mubr.f32.mxu0 0.0
  %782 = vmatmul.mubr.f32.gmra.mrb[0].mxu0 0.0
  %v783 = vpop.f32.mrb[0].mxu0
  %v784 = vadd.f32 0.0, %v783
  %v785 = vpop.f32.mrb[0].mxu0
  %v786 = vadd.f32 0.0, %v785
  %787 = vdwg.mxu0
  %788 = vmatprep.subr.mxu0 %v67
  %789 = vmatpush1.msra.mxu0 %v66
  %790 = vmatprep.subr.mxu0 %v71
  %791 = vmatpush1.msra.mxu0 %v70
  %792 = vmatprep.subr.mxu0 %v75
  %793 = vmatpush1.msra.mxu0 %v74
  %794 = vmatprep.subr.mxu0 %v79
  %795 = vmatpush1.msra.mxu0 %v78
  %796 = vmatprep.subr.mxu0 %v83
  %797 = vmatpush1.msra.mxu0 %v82
  %798 = vmatprep.subr.mxu0 %v87
  %799 = vmatpush1.msra.mxu0 %v86
  %800 = vmatprep.subr.mxu0 %v91
  %801 = vmatpush1.msra.mxu0 %v90
  %802 = vmatprep.subr.mxu0 %v95
  %803 = vmatpush1.msra.mxu0 %v94
  %804 = vmatprep.subr.mxu0 %v99
  %805 = vmatpush1.msra.mxu0 %v98
  %806 = vmatprep.subr.mxu0 %v103
  %807 = vmatpush1.msra.mxu0 %v102
  %808 = vmatprep.subr.mxu0 %v107
  %809 = vmatpush1.msra.mxu0 %v106
  %810 = vmatprep.subr.mxu0 %v111
  %811 = vmatpush1.msra.mxu0 %v110
  %812 = vmatprep.subr.mxu0 %v115
  %813 = vmatpush1.msra.mxu0 %v114
  %814 = vmatprep.subr.mxu0 %v119
  %815 = vmatpush1.msra.mxu0 %v118
  %816 = vmatprep.subr.mxu0 %v123
  %817 = vmatpush1.msra.mxu0 %v122
  %818 = vmatprep.subr.mxu0 %v127
  %819 = vmatpush1.msra.mxu0 %v126
  %820 = vmatprep.subr.mxu0 0.0
  %821 = vmatpush1.msra.mxu0 0.0
  %822 = vmatprep.subr.mxu0 0.0
  %823 = vmatpush1.msra.mxu0 0.0
  %824 = vmatprep.subr.mxu0 0.0
  %825 = vmatpush1.msra.mxu0 0.0
  %826 = vmatprep.subr.mxu0 0.0
  %827 = vmatpush1.msra.mxu0 0.0
  %828 = vmatprep.subr.mxu0 0.0
  %829 = vmatpush1.msra.mxu0 0.0
  %830 = vmatprep.subr.mxu0 0.0
  %831 = vmatpush1.msra.mxu0 0.0
  %832 = vmatprep.subr.mxu0 0.0
  %833 = vmatpush1.msra.mxu0 0.0
  %834 = vmatprep.subr.mxu0 0.0
  %835 = vmatpush1.msra.mxu0 0.0
  %836 = vmatprep.subr.mxu0 0.0
  %837 = vmatpush1.msra.mxu0 0.0
  %838 = vmatprep.subr.mxu0 0.0
  %839 = vmatpush1.msra.mxu0 0.0
  %840 = vmatprep.subr.mxu0 0.0
  %841 = vmatpush1.msra.mxu0 0.0
  %842 = vmatprep.subr.mxu0 0.0
  %843 = vmatpush1.msra.mxu0 0.0
  %844 = vmatprep.subr.mxu0 0.0
  %845 = vmatpush1.msra.mxu0 0.0
  %846 = vmatprep.subr.mxu0 0.0
  %847 = vmatpush1.msra.mxu0 0.0
  %848 = vmatprep.subr.mxu0 0.0
  %849 = vmatpush1.msra.mxu0 0.0
  %850 = vmatprep.subr.mxu0 0.0
  %851 = vmatpush1.msra.mxu0 0.0
  %852 = vmatprep.mubr.f32.mxu0 0.0
  %853 = vmatmul.mubr.f32.gmra.mrb[0].mxu0 0.0
  %v854 = vpop.f32.mrb[0].mxu0
  %v855 = vadd.f32 0.0, %v854
  %v856 = vpop.f32.mrb[0].mxu0
  %v857 = vadd.f32 0.0, %v856
  %858 = vdwg.mxu0
  %v859 = vadd.f32 %v394, %v784
  %v860 = vadd.f32 %v396, %v786
  %v861 = vadd.f32 %v507, %v855
  %v862 = vadd.f32 %v509, %v857
  %v863 = vxor.u32 %v859, 2147483648
  %v864 = vmul.f32 %v863, 1.442695
  %v865 = vpow.pop %v864
  %v866 = vadd.f32 %v865, 1.0
  %v867 = vrcp.pop %v866
  %v868 = vmul.f32 1.0, %v867
  %v869 = vxor.u32 %v860, 2147483648
  %v870 = vmul.f32 %v869, 1.442695
  %v871 = vpow.pop %v870
  %v872 = vadd.f32 %v871, 1.0
  %v873 = vrcp.pop %v872
  %v874 = vmul.f32 1.0, %v873
  %v875 = vtanh.pop %v861
  %v876 = vxor.u32 %v862, 2147483648
  %v877 = vmul.f32 %v876, 1.442695
  %v878 = vpow.pop %v877
  %v879 = vadd.f32 %v878, 1.0
  %v880 = vrcp.pop %v879
  %v881 = vmul.f32 1.0, %v880
  %v882 = vmul.f32 %v874, 0.0
  %v883 = vmul.f32 %v868, %v875
  %v884 = vadd.f32 %v882, %v883
  %v885 = vtanh.pop %v884
  %v886 = vmul.f32 %v881, %v885
  %887 = vmatprep.subr.mxu0 %v129
  %888 = vmatpush1.msra.mxu0 %v128
  %889 = vmatprep.subr.mxu0 %v133
  %890 = vmatpush1.msra.mxu0 %v132
  %891 = vmatprep.subr.mxu0 %v137
  %892 = vmatpush1.msra.mxu0 %v136
  %893 = vmatprep.subr.mxu0 %v141
  %894 = vmatpush1.msra.mxu0 %v140
  %895 = vmatprep.subr.mxu0 %v145
  %896 = vmatpush1.msra.mxu0 %v144
  %897 = vmatprep.subr.mxu0 %v149
  %898 = vmatpush1.msra.mxu0 %v148
  %899 = vmatprep.subr.mxu0 %v153
  %900 = vmatpush1.msra.mxu0 %v152
  %901 = vmatprep.subr.mxu0 %v157
  %902 = vmatpush1.msra.mxu0 %v156
  %903 = vmatprep.subr.mxu0 %v161
  %904 = vmatpush1.msra.mxu0 %v160
  %905 = vmatprep.subr.mxu0 %v165
  %906 = vmatpush1.msra.mxu0 %v164
  %907 = vmatprep.subr.mxu0 %v169
  %908 = vmatpush1.msra.mxu0 %v168
  %909 = vmatprep.subr.mxu0 %v173
  %910 = vmatpush1.msra.mxu0 %v172
  %911 = vmatprep.subr.mxu0 %v177
  %912 = vmatpush1.msra.mxu0 %v176
  %913 = vmatprep.subr.mxu0 %v181
  %914 = vmatpush1.msra.mxu0 %v180
  %915 = vmatprep.subr.mxu0 %v185
  %916 = vmatpush1.msra.mxu0 %v184
  %917 = vmatprep.subr.mxu0 %v189
  %918 = vmatpush1.msra.mxu0 %v188
  %919 = vmatprep.subr.mxu0 0.0
  %920 = vmatpush1.msra.mxu0 0.0
  %921 = vmatprep.subr.mxu0 0.0
  %922 = vmatpush1.msra.mxu0 0.0
  %923 = vmatprep.subr.mxu0 0.0
  %924 = vmatpush1.msra.mxu0 0.0
  %925 = vmatprep.subr.mxu0 0.0
  %926 = vmatpush1.msra.mxu0 0.0
  %927 = vmatprep.subr.mxu0 0.0
  %928 = vmatpush1.msra.mxu0 0.0
  %929 = vmatprep.subr.mxu0 0.0
  %930 = vmatpush1.msra.mxu0 0.0
  %931 = vmatprep.subr.mxu0 0.0
  %932 = vmatpush1.msra.mxu0 0.0
  %933 = vmatprep.subr.mxu0 0.0
  %934 = vmatpush1.msra.mxu0 0.0
  %935 = vmatprep.subr.mxu0 0.0
  %936 = vmatpush1.msra.mxu0 0.0
  %937 = vmatprep.subr.mxu0 0.0
  %938 = vmatpush1.msra.mxu0 0.0
  %939 = vmatprep.subr.mxu0 0.0
  %940 = vmatpush1.msra.mxu0 0.0
  %941 = vmatprep.subr.mxu0 0.0
  %942 = vmatpush1.msra.mxu0 0.0
  %943 = vmatprep.subr.mxu0 0.0
  %944 = vmatpush1.msra.mxu0 0.0
  %945 = vmatprep.subr.mxu0 0.0
  %946 = vmatpush1.msra.mxu0 0.0
  %947 = vmatprep.subr.mxu0 0.0
  %948 = vmatpush1.msra.mxu0 0.0
  %949 = vmatprep.subr.mxu0 0.0
  %950 = vmatpush1.msra.mxu0 0.0
  %951 = vmatprep.mubr.f32.mxu0 0.0
  %952 = vmatmul.mubr.f32.gmra.mrb[0].mxu0 %v886
  %v953 = vpop.f32.mrb[0].mxu0
  %v954 = vadd.f32 %v642, %v953
  %v955 = vpop.f32.mrb[0].mxu0
  %v956 = vadd.f32 %v644, %v955
  %957 = vdwg.mxu0
  %958 = vmatprep.subr.mxu0 %v131
  %959 = vmatpush1.msra.mxu0 %v130
  %960 = vmatprep.subr.mxu0 %v135
  %961 = vmatpush1.msra.mxu0 %v134
  %962 = vmatprep.subr.mxu0 %v139
  %963 = vmatpush1.msra.mxu0 %v138
  %964 = vmatprep.subr.mxu0 %v143
  %965 = vmatpush1.msra.mxu0 %v142
  %966 = vmatprep.subr.mxu0 %v147
  %967 = vmatpush1.msra.mxu0 %v146
  %968 = vmatprep.subr.mxu0 %v151
  %969 = vmatpush1.msra.mxu0 %v150
  %970 = vmatprep.subr.mxu0 %v155
  %971 = vmatpush1.msra.mxu0 %v154
  %972 = vmatprep.subr.mxu0 %v159
  %973 = vmatpush1.msra.mxu0 %v158
  %974 = vmatprep.subr.mxu0 %v163
  %975 = vmatpush1.msra.mxu0 %v162
  %976 = vmatprep.subr.mxu0 %v167
  %977 = vmatpush1.msra.mxu0 %v166
  %978 = vmatprep.subr.mxu0 %v171
  %979 = vmatpush1.msra.mxu0 %v170
  %980 = vmatprep.subr.mxu0 %v175
  %981 = vmatpush1.msra.mxu0 %v174
  %982 = vmatprep.subr.mxu0 %v179
  %983 = vmatpush1.msra.mxu0 %v178
  %984 = vmatprep.subr.mxu0 %v183
  %985 = vmatpush1.msra.mxu0 %v182
  %986 = vmatprep.subr.mxu0 %v187
  %987 = vmatpush1.msra.mxu0 %v186
  %988 = vmatprep.subr.mxu0 %v191
  %989 = vmatpush1.msra.mxu0 %v190
  %990 = vmatprep.subr.mxu0 0.0
  %991 = vmatpush1.msra.mxu0 0.0
  %992 = vmatprep.subr.mxu0 0.0
  %993 = vmatpush1.msra.mxu0 0.0
  %994 = vmatprep.subr.mxu0 0.0
  %995 = vmatpush1.msra.mxu0 0.0
  %996 = vmatprep.subr.mxu0 0.0
  %997 = vmatpush1.msra.mxu0 0.0
  %998 = vmatprep.subr.mxu0 0.0
  %999 = vmatpush1.msra.mxu0 0.0
  %1000 = vmatprep.subr.mxu0 0.0
  %1001 = vmatpush1.msra.mxu0 0.0
  %1002 = vmatprep.subr.mxu0 0.0
  %1003 = vmatpush1.msra.mxu0 0.0
  %1004 = vmatprep.subr.mxu0 0.0
  %1005 = vmatpush1.msra.mxu0 0.0
  %1006 = vmatprep.subr.mxu0 0.0
  %1007 = vmatpush1.msra.mxu0 0.0
  %1008 = vmatprep.subr.mxu0 0.0
  %1009 = vmatpush1.msra.mxu0 0.0
  %1010 = vmatprep.subr.mxu0 0.0
  %1011 = vmatpush1.msra.mxu0 0.0
  %1012 = vmatprep.subr.mxu0 0.0
  %1013 = vmatpush1.msra.mxu0 0.0
  %1014 = vmatprep.subr.mxu0 0.0
  %1015 = vmatpush1.msra.mxu0 0.0
  %1016 = vmatprep.subr.mxu0 0.0
  %1017 = vmatpush1.msra.mxu0 0.0
  %1018 = vmatprep.subr.mxu0 0.0
  %1019 = vmatpush1.msra.mxu0 0.0
  %1020 = vmatprep.subr.mxu0 0.0
  %1021 = vmatpush1.msra.mxu0 0.0
  %1022 = vmatprep.mubr.f32.mxu0 0.0
  %1023 = vmatmul.mubr.f32.gmra.mrb[0].mxu0 %v886
  %v1024 = vpop.f32.mrb[0].mxu0
  %v1025 = vadd.f32 %v713, %v1024
  %v1026 = vpop.f32.mrb[0].mxu0
  %v1027 = vadd.f32 %v715, %v1026
  %1028 = vdwg.mxu0
  %v1029 = vadd.f32 %v954, %v558
  %v1030 = vadd.f32 %v956, %v562
  %v1031 = vadd.f32 %v1025, %v566
  %v1032 = vadd.f32 %v1027, %v570
  %v1033 = vxor.u32 %v1029, 2147483648
  %v1034 = vmul.f32 %v1033, 1.442695
  %v1035 = vpow.pop %v1034
  %v1036 = vadd.f32 %v1035, 1.0
  %v1037 = vrcp.pop %v1036
  %v1038 = vmul.f32 1.0, %v1037
  %v1039 = vxor.u32 %v1030, 2147483648
  %v1040 = vmul.f32 %v1039, 1.442695
  %v1041 = vpow.pop %v1040
  %v1042 = vadd.f32 %v1041, 1.0
  %v1043 = vrcp.pop %v1042
  %v1044 = vmul.f32 1.0, %v1043
  %v1045 = vtanh.pop %v1031
  %v1046 = vxor.u32 %v1032, 2147483648
  %v1047 = vmul.f32 %v1046, 1.442695
  %v1048 = vpow.pop %v1047
  %v1049 = vadd.f32 %v1048, 1.0
  %v1050 = vrcp.pop %v1049
  %v1051 = vmul.f32 1.0, %v1050
  %v1052 = vmul.f32 %v1044, 0.0
  %v1053 = vmul.f32 %v1038, %v1045
  %v1054 = vadd.f32 %v1052, %v1053
  %v1055 = vtanh.pop %v1054
  %v1056 = vmul.f32 %v1051, %v1055
  %1057 = vmatprep.subr.mxu0 %v193
  %1058 = vmatpush1.msra.mxu0 %v192
  %1059 = vmatprep.subr.mxu0 %v197
  %1060 = vmatpush1.msra.mxu0 %v196
  %1061 = vmatprep.subr.mxu0 %v201
  %1062 = vmatpush1.msra.mxu0 %v200
  %1063 = vmatprep.subr.mxu0 %v205
  %1064 = vmatpush1.msra.mxu0 %v204
  %1065 = vmatprep.subr.mxu0 %v209
  %1066 = vmatpush1.msra.mxu0 %v208
  %1067 = vmatprep.subr.mxu0 %v213
  %1068 = vmatpush1.msra.mxu0 %v212
  %1069 = vmatprep.subr.mxu0 %v217
  %1070 = vmatpush1.msra.mxu0 %v216
  %1071 = vmatprep.subr.mxu0 %v221
  %1072 = vmatpush1.msra.mxu0 %v220
  %1073 = vmatprep.subr.mxu0 %v225
  %1074 = vmatpush1.msra.mxu0 %v224
  %1075 = vmatprep.subr.mxu0 %v229
  %1076 = vmatpush1.msra.mxu0 %v228
  %1077 = vmatprep.subr.mxu0 %v233
  %1078 = vmatpush1.msra.mxu0 %v232
  %1079 = vmatprep.subr.mxu0 %v237
  %1080 = vmatpush1.msra.mxu0 %v236
  %1081 = vmatprep.subr.mxu0 %v241
  %1082 = vmatpush1.msra.mxu0 %v240
  %1083 = vmatprep.subr.mxu0 %v245
  %1084 = vmatpush1.msra.mxu0 %v244
  %1085 = vmatprep.subr.mxu0 %v249
  %1086 = vmatpush1.msra.mxu0 %v248
  %1087 = vmatprep.subr.mxu0 %v253
  %1088 = vmatpush1.msra.mxu0 %v252
  %1089 = vmatprep.subr.mxu0 0.0
  %1090 = vmatpush1.msra.mxu0 0.0
  %1091 = vmatprep.subr.mxu0 0.0
  %1092 = vmatpush1.msra.mxu0 0.0
  %1093 = vmatprep.subr.mxu0 0.0
  %1094 = vmatpush1.msra.mxu0 0.0
  %1095 = vmatprep.subr.mxu0 0.0
  %1096 = vmatpush1.msra.mxu0 0.0
  %1097 = vmatprep.subr.mxu0 0.0
  %1098 = vmatpush1.msra.mxu0 0.0
  %1099 = vmatprep.subr.mxu0 0.0
  %1100 = vmatpush1.msra.mxu0 0.0
  %1101 = vmatprep.subr.mxu0 0.0
  %1102 = vmatpush1.msra.mxu0 0.0
  %1103 = vmatprep.subr.mxu0 0.0
  %1104 = vmatpush1.msra.mxu0 0.0
  %1105 = vmatprep.subr.mxu0 0.0
  %1106 = vmatpush1.msra.mxu0 0.0
  %1107 = vmatprep.subr.mxu0 0.0
  %1108 = vmatpush1.msra.mxu0 0.0
  %1109 = vmatprep.subr.mxu0 0.0
  %1110 = vmatpush1.msra.mxu0 0.0
  %1111 = vmatprep.subr.mxu0 0.0
  %1112 = vmatpush1.msra.mxu0 0.0
  %1113 = vmatprep.subr.mxu0 0.0
  %1114 = vmatpush1.msra.mxu0 0.0
  %1115 = vmatprep.subr.mxu0 0.0
  %1116 = vmatpush1.msra.mxu0 0.0
  %1117 = vmatprep.subr.mxu0 0.0
  %1118 = vmatpush1.msra.mxu0 0.0
  %1119 = vmatprep.subr.mxu0 0.0
  %1120 = vmatpush1.msra.mxu0 0.0
  %1121 = vmatprep.mubr.f32.mxu0 0.0
  %1122 = vmatmul.mubr.f32.gmra.mrb[0].mxu0 %v1056
  %v1123 = vpop.f32.mrb[0].mxu0
  %v1124 = vadd.f32 0.0, %v1123
  %v1125 = vpop.f32.mrb[0].mxu0
  %v1126 = vadd.f32 0.0, %v1125
  %1127 = vdwg.mxu0
  %1128 = vmatprep.subr.mxu0 %v195
  %1129 = vmatpush1.msra.mxu0 %v194
  %1130 = vmatprep.subr.mxu0 %v199
  %1131 = vmatpush1.msra.mxu0 %v198
  %1132 = vmatprep.subr.mxu0 %v203
  %1133 = vmatpush1.msra.mxu0 %v202
  %1134 = vmatprep.subr.mxu0 %v207
  %1135 = vmatpush1.msra.mxu0 %v206
  %1136 = vmatprep.subr.mxu0 %v211
  %1137 = vmatpush1.msra.mxu0 %v210
  %1138 = vmatprep.subr.mxu0 %v215
  %1139 = vmatpush1.msra.mxu0 %v214
  %1140 = vmatprep.subr.mxu0 %v219
  %1141 = vmatpush1.msra.mxu0 %v218
  %1142 = vmatprep.subr.mxu0 %v223
  %1143 = vmatpush1.msra.mxu0 %v222
  %1144 = vmatprep.subr.mxu0 %v227
  %1145 = vmatpush1.msra.mxu0 %v226
  %1146 = vmatprep.subr.mxu0 %v231
  %1147 = vmatpush1.msra.mxu0 %v230
  %1148 = vmatprep.subr.mxu0 %v235
  %1149 = vmatpush1.msra.mxu0 %v234
  %1150 = vmatprep.subr.mxu0 %v239
  %1151 = vmatpush1.msra.mxu0 %v238
  %1152 = vmatprep.subr.mxu0 %v243
  %1153 = vmatpush1.msra.mxu0 %v242
  %1154 = vmatprep.subr.mxu0 %v247
  %1155 = vmatpush1.msra.mxu0 %v246
  %1156 = vmatprep.subr.mxu0 %v251
  %1157 = vmatpush1.msra.mxu0 %v250
  %1158 = vmatprep.subr.mxu0 %v255
  %1159 = vmatpush1.msra.mxu0 %v254
  %1160 = vmatprep.subr.mxu0 0.0
  %1161 = vmatpush1.msra.mxu0 0.0
  %1162 = vmatprep.subr.mxu0 0.0
  %1163 = vmatpush1.msra.mxu0 0.0
  %1164 = vmatprep.subr.mxu0 0.0
  %1165 = vmatpush1.msra.mxu0 0.0
  %1166 = vmatprep.subr.mxu0 0.0
  %1167 = vmatpush1.msra.mxu0 0.0
  %1168 = vmatprep.subr.mxu0 0.0
  %1169 = vmatpush1.msra.mxu0 0.0
  %1170 = vmatprep.subr.mxu0 0.0
  %1171 = vmatpush1.msra.mxu0 0.0
  %1172 = vmatprep.subr.mxu0 0.0
  %1173 = vmatpush1.msra.mxu0 0.0
  %1174 = vmatprep.subr.mxu0 0.0
  %1175 = vmatpush1.msra.mxu0 0.0
  %1176 = vmatprep.subr.mxu0 0.0
  %1177 = vmatpush1.msra.mxu0 0.0
  %1178 = vmatprep.subr.mxu0 0.0
  %1179 = vmatpush1.msra.mxu0 0.0
  %1180 = vmatprep.subr.mxu0 0.0
  %1181 = vmatpush1.msra.mxu0 0.0
  %1182 = vmatprep.subr.mxu0 0.0
  %1183 = vmatpush1.msra.mxu0 0.0
  %1184 = vmatprep.subr.mxu0 0.0
  %1185 = vmatpush1.msra.mxu0 0.0
  %1186 = vmatprep.subr.mxu0 0.0
  %1187 = vmatpush1.msra.mxu0 0.0
  %1188 = vmatprep.subr.mxu0 0.0
  %1189 = vmatpush1.msra.mxu0 0.0
  %1190 = vmatprep.subr.mxu0 0.0
  %1191 = vmatpush1.msra.mxu0 0.0
  %1192 = vmatprep.mubr.f32.mxu0 0.0
  %1193 = vmatmul.mubr.f32.gmra.mrb[0].mxu0 %v1056
  %v1194 = vpop.f32.mrb[0].mxu0
  %v1195 = vadd.f32 0.0, %v1194
  %v1196 = vpop.f32.mrb[0].mxu0
  %v1197 = vadd.f32 0.0, %v1196
  %1198 = vdwg.mxu0
  %1199 = vmatprep.subr.mxu0 %v65
  %1200 = vmatpush1.msra.mxu0 %v64
  %1201 = vmatprep.subr.mxu0 %v69
  %1202 = vmatpush1.msra.mxu0 %v68
  %1203 = vmatprep.subr.mxu0 %v73
  %1204 = vmatpush1.msra.mxu0 %v72
  %1205 = vmatprep.subr.mxu0 %v77
  %1206 = vmatpush1.msra.mxu0 %v76
  %1207 = vmatprep.subr.mxu0 %v81
  %1208 = vmatpush1.msra.mxu0 %v80
  %1209 = vmatprep.subr.mxu0 %v85
  %1210 = vmatpush1.msra.mxu0 %v84
  %1211 = vmatprep.subr.mxu0 %v89
  %1212 = vmatpush1.msra.mxu0 %v88
  %1213 = vmatprep.subr.mxu0 %v93
  %1214 = vmatpush1.msra.mxu0 %v92
  %1215 = vmatprep.subr.mxu0 %v97
  %1216 = vmatpush1.msra.mxu0 %v96
  %1217 = vmatprep.subr.mxu0 %v101
  %1218 = vmatpush1.msra.mxu0 %v100
  %1219 = vmatprep.subr.mxu0 %v105
  %1220 = vmatpush1.msra.mxu0 %v104
  %1221 = vmatprep.subr.mxu0 %v109
  %1222 = vmatpush1.msra.mxu0 %v108
  %1223 = vmatprep.subr.mxu0 %v113
  %1224 = vmatpush1.msra.mxu0 %v112
  %1225 = vmatprep.subr.mxu0 %v117
  %1226 = vmatpush1.msra.mxu0 %v116
  %1227 = vmatprep.subr.mxu0 %v121
  %1228 = vmatpush1.msra.mxu0 %v120
  %1229 = vmatprep.subr.mxu0 %v125
  %1230 = vmatpush1.msra.mxu0 %v124
  %1231 = vmatprep.subr.mxu0 0.0
  %1232 = vmatpush1.msra.mxu0 0.0
  %1233 = vmatprep.subr.mxu0 0.0
  %1234 = vmatpush1.msra.mxu0 0.0
  %1235 = vmatprep.subr.mxu0 0.0
  %1236 = vmatpush1.msra.mxu0 0.0
  %1237 = vmatprep.subr.mxu0 0.0
  %1238 = vmatpush1.msra.mxu0 0.0
  %1239 = vmatprep.subr.mxu0 0.0
  %1240 = vmatpush1.msra.mxu0 0.0
  %1241 = vmatprep.subr.mxu0 0.0
  %1242 = vmatpush1.msra.mxu0 0.0
  %1243 = vmatprep.subr.mxu0 0.0
  %1244 = vmatpush1.msra.mxu0 0.0
  %1245 = vmatprep.subr.mxu0 0.0
  %1246 = vmatpush1.msra.mxu0 0.0
  %1247 = vmatprep.subr.mxu0 0.0
  %1248 = vmatpush1.msra.mxu0 0.0
  %1249 = vmatprep.subr.mxu0 0.0
  %1250 = vmatpush1.msra.mxu0 0.0
  %1251 = vmatprep.subr.mxu0 0.0
  %1252 = vmatpush1.msra.mxu0 0.0
  %1253 = vmatprep.subr.mxu0 0.0
  %1254 = vmatpush1.msra.mxu0 0.0
  %1255 = vmatprep.subr.mxu0 0.0
  %1256 = vmatpush1.msra.mxu0 0.0
  %1257 = vmatprep.subr.mxu0 0.0
  %1258 = vmatpush1.msra.mxu0 0.0
  %1259 = vmatprep.subr.mxu0 0.0
  %1260 = vmatpush1.msra.mxu0 0.0
  %1261 = vmatprep.subr.mxu0 0.0
  %1262 = vmatpush1.msra.mxu0 0.0
  %1263 = vmatprep.mubr.f32.mxu0 0.0
  %1264 = vmatmul.mubr.f32.gmra.mrb[0].mxu0 %v886
  %v1265 = vpop.f32.mrb[0].mxu0
  %v1266 = vadd.f32 0.0, %v1265
  %v1267 = vpop.f32.mrb[0].mxu0
  %v1268 = vadd.f32 0.0, %v1267
  %1269 = vdwg.mxu0
  %1270 = vmatprep.subr.mxu0 %v67
  %1271 = vmatpush1.msra.mxu0 %v66
  %1272 = vmatprep.subr.mxu0 %v71
  %1273 = vmatpush1.msra.mxu0 %v70
  %1274 = vmatprep.subr.mxu0 %v75
  %1275 = vmatpush1.msra.mxu0 %v74
  %1276 = vmatprep.subr.mxu0 %v79
  %1277 = vmatpush1.msra.mxu0 %v78
  %1278 = vmatprep.subr.mxu0 %v83
  %1279 = vmatpush1.msra.mxu0 %v82
  %1280 = vmatprep.subr.mxu0 %v87
  %1281 = vmatpush1.msra.mxu0 %v86
  %1282 = vmatprep.subr.mxu0 %v91
  %1283 = vmatpush1.msra.mxu0 %v90
  %1284 = vmatprep.subr.mxu0 %v95
  %1285 = vmatpush1.msra.mxu0 %v94
  %1286 = vmatprep.subr.mxu0 %v99
  %1287 = vmatpush1.msra.mxu0 %v98
  %1288 = vmatprep.subr.mxu0 %v103
  %1289 = vmatpush1.msra.mxu0 %v102
  %1290 = vmatprep.subr.mxu0 %v107
  %1291 = vmatpush1.msra.mxu0 %v106
  %1292 = vmatprep.subr.mxu0 %v111
  %1293 = vmatpush1.msra.mxu0 %v110
  %1294 = vmatprep.subr.mxu0 %v115
  %1295 = vmatpush1.msra.mxu0 %v114
  %1296 = vmatprep.subr.mxu0 %v119
  %1297 = vmatpush1.msra.mxu0 %v118
  %1298 = vmatprep.subr.mxu0 %v123
  %1299 = vmatpush1.msra.mxu0 %v122
  %1300 = vmatprep.subr.mxu0 %v127
  %1301 = vmatpush1.msra.mxu0 %v126
  %1302 = vmatprep.subr.mxu0 0.0
  %1303 = vmatpush1.msra.mxu0 0.0
  %1304 = vmatprep.subr.mxu0 0.0
  %1305 = vmatpush1.msra.mxu0 0.0
  %1306 = vmatprep.subr.mxu0 0.0
  %1307 = vmatpush1.msra.mxu0 0.0
  %1308 = vmatprep.subr.mxu0 0.0
  %1309 = vmatpush1.msra.mxu0 0.0
  %1310 = vmatprep.subr.mxu0 0.0
  %1311 = vmatpush1.msra.mxu0 0.0
  %1312 = vmatprep.subr.mxu0 0.0
  %1313 = vmatpush1.msra.mxu0 0.0
  %1314 = vmatprep.subr.mxu0 0.0
  %1315 = vmatpush1.msra.mxu0 0.0
  %1316 = vmatprep.subr.mxu0 0.0
  %1317 = vmatpush1.msra.mxu0 0.0
  %1318 = vmatprep.subr.mxu0 0.0
  %1319 = vmatpush1.msra.mxu0 0.0
  %1320 = vmatprep.subr.mxu0 0.0
  %1321 = vmatpush1.msra.mxu0 0.0
  %1322 = vmatprep.subr.mxu0 0.0
  %1323 = vmatpush1.msra.mxu0 0.0
  %1324 = vmatprep.subr.mxu0 0.0
  %1325 = vmatpush1.msra.mxu0 0.0
  %1326 = vmatprep.subr.mxu0 0.0
  %1327 = vmatpush1.msra.mxu0 0.0
  %1328 = vmatprep.subr.mxu0 0.0
  %1329 = vmatpush1.msra.mxu0 0.0
  %1330 = vmatprep.subr.mxu0 0.0
  %1331 = vmatpush1.msra.mxu0 0.0
  %1332 = vmatprep.subr.mxu0 0.0
  %1333 = vmatpush1.msra.mxu0 0.0
  %1334 = vmatprep.mubr.f32.mxu0 0.0
  %1335 = vmatmul.mubr.f32.gmra.mrb[0].mxu0 %v886
  %v1336 = vpop.f32.mrb[0].mxu0
  %v1337 = vadd.f32 0.0, %v1336
  %v1338 = vpop.f32.mrb[0].mxu0
  %v1339 = vadd.f32 0.0, %v1338
  %1340 = vdwg.mxu0
  %v1341 = vadd.f32 %v400, %v1266
  %v1342 = vadd.f32 %v402, %v1268
  %v1343 = vadd.f32 %v513, %v1337
  %v1344 = vadd.f32 %v515, %v1339
  %v1345 = vxor.u32 %v1341, 2147483648
  %v1346 = vmul.f32 %v1345, 1.442695
  %v1347 = vpow.pop %v1346
  %v1348 = vadd.f32 %v1347, 1.0
  %v1349 = vrcp.pop %v1348
  %v1350 = vmul.f32 1.0, %v1349
  %v1351 = vxor.u32 %v1342, 2147483648
  %v1352 = vmul.f32 %v1351, 1.442695
  %v1353 = vpow.pop %v1352
  %v1354 = vadd.f32 %v1353, 1.0
  %v1355 = vrcp.pop %v1354
  %v1356 = vmul.f32 1.0, %v1355
  %v1357 = vtanh.pop %v1343
  %v1358 = vxor.u32 %v1344, 2147483648
  %v1359 = vmul.f32 %v1358, 1.442695
  %v1360 = vpow.pop %v1359
  %v1361 = vadd.f32 %v1360, 1.0
  %v1362 = vrcp.pop %v1361
  %v1363 = vmul.f32 1.0, %v1362
  %v1364 = vmul.f32 %v1356, %v884
  %v1365 = vmul.f32 %v1350, %v1357
  %v1366 = vadd.f32 %v1364, %v1365
  %v1367 = vtanh.pop %v1366
  %v1368 = vmul.f32 %v1363, %v1367
  %1369 = vmatprep.subr.mxu0 %v129
  %1370 = vmatpush1.msra.mxu0 %v128
  %1371 = vmatprep.subr.mxu0 %v133
  %1372 = vmatpush1.msra.mxu0 %v132
  %1373 = vmatprep.subr.mxu0 %v137
  %1374 = vmatpush1.msra.mxu0 %v136
  %1375 = vmatprep.subr.mxu0 %v141
  %1376 = vmatpush1.msra.mxu0 %v140
  %1377 = vmatprep.subr.mxu0 %v145
  %1378 = vmatpush1.msra.mxu0 %v144
  %1379 = vmatprep.subr.mxu0 %v149
  %1380 = vmatpush1.msra.mxu0 %v148
  %1381 = vmatprep.subr.mxu0 %v153
  %1382 = vmatpush1.msra.mxu0 %v152
  %1383 = vmatprep.subr.mxu0 %v157
  %1384 = vmatpush1.msra.mxu0 %v156
  %1385 = vmatprep.subr.mxu0 %v161
  %1386 = vmatpush1.msra.mxu0 %v160
  %1387 = vmatprep.subr.mxu0 %v165
  %1388 = vmatpush1.msra.mxu0 %v164
  %1389 = vmatprep.subr.mxu0 %v169
  %1390 = vmatpush1.msra.mxu0 %v168
  %1391 = vmatprep.subr.mxu0 %v173
  %1392 = vmatpush1.msra.mxu0 %v172
  %1393 = vmatprep.subr.mxu0 %v177
  %1394 = vmatpush1.msra.mxu0 %v176
  %1395 = vmatprep.subr.mxu0 %v181
  %1396 = vmatpush1.msra.mxu0 %v180
  %1397 = vmatprep.subr.mxu0 %v185
  %1398 = vmatpush1.msra.mxu0 %v184
  %1399 = vmatprep.subr.mxu0 %v189
  %1400 = vmatpush1.msra.mxu0 %v188
  %1401 = vmatprep.subr.mxu0 0.0
  %1402 = vmatpush1.msra.mxu0 0.0
  %1403 = vmatprep.subr.mxu0 0.0
  %1404 = vmatpush1.msra.mxu0 0.0
  %1405 = vmatprep.subr.mxu0 0.0
  %1406 = vmatpush1.msra.mxu0 0.0
  %1407 = vmatprep.subr.mxu0 0.0
  %1408 = vmatpush1.msra.mxu0 0.0
  %1409 = vmatprep.subr.mxu0 0.0
  %1410 = vmatpush1.msra.mxu0 0.0
  %1411 = vmatprep.subr.mxu0 0.0
  %1412 = vmatpush1.msra.mxu0 0.0
  %1413 = vmatprep.subr.mxu0 0.0
  %1414 = vmatpush1.msra.mxu0 0.0
  %1415 = vmatprep.subr.mxu0 0.0
  %1416 = vmatpush1.msra.mxu0 0.0
  %1417 = vmatprep.subr.mxu0 0.0
  %1418 = vmatpush1.msra.mxu0 0.0
  %1419 = vmatprep.subr.mxu0 0.0
  %1420 = vmatpush1.msra.mxu0 0.0
  %1421 = vmatprep.subr.mxu0 0.0
  %1422 = vmatpush1.msra.mxu0 0.0
  %1423 = vmatprep.subr.mxu0 0.0
  %1424 = vmatpush1.msra.mxu0 0.0
  %1425 = vmatprep.subr.mxu0 0.0
  %1426 = vmatpush1.msra.mxu0 0.0
  %1427 = vmatprep.subr.mxu0 0.0
  %1428 = vmatpush1.msra.mxu0 0.0
  %1429 = vmatprep.subr.mxu0 0.0
  %1430 = vmatpush1.msra.mxu0 0.0
  %1431 = vmatprep.subr.mxu0 0.0
  %1432 = vmatpush1.msra.mxu0 0.0
  %1433 = vmatprep.mubr.f32.mxu0 0.0
  %1434 = vmatmul.mubr.f32.gmra.mrb[0].mxu0 %v1368
  %v1435 = vpop.f32.mrb[0].mxu0
  %v1436 = vadd.f32 %v1124, %v1435
  %v1437 = vpop.f32.mrb[0].mxu0
  %v1438 = vadd.f32 %v1126, %v1437
  %1439 = vdwg.mxu0
  %1440 = vmatprep.subr.mxu0 %v131
  %1441 = vmatpush1.msra.mxu0 %v130
  %1442 = vmatprep.subr.mxu0 %v135
  %1443 = vmatpush1.msra.mxu0 %v134
  %1444 = vmatprep.subr.mxu0 %v139
  %1445 = vmatpush1.msra.mxu0 %v138
  %1446 = vmatprep.subr.mxu0 %v143
  %1447 = vmatpush1.msra.mxu0 %v142
  %1448 = vmatprep.subr.mxu0 %v147
  %1449 = vmatpush1.msra.mxu0 %v146
  %1450 = vmatprep.subr.mxu0 %v151
  %1451 = vmatpush1.msra.mxu0 %v150
  %1452 = vmatprep.subr.mxu0 %v155
  %1453 = vmatpush1.msra.mxu0 %v154
  %1454 = vmatprep.subr.mxu0 %v159
  %1455 = vmatpush1.msra.mxu0 %v158
  %1456 = vmatprep.subr.mxu0 %v163
  %1457 = vmatpush1.msra.mxu0 %v162
  %1458 = vmatprep.subr.mxu0 %v167
  %1459 = vmatpush1.msra.mxu0 %v166
  %1460 = vmatprep.subr.mxu0 %v171
  %1461 = vmatpush1.msra.mxu0 %v170
  %1462 = vmatprep.subr.mxu0 %v175
  %1463 = vmatpush1.msra.mxu0 %v174
  %1464 = vmatprep.subr.mxu0 %v179
  %1465 = vmatpush1.msra.mxu0 %v178
  %1466 = vmatprep.subr.mxu0 %v183
  %1467 = vmatpush1.msra.mxu0 %v182
  %1468 = vmatprep.subr.mxu0 %v187
  %1469 = vmatpush1.msra.mxu0 %v186
  %1470 = vmatprep.subr.mxu0 %v191
  %1471 = vmatpush1.msra.mxu0 %v190
  %1472 = vmatprep.subr.mxu0 0.0
  %1473 = vmatpush1.msra.mxu0 0.0
  %1474 = vmatprep.subr.mxu0 0.0
  %1475 = vmatpush1.msra.mxu0 0.0
  %1476 = vmatprep.subr.mxu0 0.0
  %1477 = vmatpush1.msra.mxu0 0.0
  %1478 = vmatprep.subr.mxu0 0.0
  %1479 = vmatpush1.msra.mxu0 0.0
  %1480 = vmatprep.subr.mxu0 0.0
  %1481 = vmatpush1.msra.mxu0 0.0
  %1482 = vmatprep.subr.mxu0 0.0
  %1483 = vmatpush1.msra.mxu0 0.0
  %1484 = vmatprep.subr.mxu0 0.0
  %1485 = vmatpush1.msra.mxu0 0.0
  %1486 = vmatprep.subr.mxu0 0.0
  %1487 = vmatpush1.msra.mxu0 0.0
  %1488 = vmatprep.subr.mxu0 0.0
  %1489 = vmatpush1.msra.mxu0 0.0
  %1490 = vmatprep.subr.mxu0 0.0
  %1491 = vmatpush1.msra.mxu0 0.0
  %1492 = vmatprep.subr.mxu0 0.0
  %1493 = vmatpush1.msra.mxu0 0.0
  %1494 = vmatprep.subr.mxu0 0.0
  %1495 = vmatpush1.msra.mxu0 0.0
  %1496 = vmatprep.subr.mxu0 0.0
  %1497 = vmatpush1.msra.mxu0 0.0
  %1498 = vmatprep.subr.mxu0 0.0
  %1499 = vmatpush1.msra.mxu0 0.0
  %1500 = vmatprep.subr.mxu0 0.0
  %1501 = vmatpush1.msra.mxu0 0.0
  %1502 = vmatprep.subr.mxu0 0.0
  %1503 = vmatpush1.msra.mxu0 0.0
  %1504 = vmatprep.mubr.f32.mxu0 0.0
  %1505 = vmatmul.mubr.f32.gmra.mrb[0].mxu0 %v1368
  %v1506 = vpop.f32.mrb[0].mxu0
  %v1507 = vadd.f32 %v1195, %v1506
  %v1508 = vpop.f32.mrb[0].mxu0
  %v1509 = vadd.f32 %v1197, %v1508
  %1510 = vdwg.mxu0
  %v1511 = vadd.f32 %v1436, %v558
  %v1512 = vadd.f32 %v1438, %v562
  %v1513 = vadd.f32 %v1507, %v566
  %v1514 = vadd.f32 %v1509, %v570
  %v1515 = vxor.u32 %v1511, 2147483648
  %v1516 = vmul.f32 %v1515, 1.442695
  %v1517 = vpow.pop %v1516
  %v1518 = vadd.f32 %v1517, 1.0
  %v1519 = vrcp.pop %v1518
  %v1520 = vmul.f32 1.0, %v1519
  %v1521 = vxor.u32 %v1512, 2147483648
  %v1522 = vmul.f32 %v1521, 1.442695
  %v1523 = vpow.pop %v1522
  %v1524 = vadd.f32 %v1523, 1.0
  %v1525 = vrcp.pop %v1524
  %v1526 = vmul.f32 1.0, %v1525
  %v1527 = vtanh.pop %v1513
  %v1528 = vxor.u32 %v1514, 2147483648
  %v1529 = vmul.f32 %v1528, 1.442695
  %v1530 = vpow.pop %v1529
  %v1531 = vadd.f32 %v1530, 1.0
  %v1532 = vrcp.pop %v1531
  %v1533 = vmul.f32 1.0, %v1532
  %v1534 = vmul.f32 %v1526, %v1054
  %v1535 = vmul.f32 %v1520, %v1527
  %v1536 = vadd.f32 %v1534, %v1535
  %v1537 = vtanh.pop %v1536
  %v1538 = vmul.f32 %v1533, %v1537
  %1539 = vmatprep.subr.mxu0 %v193
  %1540 = vmatpush1.msra.mxu0 %v192
  %1541 = vmatprep.subr.mxu0 %v197
  %1542 = vmatpush1.msra.mxu0 %v196
  %1543 = vmatprep.subr.mxu0 %v201
  %1544 = vmatpush1.msra.mxu0 %v200
  %1545 = vmatprep.subr.mxu0 %v205
  %1546 = vmatpush1.msra.mxu0 %v204
  %1547 = vmatprep.subr.mxu0 %v209
  %1548 = vmatpush1.msra.mxu0 %v208
  %1549 = vmatprep.subr.mxu0 %v213
  %1550 = vmatpush1.msra.mxu0 %v212
  %1551 = vmatprep.subr.mxu0 %v217
  %1552 = vmatpush1.msra.mxu0 %v216
  %1553 = vmatprep.subr.mxu0 %v221
  %1554 = vmatpush1.msra.mxu0 %v220
  %1555 = vmatprep.subr.mxu0 %v225
  %1556 = vmatpush1.msra.mxu0 %v224
  %1557 = vmatprep.subr.mxu0 %v229
  %1558 = vmatpush1.msra.mxu0 %v228
  %1559 = vmatprep.subr.mxu0 %v233
  %1560 = vmatpush1.msra.mxu0 %v232
  %1561 = vmatprep.subr.mxu0 %v237
  %1562 = vmatpush1.msra.mxu0 %v236
  %1563 = vmatprep.subr.mxu0 %v241
  %1564 = vmatpush1.msra.mxu0 %v240
  %1565 = vmatprep.subr.mxu0 %v245
  %1566 = vmatpush1.msra.mxu0 %v244
  %1567 = vmatprep.subr.mxu0 %v249
  %1568 = vmatpush1.msra.mxu0 %v248
  %1569 = vmatprep.subr.mxu0 %v253
  %1570 = vmatpush1.msra.mxu0 %v252
  %1571 = vmatprep.subr.mxu0 0.0
  %1572 = vmatpush1.msra.mxu0 0.0
  %1573 = vmatprep.subr.mxu0 0.0
  %1574 = vmatpush1.msra.mxu0 0.0
  %1575 = vmatprep.subr.mxu0 0.0
  %1576 = vmatpush1.msra.mxu0 0.0
  %1577 = vmatprep.subr.mxu0 0.0
  %1578 = vmatpush1.msra.mxu0 0.0
  %1579 = vmatprep.subr.mxu0 0.0
  %1580 = vmatpush1.msra.mxu0 0.0
  %1581 = vmatprep.subr.mxu0 0.0
  %1582 = vmatpush1.msra.mxu0 0.0
  %1583 = vmatprep.subr.mxu0 0.0
  %1584 = vmatpush1.msra.mxu0 0.0
  %1585 = vmatprep.subr.mxu0 0.0
  %1586 = vmatpush1.msra.mxu0 0.0
  %1587 = vmatprep.subr.mxu0 0.0
  %1588 = vmatpush1.msra.mxu0 0.0
  %1589 = vmatprep.subr.mxu0 0.0
  %1590 = vmatpush1.msra.mxu0 0.0
  %1591 = vmatprep.subr.mxu0 0.0
  %1592 = vmatpush1.msra.mxu0 0.0
  %1593 = vmatprep.subr.mxu0 0.0
  %1594 = vmatpush1.msra.mxu0 0.0
  %1595 = vmatprep.subr.mxu0 0.0
  %1596 = vmatpush1.msra.mxu0 0.0
  %1597 = vmatprep.subr.mxu0 0.0
  %1598 = vmatpush1.msra.mxu0 0.0
  %1599 = vmatprep.subr.mxu0 0.0
  %1600 = vmatpush1.msra.mxu0 0.0
  %1601 = vmatprep.subr.mxu0 0.0
  %1602 = vmatpush1.msra.mxu0 0.0
  %1603 = vmatprep.mubr.f32.mxu0 0.0
  %1604 = vmatmul.mubr.f32.gmra.mrb[0].mxu0 %v1538
  %v1605 = vpop.f32.mrb[0].mxu0
  %v1606 = vadd.f32 0.0, %v1605
  %v1607 = vpop.f32.mrb[0].mxu0
  %v1608 = vadd.f32 0.0, %v1607
  %1609 = vdwg.mxu0
  %1610 = vmatprep.subr.mxu0 %v195
  %1611 = vmatpush1.msra.mxu0 %v194
  %1612 = vmatprep.subr.mxu0 %v199
  %1613 = vmatpush1.msra.mxu0 %v198
  %1614 = vmatprep.subr.mxu0 %v203
  %1615 = vmatpush1.msra.mxu0 %v202
  %1616 = vmatprep.subr.mxu0 %v207
  %1617 = vmatpush1.msra.mxu0 %v206
  %1618 = vmatprep.subr.mxu0 %v211
  %1619 = vmatpush1.msra.mxu0 %v210
  %1620 = vmatprep.subr.mxu0 %v215
  %1621 = vmatpush1.msra.mxu0 %v214
  %1622 = vmatprep.subr.mxu0 %v219
  %1623 = vmatpush1.msra.mxu0 %v218
  %1624 = vmatprep.subr.mxu0 %v223
  %1625 = vmatpush1.msra.mxu0 %v222
  %1626 = vmatprep.subr.mxu0 %v227
  %1627 = vmatpush1.msra.mxu0 %v226
  %1628 = vmatprep.subr.mxu0 %v231
  %1629 = vmatpush1.msra.mxu0 %v230
  %1630 = vmatprep.subr.mxu0 %v235
  %1631 = vmatpush1.msra.mxu0 %v234
  %1632 = vmatprep.subr.mxu0 %v239
  %1633 = vmatpush1.msra.mxu0 %v238
  %1634 = vmatprep.subr.mxu0 %v243
  %1635 = vmatpush1.msra.mxu0 %v242
  %1636 = vmatprep.subr.mxu0 %v247
  %1637 = vmatpush1.msra.mxu0 %v246
  %1638 = vmatprep.subr.mxu0 %v251
  %1639 = vmatpush1.msra.mxu0 %v250
  %1640 = vmatprep.subr.mxu0 %v255
  %1641 = vmatpush1.msra.mxu0 %v254
  %1642 = vmatprep.subr.mxu0 0.0
  %1643 = vmatpush1.msra.mxu0 0.0
  %1644 = vmatprep.subr.mxu0 0.0
  %1645 = vmatpush1.msra.mxu0 0.0
  %1646 = vmatprep.subr.mxu0 0.0
  %1647 = vmatpush1.msra.mxu0 0.0
  %1648 = vmatprep.subr.mxu0 0.0
  %1649 = vmatpush1.msra.mxu0 0.0
  %1650 = vmatprep.subr.mxu0 0.0
  %1651 = vmatpush1.msra.mxu0 0.0
  %1652 = vmatprep.subr.mxu0 0.0
  %1653 = vmatpush1.msra.mxu0 0.0
  %1654 = vmatprep.subr.mxu0 0.0
  %1655 = vmatpush1.msra.mxu0 0.0
  %1656 = vmatprep.subr.mxu0 0.0
  %1657 = vmatpush1.msra.mxu0 0.0
  %1658 = vmatprep.subr.mxu0 0.0
  %1659 = vmatpush1.msra.mxu0 0.0
  %1660 = vmatprep.subr.mxu0 0.0
  %1661 = vmatpush1.msra.mxu0 0.0
  %1662 = vmatprep.subr.mxu0 0.0
  %1663 = vmatpush1.msra.mxu0 0.0
  %1664 = vmatprep.subr.mxu0 0.0
  %1665 = vmatpush1.msra.mxu0 0.0
  %1666 = vmatprep.subr.mxu0 0.0
  %1667 = vmatpush1.msra.mxu0 0.0
  %1668 = vmatprep.subr.mxu0 0.0
  %1669 = vmatpush1.msra.mxu0 0.0
  %1670 = vmatprep.subr.mxu0 0.0
  %1671 = vmatpush1.msra.mxu0 0.0
  %1672 = vmatprep.subr.mxu0 0.0
  %1673 = vmatpush1.msra.mxu0 0.0
  %1674 = vmatprep.mubr.f32.mxu0 0.0
  %1675 = vmatmul.mubr.f32.gmra.mrb[0].mxu0 %v1538
  %v1676 = vpop.f32.mrb[0].mxu0
  %v1677 = vadd.f32 0.0, %v1676
  %v1678 = vpop.f32.mrb[0].mxu0
  %v1679 = vadd.f32 0.0, %v1678
  %1680 = vdwg.mxu0
  %1681 = vmatprep.subr.mxu0 %v65
  %1682 = vmatpush1.msra.mxu0 %v64
  %1683 = vmatprep.subr.mxu0 %v69
  %1684 = vmatpush1.msra.mxu0 %v68
  %1685 = vmatprep.subr.mxu0 %v73
  %1686 = vmatpush1.msra.mxu0 %v72
  %1687 = vmatprep.subr.mxu0 %v77
  %1688 = vmatpush1.msra.mxu0 %v76
  %1689 = vmatprep.subr.mxu0 %v81
  %1690 = vmatpush1.msra.mxu0 %v80
  %1691 = vmatprep.subr.mxu0 %v85
  %1692 = vmatpush1.msra.mxu0 %v84
  %1693 = vmatprep.subr.mxu0 %v89
  %1694 = vmatpush1.msra.mxu0 %v88
  %1695 = vmatprep.subr.mxu0 %v93
  %1696 = vmatpush1.msra.mxu0 %v92
  %1697 = vmatprep.subr.mxu0 %v97
  %1698 = vmatpush1.msra.mxu0 %v96
  %1699 = vmatprep.subr.mxu0 %v101
  %1700 = vmatpush1.msra.mxu0 %v100
  %1701 = vmatprep.subr.mxu0 %v105
  %1702 = vmatpush1.msra.mxu0 %v104
  %1703 = vmatprep.subr.mxu0 %v109
  %1704 = vmatpush1.msra.mxu0 %v108
  %1705 = vmatprep.subr.mxu0 %v113
  %1706 = vmatpush1.msra.mxu0 %v112
  %1707 = vmatprep.subr.mxu0 %v117
  %1708 = vmatpush1.msra.mxu0 %v116
  %1709 = vmatprep.subr.mxu0 %v121
  %1710 = vmatpush1.msra.mxu0 %v120
  %1711 = vmatprep.subr.mxu0 %v125
  %1712 = vmatpush1.msra.mxu0 %v124
  %1713 = vmatprep.subr.mxu0 0.0
  %1714 = vmatpush1.msra.mxu0 0.0
  %1715 = vmatprep.subr.mxu0 0.0
  %1716 = vmatpush1.msra.mxu0 0.0
  %1717 = vmatprep.subr.mxu0 0.0
  %1718 = vmatpush1.msra.mxu0 0.0
  %1719 = vmatprep.subr.mxu0 0.0
  %1720 = vmatpush1.msra.mxu0 0.0
  %1721 = vmatprep.subr.mxu0 0.0
  %1722 = vmatpush1.msra.mxu0 0.0
  %1723 = vmatprep.subr.mxu0 0.0
  %1724 = vmatpush1.msra.mxu0 0.0
  %1725 = vmatprep.subr.mxu0 0.0
  %1726 = vmatpush1.msra.mxu0 0.0
  %1727 = vmatprep.subr.mxu0 0.0
  %1728 = vmatpush1.msra.mxu0 0.0
  %1729 = vmatprep.subr.mxu0 0.0
  %1730 = vmatpush1.msra.mxu0 0.0
  %1731 = vmatprep.subr.mxu0 0.0
  %1732 = vmatpush1.msra.mxu0 0.0
  %1733 = vmatprep.subr.mxu0 0.0
  %1734 = vmatpush1.msra.mxu0 0.0
  %1735 = vmatprep.subr.mxu0 0.0
  %1736 = vmatpush1.msra.mxu0 0.0
  %1737 = vmatprep.subr.mxu0 0.0
  %1738 = vmatpush1.msra.mxu0 0.0
  %1739 = vmatprep.subr.mxu0 0.0
  %1740 = vmatpush1.msra.mxu0 0.0
  %1741 = vmatprep.subr.mxu0 0.0
  %1742 = vmatpush1.msra.mxu0 0.0
  %1743 = vmatprep.subr.mxu0 0.0
  %1744 = vmatpush1.msra.mxu0 0.0
  %1745 = vmatprep.mubr.f32.mxu0 0.0
  %1746 = vmatmul.mubr.f32.gmra.mrb[0].mxu0 %v1368
  %v1747 = vpop.f32.mrb[0].mxu0
  %v1748 = vadd.f32 0.0, %v1747
  %v1749 = vpop.f32.mrb[0].mxu0
  %v1750 = vadd.f32 0.0, %v1749
  %1751 = vdwg.mxu0
  %1752 = vmatprep.subr.mxu0 %v67
  %1753 = vmatpush1.msra.mxu0 %v66
  %1754 = vmatprep.subr.mxu0 %v71
  %1755 = vmatpush1.msra.mxu0 %v70
  %1756 = vmatprep.subr.mxu0 %v75
  %1757 = vmatpush1.msra.mxu0 %v74
  %1758 = vmatprep.subr.mxu0 %v79
  %1759 = vmatpush1.msra.mxu0 %v78
  %1760 = vmatprep.subr.mxu0 %v83
  %1761 = vmatpush1.msra.mxu0 %v82
  %1762 = vmatprep.subr.mxu0 %v87
  %1763 = vmatpush1.msra.mxu0 %v86
  %1764 = vmatprep.subr.mxu0 %v91
  %1765 = vmatpush1.msra.mxu0 %v90
  %1766 = vmatprep.subr.mxu0 %v95
  %1767 = vmatpush1.msra.mxu0 %v94
  %1768 = vmatprep.subr.mxu0 %v99
  %1769 = vmatpush1.msra.mxu0 %v98
  %1770 = vmatprep.subr.mxu0 %v103
  %1771 = vmatpush1.msra.mxu0 %v102
  %1772 = vmatprep.subr.mxu0 %v107
  %1773 = vmatpush1.msra.mxu0 %v106
  %1774 = vmatprep.subr.mxu0 %v111
  %1775 = vmatpush1.msra.mxu0 %v110
  %1776 = vmatprep.subr.mxu0 %v115
  %1777 = vmatpush1.msra.mxu0 %v114
  %1778 = vmatprep.subr.mxu0 %v119
  %1779 = vmatpush1.msra.mxu0 %v118
  %1780 = vmatprep.subr.mxu0 %v123
  %1781 = vmatpush1.msra.mxu0 %v122
  %1782 = vmatprep.subr.mxu0 %v127
  %1783 = vmatpush1.msra.mxu0 %v126
  %1784 = vmatprep.subr.mxu0 0.0
  %1785 = vmatpush1.msra.mxu0 0.0
  %1786 = vmatprep.subr.mxu0 0.0
  %1787 = vmatpush1.msra.mxu0 0.0
  %1788 = vmatprep.subr.mxu0 0.0
  %1789 = vmatpush1.msra.mxu0 0.0
  %1790 = vmatprep.subr.mxu0 0.0
  %1791 = vmatpush1.msra.mxu0 0.0
  %1792 = vmatprep.subr.mxu0 0.0
  %1793 = vmatpush1.msra.mxu0 0.0
  %1794 = vmatprep.subr.mxu0 0.0
  %1795 = vmatpush1.msra.mxu0 0.0
  %1796 = vmatprep.subr.mxu0 0.0
  %1797 = vmatpush1.msra.mxu0 0.0
  %1798 = vmatprep.subr.mxu0 0.0
  %1799 = vmatpush1.msra.mxu0 0.0
  %1800 = vmatprep.subr.mxu0 0.0
  %1801 = vmatpush1.msra.mxu0 0.0
  %1802 = vmatprep.subr.mxu0 0.0
  %1803 = vmatpush1.msra.mxu0 0.0
  %1804 = vmatprep.subr.mxu0 0.0
  %1805 = vmatpush1.msra.mxu0 0.0
  %1806 = vmatprep.subr.mxu0 0.0
  %1807 = vmatpush1.msra.mxu0 0.0
  %1808 = vmatprep.subr.mxu0 0.0
  %1809 = vmatpush1.msra.mxu0 0.0
  %1810 = vmatprep.subr.mxu0 0.0
  %1811 = vmatpush1.msra.mxu0 0.0
  %1812 = vmatprep.subr.mxu0 0.0
  %1813 = vmatpush1.msra.mxu0 0.0
  %1814 = vmatprep.subr.mxu0 0.0
  %1815 = vmatpush1.msra.mxu0 0.0
  %1816 = vmatprep.mubr.f32.mxu0 0.0
  %1817 = vmatmul.mubr.f32.gmra.mrb[0].mxu0 %v1368
  %v1818 = vpop.f32.mrb[0].mxu0
  %v1819 = vadd.f32 0.0, %v1818
  %v1820 = vpop.f32.mrb[0].mxu0
  %v1821 = vadd.f32 0.0, %v1820
  %1822 = vdwg.mxu0
  %v1823 = vadd.f32 %v406, %v1748
  %v1824 = vadd.f32 %v408, %v1750
  %v1825 = vadd.f32 %v519, %v1819
  %v1826 = vadd.f32 %v521, %v1821
  %v1827 = vxor.u32 %v1823, 2147483648
  %v1828 = vmul.f32 %v1827, 1.442695
  %v1829 = vpow.pop %v1828
  %v1830 = vadd.f32 %v1829, 1.0
  %v1831 = vrcp.pop %v1830
  %v1832 = vmul.f32 1.0, %v1831
  %v1833 = vxor.u32 %v1824, 2147483648
  %v1834 = vmul.f32 %v1833, 1.442695
  %v1835 = vpow.pop %v1834
  %v1836 = vadd.f32 %v1835, 1.0
  %v1837 = vrcp.pop %v1836
  %v1838 = vmul.f32 1.0, %v1837
  %v1839 = vtanh.pop %v1825
  %v1840 = vxor.u32 %v1826, 2147483648
  %v1841 = vmul.f32 %v1840, 1.442695
  %v1842 = vpow.pop %v1841
  %v1843 = vadd.f32 %v1842, 1.0
  %v1844 = vrcp.pop %v1843
  %v1845 = vmul.f32 1.0, %v1844
  %v1846 = vmul.f32 %v1838, %v1366
  %v1847 = vmul.f32 %v1832, %v1839
  %v1848 = vadd.f32 %v1846, %v1847
  %v1849 = vtanh.pop %v1848
  %v1850 = vmul.f32 %v1845, %v1849
  %1851 = vmatprep.subr.mxu0 %v129
  %1852 = vmatpush1.msra.mxu0 %v128
  %1853 = vmatprep.subr.mxu0 %v133
  %1854 = vmatpush1.msra.mxu0 %v132
  %1855 = vmatprep.subr.mxu0 %v137
  %1856 = vmatpush1.msra.mxu0 %v136
  %1857 = vmatprep.subr.mxu0 %v141
  %1858 = vmatpush1.msra.mxu0 %v140
  %1859 = vmatprep.subr.mxu0 %v145
  %1860 = vmatpush1.msra.mxu0 %v144
  %1861 = vmatprep.subr.mxu0 %v149
  %1862 = vmatpush1.msra.mxu0 %v148
  %1863 = vmatprep.subr.mxu0 %v153
  %1864 = vmatpush1.msra.mxu0 %v152
  %1865 = vmatprep.subr.mxu0 %v157
  %1866 = vmatpush1.msra.mxu0 %v156
  %1867 = vmatprep.subr.mxu0 %v161
  %1868 = vmatpush1.msra.mxu0 %v160
  %1869 = vmatprep.subr.mxu0 %v165
  %1870 = vmatpush1.msra.mxu0 %v164
  %1871 = vmatprep.subr.mxu0 %v169
  %1872 = vmatpush1.msra.mxu0 %v168
  %1873 = vmatprep.subr.mxu0 %v173
  %1874 = vmatpush1.msra.mxu0 %v172
  %1875 = vmatprep.subr.mxu0 %v177
  %1876 = vmatpush1.msra.mxu0 %v176
  %1877 = vmatprep.subr.mxu0 %v181
  %1878 = vmatpush1.msra.mxu0 %v180
  %1879 = vmatprep.subr.mxu0 %v185
  %1880 = vmatpush1.msra.mxu0 %v184
  %1881 = vmatprep.subr.mxu0 %v189
  %1882 = vmatpush1.msra.mxu0 %v188
  %1883 = vmatprep.subr.mxu0 0.0
  %1884 = vmatpush1.msra.mxu0 0.0
  %1885 = vmatprep.subr.mxu0 0.0
  %1886 = vmatpush1.msra.mxu0 0.0
  %1887 = vmatprep.subr.mxu0 0.0
  %1888 = vmatpush1.msra.mxu0 0.0
  %1889 = vmatprep.subr.mxu0 0.0
  %1890 = vmatpush1.msra.mxu0 0.0
  %1891 = vmatprep.subr.mxu0 0.0
  %1892 = vmatpush1.msra.mxu0 0.0
  %1893 = vmatprep.subr.mxu0 0.0
  %1894 = vmatpush1.msra.mxu0 0.0
  %1895 = vmatprep.subr.mxu0 0.0
  %1896 = vmatpush1.msra.mxu0 0.0
  %1897 = vmatprep.subr.mxu0 0.0
  %1898 = vmatpush1.msra.mxu0 0.0
  %1899 = vmatprep.subr.mxu0 0.0
  %1900 = vmatpush1.msra.mxu0 0.0
  %1901 = vmatprep.subr.mxu0 0.0
  %1902 = vmatpush1.msra.mxu0 0.0
  %1903 = vmatprep.subr.mxu0 0.0
  %1904 = vmatpush1.msra.mxu0 0.0
  %1905 = vmatprep.subr.mxu0 0.0
  %1906 = vmatpush1.msra.mxu0 0.0
  %1907 = vmatprep.subr.mxu0 0.0
  %1908 = vmatpush1.msra.mxu0 0.0
  %1909 = vmatprep.subr.mxu0 0.0
  %1910 = vmatpush1.msra.mxu0 0.0
  %1911 = vmatprep.subr.mxu0 0.0
  %1912 = vmatpush1.msra.mxu0 0.0
  %1913 = vmatprep.subr.mxu0 0.0
  %1914 = vmatpush1.msra.mxu0 0.0
  %1915 = vmatprep.mubr.f32.mxu0 0.0
  %1916 = vmatmul.mubr.f32.gmra.mrb[0].mxu0 %v1850
  %v1917 = vpop.f32.mrb[0].mxu0
  %v1918 = vadd.f32 %v1606, %v1917
  %v1919 = vpop.f32.mrb[0].mxu0
  %v1920 = vadd.f32 %v1608, %v1919
  %1921 = vdwg.mxu0
  %1922 = vmatprep.subr.mxu0 %v131
  %1923 = vmatpush1.msra.mxu0 %v130
  %1924 = vmatprep.subr.mxu0 %v135
  %1925 = vmatpush1.msra.mxu0 %v134
  %1926 = vmatprep.subr.mxu0 %v139
  %1927 = vmatpush1.msra.mxu0 %v138
  %1928 = vmatprep.subr.mxu0 %v143
  %1929 = vmatpush1.msra.mxu0 %v142
  %1930 = vmatprep.subr.mxu0 %v147
  %1931 = vmatpush1.msra.mxu0 %v146
  %1932 = vmatprep.subr.mxu0 %v151
  %1933 = vmatpush1.msra.mxu0 %v150
  %1934 = vmatprep.subr.mxu0 %v155
  %1935 = vmatpush1.msra.mxu0 %v154
  %1936 = vmatprep.subr.mxu0 %v159
  %1937 = vmatpush1.msra.mxu0 %v158
  %1938 = vmatprep.subr.mxu0 %v163
  %1939 = vmatpush1.msra.mxu0 %v162
  %1940 = vmatprep.subr.mxu0 %v167
  %1941 = vmatpush1.msra.mxu0 %v166
  %1942 = vmatprep.subr.mxu0 %v171
  %1943 = vmatpush1.msra.mxu0 %v170
  %1944 = vmatprep.subr.mxu0 %v175
  %1945 = vmatpush1.msra.mxu0 %v174
  %1946 = vmatprep.subr.mxu0 %v179
  %1947 = vmatpush1.msra.mxu0 %v178
  %1948 = vmatprep.subr.mxu0 %v183
  %1949 = vmatpush1.msra.mxu0 %v182
  %1950 = vmatprep.subr.mxu0 %v187
  %1951 = vmatpush1.msra.mxu0 %v186
  %1952 = vmatprep.subr.mxu0 %v191
  %1953 = vmatpush1.msra.mxu0 %v190
  %1954 = vmatprep.subr.mxu0 0.0
  %1955 = vmatpush1.msra.mxu0 0.0
  %1956 = vmatprep.subr.mxu0 0.0
  %1957 = vmatpush1.msra.mxu0 0.0
  %1958 = vmatprep.subr.mxu0 0.0
  %1959 = vmatpush1.msra.mxu0 0.0
  %1960 = vmatprep.subr.mxu0 0.0
  %1961 = vmatpush1.msra.mxu0 0.0
  %1962 = vmatprep.subr.mxu0 0.0
  %1963 = vmatpush1.msra.mxu0 0.0
  %1964 = vmatprep.subr.mxu0 0.0
  %1965 = vmatpush1.msra.mxu0 0.0
  %1966 = vmatprep.subr.mxu0 0.0
  %1967 = vmatpush1.msra.mxu0 0.0
  %1968 = vmatprep.subr.mxu0 0.0
  %1969 = vmatpush1.msra.mxu0 0.0
  %1970 = vmatprep.subr.mxu0 0.0
  %1971 = vmatpush1.msra.mxu0 0.0
  %1972 = vmatprep.subr.mxu0 0.0
  %1973 = vmatpush1.msra.mxu0 0.0
  %1974 = vmatprep.subr.mxu0 0.0
  %1975 = vmatpush1.msra.mxu0 0.0
  %1976 = vmatprep.subr.mxu0 0.0
  %1977 = vmatpush1.msra.mxu0 0.0
  %1978 = vmatprep.subr.mxu0 0.0
  %1979 = vmatpush1.msra.mxu0 0.0
  %1980 = vmatprep.subr.mxu0 0.0
  %1981 = vmatpush1.msra.mxu0 0.0
  %1982 = vmatprep.subr.mxu0 0.0
  %1983 = vmatpush1.msra.mxu0 0.0
  %1984 = vmatprep.subr.mxu0 0.0
  %1985 = vmatpush1.msra.mxu0 0.0
  %1986 = vmatprep.mubr.f32.mxu0 0.0
  %1987 = vmatmul.mubr.f32.gmra.mrb[0].mxu0 %v1850
  %v1988 = vpop.f32.mrb[0].mxu0
  %v1989 = vadd.f32 %v1677, %v1988
  %v1990 = vpop.f32.mrb[0].mxu0
  %v1991 = vadd.f32 %v1679, %v1990
  %1992 = vdwg.mxu0
  %v1993 = vadd.f32 %v1918, %v558
  %v1994 = vadd.f32 %v1920, %v562
  %v1995 = vadd.f32 %v1989, %v566
  %v1996 = vadd.f32 %v1991, %v570
  %v1997 = vxor.u32 %v1993, 2147483648
  %v1998 = vmul.f32 %v1997, 1.442695
  %v1999 = vpow.pop %v1998
  %v2000 = vadd.f32 %v1999, 1.0
  %v2001 = vrcp.pop %v2000
  %v2002 = vmul.f32 1.0, %v2001
  %v2003 = vxor.u32 %v1994, 2147483648
  %v2004 = vmul.f32 %v2003, 1.442695
  %v2005 = vpow.pop %v2004
  %v2006 = vadd.f32 %v2005, 1.0
  %v2007 = vrcp.pop %v2006
  %v2008 = vmul.f32 1.0, %v2007
  %v2009 = vtanh.pop %v1995
  %v2010 = vxor.u32 %v1996, 2147483648
  %v2011 = vmul.f32 %v2010, 1.442695
  %v2012 = vpow.pop %v2011
  %v2013 = vadd.f32 %v2012, 1.0
  %v2014 = vrcp.pop %v2013
  %v2015 = vmul.f32 1.0, %v2014
  %v2016 = vmul.f32 %v2008, %v1536
  %v2017 = vmul.f32 %v2002, %v2009
  %v2018 = vadd.f32 %v2016, %v2017
  %v2019 = vtanh.pop %v2018
  %v2020 = vmul.f32 %v2015, %v2019
  %2021 = vmatprep.subr.mxu0 %v193
  %2022 = vmatpush1.msra.mxu0 %v192
  %2023 = vmatprep.subr.mxu0 %v197
  %2024 = vmatpush1.msra.mxu0 %v196
  %2025 = vmatprep.subr.mxu0 %v201
  %2026 = vmatpush1.msra.mxu0 %v200
  %2027 = vmatprep.subr.mxu0 %v205
  %2028 = vmatpush1.msra.mxu0 %v204
  %2029 = vmatprep.subr.mxu0 %v209
  %2030 = vmatpush1.msra.mxu0 %v208
  %2031 = vmatprep.subr.mxu0 %v213
  %2032 = vmatpush1.msra.mxu0 %v212
  %2033 = vmatprep.subr.mxu0 %v217
  %2034 = vmatpush1.msra.mxu0 %v216
  %2035 = vmatprep.subr.mxu0 %v221
  %2036 = vmatpush1.msra.mxu0 %v220
  %2037 = vmatprep.subr.mxu0 %v225
  %2038 = vmatpush1.msra.mxu0 %v224
  %2039 = vmatprep.subr.mxu0 %v229
  %2040 = vmatpush1.msra.mxu0 %v228
  %2041 = vmatprep.subr.mxu0 %v233
  %2042 = vmatpush1.msra.mxu0 %v232
  %2043 = vmatprep.subr.mxu0 %v237
  %2044 = vmatpush1.msra.mxu0 %v236
  %2045 = vmatprep.subr.mxu0 %v241
  %2046 = vmatpush1.msra.mxu0 %v240
  %2047 = vmatprep.subr.mxu0 %v245
  %2048 = vmatpush1.msra.mxu0 %v244
  %2049 = vmatprep.subr.mxu0 %v249
  %2050 = vmatpush1.msra.mxu0 %v248
  %2051 = vmatprep.subr.mxu0 %v253
  %2052 = vmatpush1.msra.mxu0 %v252
  %2053 = vmatprep.subr.mxu0 0.0
  %2054 = vmatpush1.msra.mxu0 0.0
  %2055 = vmatprep.subr.mxu0 0.0
  %2056 = vmatpush1.msra.mxu0 0.0
  %2057 = vmatprep.subr.mxu0 0.0
  %2058 = vmatpush1.msra.mxu0 0.0
  %2059 = vmatprep.subr.mxu0 0.0
  %2060 = vmatpush1.msra.mxu0 0.0
  %2061 = vmatprep.subr.mxu0 0.0
  %2062 = vmatpush1.msra.mxu0 0.0
  %2063 = vmatprep.subr.mxu0 0.0
  %2064 = vmatpush1.msra.mxu0 0.0
  %2065 = vmatprep.subr.mxu0 0.0
  %2066 = vmatpush1.msra.mxu0 0.0
  %2067 = vmatprep.subr.mxu0 0.0
  %2068 = vmatpush1.msra.mxu0 0.0
  %2069 = vmatprep.subr.mxu0 0.0
  %2070 = vmatpush1.msra.mxu0 0.0
  %2071 = vmatprep.subr.mxu0 0.0
  %2072 = vmatpush1.msra.mxu0 0.0
  %2073 = vmatprep.subr.mxu0 0.0
  %2074 = vmatpush1.msra.mxu0 0.0
  %2075 = vmatprep.subr.mxu0 0.0
  %2076 = vmatpush1.msra.mxu0 0.0
  %2077 = vmatprep.subr.mxu0 0.0
  %2078 = vmatpush1.msra.mxu0 0.0
  %2079 = vmatprep.subr.mxu0 0.0
  %2080 = vmatpush1.msra.mxu0 0.0
  %2081 = vmatprep.subr.mxu0 0.0
  %2082 = vmatpush1.msra.mxu0 0.0
  %2083 = vmatprep.subr.mxu0 0.0
  %2084 = vmatpush1.msra.mxu0 0.0
  %2085 = vmatprep.mubr.f32.mxu0 0.0
  %2086 = vmatmul.mubr.f32.gmra.mrb[0].mxu0 %v2020
  %v2087 = vpop.f32.mrb[0].mxu0
  %v2088 = vadd.f32 0.0, %v2087
  %v2089 = vpop.f32.mrb[0].mxu0
  %v2090 = vadd.f32 0.0, %v2089
  %2091 = vdwg.mxu0
  %2092 = vmatprep.subr.mxu0 %v195
  %2093 = vmatpush1.msra.mxu0 %v194
  %2094 = vmatprep.subr.mxu0 %v199
  %2095 = vmatpush1.msra.mxu0 %v198
  %2096 = vmatprep.subr.mxu0 %v203
  %2097 = vmatpush1.msra.mxu0 %v202
  %2098 = vmatprep.subr.mxu0 %v207
  %2099 = vmatpush1.msra.mxu0 %v206
  %2100 = vmatprep.subr.mxu0 %v211
  %2101 = vmatpush1.msra.mxu0 %v210
  %2102 = vmatprep.subr.mxu0 %v215
  %2103 = vmatpush1.msra.mxu0 %v214
  %2104 = vmatprep.subr.mxu0 %v219
  %2105 = vmatpush1.msra.mxu0 %v218
  %2106 = vmatprep.subr.mxu0 %v223
  %2107 = vmatpush1.msra.mxu0 %v222
  %2108 = vmatprep.subr.mxu0 %v227
  %2109 = vmatpush1.msra.mxu0 %v226
  %2110 = vmatprep.subr.mxu0 %v231
  %2111 = vmatpush1.msra.mxu0 %v230
  %2112 = vmatprep.subr.mxu0 %v235
  %2113 = vmatpush1.msra.mxu0 %v234
  %2114 = vmatprep.subr.mxu0 %v239
  %2115 = vmatpush1.msra.mxu0 %v238
  %2116 = vmatprep.subr.mxu0 %v243
  %2117 = vmatpush1.msra.mxu0 %v242
  %2118 = vmatprep.subr.mxu0 %v247
  %2119 = vmatpush1.msra.mxu0 %v246
  %2120 = vmatprep.subr.mxu0 %v251
  %2121 = vmatpush1.msra.mxu0 %v250
  %2122 = vmatprep.subr.mxu0 %v255
  %2123 = vmatpush1.msra.mxu0 %v254
  %2124 = vmatprep.subr.mxu0 0.0
  %2125 = vmatpush1.msra.mxu0 0.0
  %2126 = vmatprep.subr.mxu0 0.0
  %2127 = vmatpush1.msra.mxu0 0.0
  %2128 = vmatprep.subr.mxu0 0.0
  %2129 = vmatpush1.msra.mxu0 0.0
  %2130 = vmatprep.subr.mxu0 0.0
  %2131 = vmatpush1.msra.mxu0 0.0
  %2132 = vmatprep.subr.mxu0 0.0
  %2133 = vmatpush1.msra.mxu0 0.0
  %2134 = vmatprep.subr.mxu0 0.0
  %2135 = vmatpush1.msra.mxu0 0.0
  %2136 = vmatprep.subr.mxu0 0.0
  %2137 = vmatpush1.msra.mxu0 0.0
  %2138 = vmatprep.subr.mxu0 0.0
  %2139 = vmatpush1.msra.mxu0 0.0
  %2140 = vmatprep.subr.mxu0 0.0
  %2141 = vmatpush1.msra.mxu0 0.0
  %2142 = vmatprep.subr.mxu0 0.0
  %2143 = vmatpush1.msra.mxu0 0.0
  %2144 = vmatprep.subr.mxu0 0.0
  %2145 = vmatpush1.msra.mxu0 0.0
  %2146 = vmatprep.subr.mxu0 0.0
  %2147 = vmatpush1.msra.mxu0 0.0
  %2148 = vmatprep.subr.mxu0 0.0
  %2149 = vmatpush1.msra.mxu0 0.0
  %2150 = vmatprep.subr.mxu0 0.0
  %2151 = vmatpush1.msra.mxu0 0.0
  %2152 = vmatprep.subr.mxu0 0.0
  %2153 = vmatpush1.msra.mxu0 0.0
  %2154 = vmatprep.subr.mxu0 0.0
  %2155 = vmatpush1.msra.mxu0 0.0
  %2156 = vmatprep.mubr.f32.mxu0 0.0
  %2157 = vmatmul.mubr.f32.gmra.mrb[0].mxu0 %v2020
  %v2158 = vpop.f32.mrb[0].mxu0
  %v2159 = vadd.f32 0.0, %v2158
  %v2160 = vpop.f32.mrb[0].mxu0
  %v2161 = vadd.f32 0.0, %v2160
  %2162 = vdwg.mxu0
  %2163 = vmatprep.subr.mxu0 %v65
  %2164 = vmatpush1.msra.mxu0 %v64
  %2165 = vmatprep.subr.mxu0 %v69
  %2166 = vmatpush1.msra.mxu0 %v68
  %2167 = vmatprep.subr.mxu0 %v73
  %2168 = vmatpush1.msra.mxu0 %v72
  %2169 = vmatprep.subr.mxu0 %v77
  %2170 = vmatpush1.msra.mxu0 %v76
  %2171 = vmatprep.subr.mxu0 %v81
  %2172 = vmatpush1.msra.mxu0 %v80
  %2173 = vmatprep.subr.mxu0 %v85
  %2174 = vmatpush1.msra.mxu0 %v84
  %2175 = vmatprep.subr.mxu0 %v89
  %2176 = vmatpush1.msra.mxu0 %v88
  %2177 = vmatprep.subr.mxu0 %v93
  %2178 = vmatpush1.msra.mxu0 %v92
  %2179 = vmatprep.subr.mxu0 %v97
  %2180 = vmatpush1.msra.mxu0 %v96
  %2181 = vmatprep.subr.mxu0 %v101
  %2182 = vmatpush1.msra.mxu0 %v100
  %2183 = vmatprep.subr.mxu0 %v105
  %2184 = vmatpush1.msra.mxu0 %v104
  %2185 = vmatprep.subr.mxu0 %v109
  %2186 = vmatpush1.msra.mxu0 %v108
  %2187 = vmatprep.subr.mxu0 %v113
  %2188 = vmatpush1.msra.mxu0 %v112
  %2189 = vmatprep.subr.mxu0 %v117
  %2190 = vmatpush1.msra.mxu0 %v116
  %2191 = vmatprep.subr.mxu0 %v121
  %2192 = vmatpush1.msra.mxu0 %v120
  %2193 = vmatprep.subr.mxu0 %v125
  %2194 = vmatpush1.msra.mxu0 %v124
  %2195 = vmatprep.subr.mxu0 0.0
  %2196 = vmatpush1.msra.mxu0 0.0
  %2197 = vmatprep.subr.mxu0 0.0
  %2198 = vmatpush1.msra.mxu0 0.0
  %2199 = vmatprep.subr.mxu0 0.0
  %2200 = vmatpush1.msra.mxu0 0.0
  %2201 = vmatprep.subr.mxu0 0.0
  %2202 = vmatpush1.msra.mxu0 0.0
  %2203 = vmatprep.subr.mxu0 0.0
  %2204 = vmatpush1.msra.mxu0 0.0
  %2205 = vmatprep.subr.mxu0 0.0
  %2206 = vmatpush1.msra.mxu0 0.0
  %2207 = vmatprep.subr.mxu0 0.0
  %2208 = vmatpush1.msra.mxu0 0.0
  %2209 = vmatprep.subr.mxu0 0.0
  %2210 = vmatpush1.msra.mxu0 0.0
  %2211 = vmatprep.subr.mxu0 0.0
  %2212 = vmatpush1.msra.mxu0 0.0
  %2213 = vmatprep.subr.mxu0 0.0
  %2214 = vmatpush1.msra.mxu0 0.0
  %2215 = vmatprep.subr.mxu0 0.0
  %2216 = vmatpush1.msra.mxu0 0.0
  %2217 = vmatprep.subr.mxu0 0.0
  %2218 = vmatpush1.msra.mxu0 0.0
  %2219 = vmatprep.subr.mxu0 0.0
  %2220 = vmatpush1.msra.mxu0 0.0
  %2221 = vmatprep.subr.mxu0 0.0
  %2222 = vmatpush1.msra.mxu0 0.0
  %2223 = vmatprep.subr.mxu0 0.0
  %2224 = vmatpush1.msra.mxu0 0.0
  %2225 = vmatprep.subr.mxu0 0.0
  %2226 = vmatpush1.msra.mxu0 0.0
  %2227 = vmatprep.mubr.f32.mxu0 0.0
  %2228 = vmatmul.mubr.f32.gmra.mrb[0].mxu0 %v1850
  %v2229 = vpop.f32.mrb[0].mxu0
  %v2230 = vadd.f32 0.0, %v2229
  %v2231 = vpop.f32.mrb[0].mxu0
  %v2232 = vadd.f32 0.0, %v2231
  %2233 = vdwg.mxu0
  %2234 = vmatprep.subr.mxu0 %v67
  %2235 = vmatpush1.msra.mxu0 %v66
  %2236 = vmatprep.subr.mxu0 %v71
  %2237 = vmatpush1.msra.mxu0 %v70
  %2238 = vmatprep.subr.mxu0 %v75
  %2239 = vmatpush1.msra.mxu0 %v74
  %2240 = vmatprep.subr.mxu0 %v79
  %2241 = vmatpush1.msra.mxu0 %v78
  %2242 = vmatprep.subr.mxu0 %v83
  %2243 = vmatpush1.msra.mxu0 %v82
  %2244 = vmatprep.subr.mxu0 %v87
  %2245 = vmatpush1.msra.mxu0 %v86
  %2246 = vmatprep.subr.mxu0 %v91
  %2247 = vmatpush1.msra.mxu0 %v90
  %2248 = vmatprep.subr.mxu0 %v95
  %2249 = vmatpush1.msra.mxu0 %v94
  %2250 = vmatprep.subr.mxu0 %v99
  %2251 = vmatpush1.msra.mxu0 %v98
  %2252 = vmatprep.subr.mxu0 %v103
  %2253 = vmatpush1.msra.mxu0 %v102
  %2254 = vmatprep.subr.mxu0 %v107
  %2255 = vmatpush1.msra.mxu0 %v106
  %2256 = vmatprep.subr.mxu0 %v111
  %2257 = vmatpush1.msra.mxu0 %v110
  %2258 = vmatprep.subr.mxu0 %v115
  %2259 = vmatpush1.msra.mxu0 %v114
  %2260 = vmatprep.subr.mxu0 %v119
  %2261 = vmatpush1.msra.mxu0 %v118
  %2262 = vmatprep.subr.mxu0 %v123
  %2263 = vmatpush1.msra.mxu0 %v122
  %2264 = vmatprep.subr.mxu0 %v127
  %2265 = vmatpush1.msra.mxu0 %v126
  %2266 = vmatprep.subr.mxu0 0.0
  %2267 = vmatpush1.msra.mxu0 0.0
  %2268 = vmatprep.subr.mxu0 0.0
  %2269 = vmatpush1.msra.mxu0 0.0
  %2270 = vmatprep.subr.mxu0 0.0
  %2271 = vmatpush1.msra.mxu0 0.0
  %2272 = vmatprep.subr.mxu0 0.0
  %2273 = vmatpush1.msra.mxu0 0.0
  %2274 = vmatprep.subr.mxu0 0.0
  %2275 = vmatpush1.msra.mxu0 0.0
  %2276 = vmatprep.subr.mxu0 0.0
  %2277 = vmatpush1.msra.mxu0 0.0
  %2278 = vmatprep.subr.mxu0 0.0
  %2279 = vmatpush1.msra.mxu0 0.0
  %2280 = vmatprep.subr.mxu0 0.0
  %2281 = vmatpush1.msra.mxu0 0.0
  %2282 = vmatprep.subr.mxu0 0.0
  %2283 = vmatpush1.msra.mxu0 0.0
  %2284 = vmatprep.subr.mxu0 0.0
  %2285 = vmatpush1.msra.mxu0 0.0
  %2286 = vmatprep.subr.mxu0 0.0
  %2287 = vmatpush1.msra.mxu0 0.0
  %2288 = vmatprep.subr.mxu0 0.0
  %2289 = vmatpush1.msra.mxu0 0.0
  %2290 = vmatprep.subr.mxu0 0.0
  %2291 = vmatpush1.msra.mxu0 0.0
  %2292 = vmatprep.subr.mxu0 0.0
  %2293 = vmatpush1.msra.mxu0 0.0
  %2294 = vmatprep.subr.mxu0 0.0
  %2295 = vmatpush1.msra.mxu0 0.0
  %2296 = vmatprep.subr.mxu0 0.0
  %2297 = vmatpush1.msra.mxu0 0.0
  %2298 = vmatprep.mubr.f32.mxu0 0.0
  %2299 = vmatmul.mubr.f32.gmra.mrb[0].mxu0 %v1850
  %v2300 = vpop.f32.mrb[0].mxu0
  %v2301 = vadd.f32 0.0, %v2300
  %v2302 = vpop.f32.mrb[0].mxu0
  %v2303 = vadd.f32 0.0, %v2302
  %2304 = vdwg.mxu0
  %v2305 = vadd.f32 %v412, %v2230
  %v2306 = vadd.f32 %v414, %v2232
  %v2307 = vadd.f32 %v525, %v2301
  %v2308 = vadd.f32 %v527, %v2303
  %v2309 = vxor.u32 %v2305, 2147483648
  %v2310 = vmul.f32 %v2309, 1.442695
  %v2311 = vpow.pop %v2310
  %v2312 = vadd.f32 %v2311, 1.0
  %v2313 = vrcp.pop %v2312
  %v2314 = vmul.f32 1.0, %v2313
  %v2315 = vxor.u32 %v2306, 2147483648
  %v2316 = vmul.f32 %v2315, 1.442695
  %v2317 = vpow.pop %v2316
  %v2318 = vadd.f32 %v2317, 1.0
  %v2319 = vrcp.pop %v2318
  %v2320 = vmul.f32 1.0, %v2319
  %v2321 = vtanh.pop %v2307
  %v2322 = vxor.u32 %v2308, 2147483648
  %v2323 = vmul.f32 %v2322, 1.442695
  %v2324 = vpow.pop %v2323
  %v2325 = vadd.f32 %v2324, 1.0
  %v2326 = vrcp.pop %v2325
  %v2327 = vmul.f32 1.0, %v2326
  %v2328 = vmul.f32 %v2320, %v1848
  %v2329 = vmul.f32 %v2314, %v2321
  %v2330 = vadd.f32 %v2328, %v2329
  %v2331 = vtanh.pop %v2330
  %v2332 = vmul.f32 %v2327, %v2331
  %2333 = vmatprep.subr.mxu0 %v129
  %2334 = vmatpush1.msra.mxu0 %v128
  %2335 = vmatprep.subr.mxu0 %v133
  %2336 = vmatpush1.msra.mxu0 %v132
  %2337 = vmatprep.subr.mxu0 %v137
  %2338 = vmatpush1.msra.mxu0 %v136
  %2339 = vmatprep.subr.mxu0 %v141
  %2340 = vmatpush1.msra.mxu0 %v140
  %2341 = vmatprep.subr.mxu0 %v145
  %2342 = vmatpush1.msra.mxu0 %v144
  %2343 = vmatprep.subr.mxu0 %v149
  %2344 = vmatpush1.msra.mxu0 %v148
  %2345 = vmatprep.subr.mxu0 %v153
  %2346 = vmatpush1.msra.mxu0 %v152
  %2347 = vmatprep.subr.mxu0 %v157
  %2348 = vmatpush1.msra.mxu0 %v156
  %2349 = vmatprep.subr.mxu0 %v161
  %2350 = vmatpush1.msra.mxu0 %v160
  %2351 = vmatprep.subr.mxu0 %v165
  %2352 = vmatpush1.msra.mxu0 %v164
  %2353 = vmatprep.subr.mxu0 %v169
  %2354 = vmatpush1.msra.mxu0 %v168
  %2355 = vmatprep.subr.mxu0 %v173
  %2356 = vmatpush1.msra.mxu0 %v172
  %2357 = vmatprep.subr.mxu0 %v177
  %2358 = vmatpush1.msra.mxu0 %v176
  %2359 = vmatprep.subr.mxu0 %v181
  %2360 = vmatpush1.msra.mxu0 %v180
  %2361 = vmatprep.subr.mxu0 %v185
  %2362 = vmatpush1.msra.mxu0 %v184
  %2363 = vmatprep.subr.mxu0 %v189
  %2364 = vmatpush1.msra.mxu0 %v188
  %2365 = vmatprep.subr.mxu0 0.0
  %2366 = vmatpush1.msra.mxu0 0.0
  %2367 = vmatprep.subr.mxu0 0.0
  %2368 = vmatpush1.msra.mxu0 0.0
  %2369 = vmatprep.subr.mxu0 0.0
  %2370 = vmatpush1.msra.mxu0 0.0
  %2371 = vmatprep.subr.mxu0 0.0
  %2372 = vmatpush1.msra.mxu0 0.0
  %2373 = vmatprep.subr.mxu0 0.0
  %2374 = vmatpush1.msra.mxu0 0.0
  %2375 = vmatprep.subr.mxu0 0.0
  %2376 = vmatpush1.msra.mxu0 0.0
  %2377 = vmatprep.subr.mxu0 0.0
  %2378 = vmatpush1.msra.mxu0 0.0
  %2379 = vmatprep.subr.mxu0 0.0
  %2380 = vmatpush1.msra.mxu0 0.0
  %2381 = vmatprep.subr.mxu0 0.0
  %2382 = vmatpush1.msra.mxu0 0.0
  %2383 = vmatprep.subr.mxu0 0.0
  %2384 = vmatpush1.msra.mxu0 0.0
  %2385 = vmatprep.subr.mxu0 0.0
  %2386 = vmatpush1.msra.mxu0 0.0
  %2387 = vmatprep.subr.mxu0 0.0
  %2388 = vmatpush1.msra.mxu0 0.0
  %2389 = vmatprep.subr.mxu0 0.0
  %2390 = vmatpush1.msra.mxu0 0.0
  %2391 = vmatprep.subr.mxu0 0.0
  %2392 = vmatpush1.msra.mxu0 0.0
  %2393 = vmatprep.subr.mxu0 0.0
  %2394 = vmatpush1.msra.mxu0 0.0
  %2395 = vmatprep.subr.mxu0 0.0
  %2396 = vmatpush1.msra.mxu0 0.0
  %2397 = vmatprep.mubr.f32.mxu0 0.0
  %2398 = vmatmul.mubr.f32.gmra.mrb[0].mxu0 %v2332
  %v2399 = vpop.f32.mrb[0].mxu0
  %v2400 = vadd.f32 %v2088, %v2399
  %v2401 = vpop.f32.mrb[0].mxu0
  %v2402 = vadd.f32 %v2090, %v2401
  %2403 = vdwg.mxu0
  %2404 = vmatprep.subr.mxu0 %v131
  %2405 = vmatpush1.msra.mxu0 %v130
  %2406 = vmatprep.subr.mxu0 %v135
  %2407 = vmatpush1.msra.mxu0 %v134
  %2408 = vmatprep.subr.mxu0 %v139
  %2409 = vmatpush1.msra.mxu0 %v138
  %2410 = vmatprep.subr.mxu0 %v143
  %2411 = vmatpush1.msra.mxu0 %v142
  %2412 = vmatprep.subr.mxu0 %v147
  %2413 = vmatpush1.msra.mxu0 %v146
  %2414 = vmatprep.subr.mxu0 %v151
  %2415 = vmatpush1.msra.mxu0 %v150
  %2416 = vmatprep.subr.mxu0 %v155
  %2417 = vmatpush1.msra.mxu0 %v154
  %2418 = vmatprep.subr.mxu0 %v159
  %2419 = vmatpush1.msra.mxu0 %v158
  %2420 = vmatprep.subr.mxu0 %v163
  %2421 = vmatpush1.msra.mxu0 %v162
  %2422 = vmatprep.subr.mxu0 %v167
  %2423 = vmatpush1.msra.mxu0 %v166
  %2424 = vmatprep.subr.mxu0 %v171
  %2425 = vmatpush1.msra.mxu0 %v170
  %2426 = vmatprep.subr.mxu0 %v175
  %2427 = vmatpush1.msra.mxu0 %v174
  %2428 = vmatprep.subr.mxu0 %v179
  %2429 = vmatpush1.msra.mxu0 %v178
  %2430 = vmatprep.subr.mxu0 %v183
  %2431 = vmatpush1.msra.mxu0 %v182
  %2432 = vmatprep.subr.mxu0 %v187
  %2433 = vmatpush1.msra.mxu0 %v186
  %2434 = vmatprep.subr.mxu0 %v191
  %2435 = vmatpush1.msra.mxu0 %v190
  %2436 = vmatprep.subr.mxu0 0.0
  %2437 = vmatpush1.msra.mxu0 0.0
  %2438 = vmatprep.subr.mxu0 0.0
  %2439 = vmatpush1.msra.mxu0 0.0
  %2440 = vmatprep.subr.mxu0 0.0
  %2441 = vmatpush1.msra.mxu0 0.0
  %2442 = vmatprep.subr.mxu0 0.0
  %2443 = vmatpush1.msra.mxu0 0.0
  %2444 = vmatprep.subr.mxu0 0.0
  %2445 = vmatpush1.msra.mxu0 0.0
  %2446 = vmatprep.subr.mxu0 0.0
  %2447 = vmatpush1.msra.mxu0 0.0
  %2448 = vmatprep.subr.mxu0 0.0
  %2449 = vmatpush1.msra.mxu0 0.0
  %2450 = vmatprep.subr.mxu0 0.0
  %2451 = vmatpush1.msra.mxu0 0.0
  %2452 = vmatprep.subr.mxu0 0.0
  %2453 = vmatpush1.msra.mxu0 0.0
  %2454 = vmatprep.subr.mxu0 0.0
  %2455 = vmatpush1.msra.mxu0 0.0
  %2456 = vmatprep.subr.mxu0 0.0
  %2457 = vmatpush1.msra.mxu0 0.0
  %2458 = vmatprep.subr.mxu0 0.0
  %2459 = vmatpush1.msra.mxu0 0.0
  %2460 = vmatprep.subr.mxu0 0.0
  %2461 = vmatpush1.msra.mxu0 0.0
  %2462 = vmatprep.subr.mxu0 0.0
  %2463 = vmatpush1.msra.mxu0 0.0
  %2464 = vmatprep.subr.mxu0 0.0
  %2465 = vmatpush1.msra.mxu0 0.0
  %2466 = vmatprep.subr.mxu0 0.0
  %2467 = vmatpush1.msra.mxu0 0.0
  %2468 = vmatprep.mubr.f32.mxu0 0.0
  %2469 = vmatmul.mubr.f32.gmra.mrb[0].mxu0 %v2332
  %v2470 = vpop.f32.mrb[0].mxu0
  %v2471 = vadd.f32 %v2159, %v2470
  %v2472 = vpop.f32.mrb[0].mxu0
  %v2473 = vadd.f32 %v2161, %v2472
  %2474 = vdwg.mxu0
  %v2475 = vadd.f32 %v2400, %v558
  %v2476 = vadd.f32 %v2402, %v562
  %v2477 = vadd.f32 %v2471, %v566
  %v2478 = vadd.f32 %v2473, %v570
  %v2479 = vxor.u32 %v2475, 2147483648
  %v2480 = vmul.f32 %v2479, 1.442695
  %v2481 = vpow.pop %v2480
  %v2482 = vadd.f32 %v2481, 1.0
  %v2483 = vrcp.pop %v2482
  %v2484 = vmul.f32 1.0, %v2483
  %v2485 = vxor.u32 %v2476, 2147483648
  %v2486 = vmul.f32 %v2485, 1.442695
  %v2487 = vpow.pop %v2486
  %v2488 = vadd.f32 %v2487, 1.0
  %v2489 = vrcp.pop %v2488
  %v2490 = vmul.f32 1.0, %v2489
  %v2491 = vtanh.pop %v2477
  %v2492 = vxor.u32 %v2478, 2147483648
  %v2493 = vmul.f32 %v2492, 1.442695
  %v2494 = vpow.pop %v2493
  %v2495 = vadd.f32 %v2494, 1.0
  %v2496 = vrcp.pop %v2495
  %v2497 = vmul.f32 1.0, %v2496
  %v2498 = vmul.f32 %v2490, %v2018
  %v2499 = vmul.f32 %v2484, %v2491
  %v2500 = vadd.f32 %v2498, %v2499
  %v2501 = vtanh.pop %v2500
  %v2502 = vmul.f32 %v2497, %v2501
  %2503 = vmatprep.subr.mxu0 %v193
  %2504 = vmatpush1.msra.mxu0 %v192
  %2505 = vmatprep.subr.mxu0 %v197
  %2506 = vmatpush1.msra.mxu0 %v196
  %2507 = vmatprep.subr.mxu0 %v201
  %2508 = vmatpush1.msra.mxu0 %v200
  %2509 = vmatprep.subr.mxu0 %v205
  %2510 = vmatpush1.msra.mxu0 %v204
  %2511 = vmatprep.subr.mxu0 %v209
  %2512 = vmatpush1.msra.mxu0 %v208
  %2513 = vmatprep.subr.mxu0 %v213
  %2514 = vmatpush1.msra.mxu0 %v212
  %2515 = vmatprep.subr.mxu0 %v217
  %2516 = vmatpush1.msra.mxu0 %v216
  %2517 = vmatprep.subr.mxu0 %v221
  %2518 = vmatpush1.msra.mxu0 %v220
  %2519 = vmatprep.subr.mxu0 %v225
  %2520 = vmatpush1.msra.mxu0 %v224
  %2521 = vmatprep.subr.mxu0 %v229
  %2522 = vmatpush1.msra.mxu0 %v228
  %2523 = vmatprep.subr.mxu0 %v233
  %2524 = vmatpush1.msra.mxu0 %v232
  %2525 = vmatprep.subr.mxu0 %v237
  %2526 = vmatpush1.msra.mxu0 %v236
  %2527 = vmatprep.subr.mxu0 %v241
  %2528 = vmatpush1.msra.mxu0 %v240
  %2529 = vmatprep.subr.mxu0 %v245
  %2530 = vmatpush1.msra.mxu0 %v244
  %2531 = vmatprep.subr.mxu0 %v249
  %2532 = vmatpush1.msra.mxu0 %v248
  %2533 = vmatprep.subr.mxu0 %v253
  %2534 = vmatpush1.msra.mxu0 %v252
  %2535 = vmatprep.subr.mxu0 0.0
  %2536 = vmatpush1.msra.mxu0 0.0
  %2537 = vmatprep.subr.mxu0 0.0
  %2538 = vmatpush1.msra.mxu0 0.0
  %2539 = vmatprep.subr.mxu0 0.0
  %2540 = vmatpush1.msra.mxu0 0.0
  %2541 = vmatprep.subr.mxu0 0.0
  %2542 = vmatpush1.msra.mxu0 0.0
  %2543 = vmatprep.subr.mxu0 0.0
  %2544 = vmatpush1.msra.mxu0 0.0
  %2545 = vmatprep.subr.mxu0 0.0
  %2546 = vmatpush1.msra.mxu0 0.0
  %2547 = vmatprep.subr.mxu0 0.0
  %2548 = vmatpush1.msra.mxu0 0.0
  %2549 = vmatprep.subr.mxu0 0.0
  %2550 = vmatpush1.msra.mxu0 0.0
  %2551 = vmatprep.subr.mxu0 0.0
  %2552 = vmatpush1.msra.mxu0 0.0
  %2553 = vmatprep.subr.mxu0 0.0
  %2554 = vmatpush1.msra.mxu0 0.0
  %2555 = vmatprep.subr.mxu0 0.0
  %2556 = vmatpush1.msra.mxu0 0.0
  %2557 = vmatprep.subr.mxu0 0.0
  %2558 = vmatpush1.msra.mxu0 0.0
  %2559 = vmatprep.subr.mxu0 0.0
  %2560 = vmatpush1.msra.mxu0 0.0
  %2561 = vmatprep.subr.mxu0 0.0
  %2562 = vmatpush1.msra.mxu0 0.0
  %2563 = vmatprep.subr.mxu0 0.0
  %2564 = vmatpush1.msra.mxu0 0.0
  %2565 = vmatprep.subr.mxu0 0.0
  %2566 = vmatpush1.msra.mxu0 0.0
  %2567 = vmatprep.mubr.f32.mxu0 0.0
  %2568 = vmatmul.mubr.f32.gmra.mrb[0].mxu0 %v2502
  %v2569 = vpop.f32.mrb[0].mxu0
  %v2570 = vadd.f32 0.0, %v2569
  %v2571 = vpop.f32.mrb[0].mxu0
  %v2572 = vadd.f32 0.0, %v2571
  %2573 = vdwg.mxu0
  %2574 = vmatprep.subr.mxu0 %v195
  %2575 = vmatpush1.msra.mxu0 %v194
  %2576 = vmatprep.subr.mxu0 %v199
  %2577 = vmatpush1.msra.mxu0 %v198
  %2578 = vmatprep.subr.mxu0 %v203
  %2579 = vmatpush1.msra.mxu0 %v202
  %2580 = vmatprep.subr.mxu0 %v207
  %2581 = vmatpush1.msra.mxu0 %v206
  %2582 = vmatprep.subr.mxu0 %v211
  %2583 = vmatpush1.msra.mxu0 %v210
  %2584 = vmatprep.subr.mxu0 %v215
  %2585 = vmatpush1.msra.mxu0 %v214
  %2586 = vmatprep.subr.mxu0 %v219
  %2587 = vmatpush1.msra.mxu0 %v218
  %2588 = vmatprep.subr.mxu0 %v223
  %2589 = vmatpush1.msra.mxu0 %v222
  %2590 = vmatprep.subr.mxu0 %v227
  %2591 = vmatpush1.msra.mxu0 %v226
  %2592 = vmatprep.subr.mxu0 %v231
  %2593 = vmatpush1.msra.mxu0 %v230
  %2594 = vmatprep.subr.mxu0 %v235
  %2595 = vmatpush1.msra.mxu0 %v234
  %2596 = vmatprep.subr.mxu0 %v239
  %2597 = vmatpush1.msra.mxu0 %v238
  %2598 = vmatprep.subr.mxu0 %v243
  %2599 = vmatpush1.msra.mxu0 %v242
  %2600 = vmatprep.subr.mxu0 %v247
  %2601 = vmatpush1.msra.mxu0 %v246
  %2602 = vmatprep.subr.mxu0 %v251
  %2603 = vmatpush1.msra.mxu0 %v250
  %2604 = vmatprep.subr.mxu0 %v255
  %2605 = vmatpush1.msra.mxu0 %v254
  %2606 = vmatprep.subr.mxu0 0.0
  %2607 = vmatpush1.msra.mxu0 0.0
  %2608 = vmatprep.subr.mxu0 0.0
  %2609 = vmatpush1.msra.mxu0 0.0
  %2610 = vmatprep.subr.mxu0 0.0
  %2611 = vmatpush1.msra.mxu0 0.0
  %2612 = vmatprep.subr.mxu0 0.0
  %2613 = vmatpush1.msra.mxu0 0.0
  %2614 = vmatprep.subr.mxu0 0.0
  %2615 = vmatpush1.msra.mxu0 0.0
  %2616 = vmatprep.subr.mxu0 0.0
  %2617 = vmatpush1.msra.mxu0 0.0
  %2618 = vmatprep.subr.mxu0 0.0
  %2619 = vmatpush1.msra.mxu0 0.0
  %2620 = vmatprep.subr.mxu0 0.0
  %2621 = vmatpush1.msra.mxu0 0.0
  %2622 = vmatprep.subr.mxu0 0.0
  %2623 = vmatpush1.msra.mxu0 0.0
  %2624 = vmatprep.subr.mxu0 0.0
  %2625 = vmatpush1.msra.mxu0 0.0
  %2626 = vmatprep.subr.mxu0 0.0
  %2627 = vmatpush1.msra.mxu0 0.0
  %2628 = vmatprep.subr.mxu0 0.0
  %2629 = vmatpush1.msra.mxu0 0.0
  %2630 = vmatprep.subr.mxu0 0.0
  %2631 = vmatpush1.msra.mxu0 0.0
  %2632 = vmatprep.subr.mxu0 0.0
  %2633 = vmatpush1.msra.mxu0 0.0
  %2634 = vmatprep.subr.mxu0 0.0
  %2635 = vmatpush1.msra.mxu0 0.0
  %2636 = vmatprep.subr.mxu0 0.0
  %2637 = vmatpush1.msra.mxu0 0.0
  %2638 = vmatprep.mubr.f32.mxu0 0.0
  %2639 = vmatmul.mubr.f32.gmra.mrb[0].mxu0 %v2502
  %v2640 = vpop.f32.mrb[0].mxu0
  %v2641 = vadd.f32 0.0, %v2640
  %v2642 = vpop.f32.mrb[0].mxu0
  %v2643 = vadd.f32 0.0, %v2642
  %2644 = vdwg.mxu0
  %2645 = vmatprep.subr.mxu0 %v65
  %2646 = vmatpush1.msra.mxu0 %v64
  %2647 = vmatprep.subr.mxu0 %v69
  %2648 = vmatpush1.msra.mxu0 %v68
  %2649 = vmatprep.subr.mxu0 %v73
  %2650 = vmatpush1.msra.mxu0 %v72
  %2651 = vmatprep.subr.mxu0 %v77
  %2652 = vmatpush1.msra.mxu0 %v76
  %2653 = vmatprep.subr.mxu0 %v81
  %2654 = vmatpush1.msra.mxu0 %v80
  %2655 = vmatprep.subr.mxu0 %v85
  %2656 = vmatpush1.msra.mxu0 %v84
  %2657 = vmatprep.subr.mxu0 %v89
  %2658 = vmatpush1.msra.mxu0 %v88
  %2659 = vmatprep.subr.mxu0 %v93
  %2660 = vmatpush1.msra.mxu0 %v92
  %2661 = vmatprep.subr.mxu0 %v97
  %2662 = vmatpush1.msra.mxu0 %v96
  %2663 = vmatprep.subr.mxu0 %v101
  %2664 = vmatpush1.msra.mxu0 %v100
  %2665 = vmatprep.subr.mxu0 %v105
  %2666 = vmatpush1.msra.mxu0 %v104
  %2667 = vmatprep.subr.mxu0 %v109
  %2668 = vmatpush1.msra.mxu0 %v108
  %2669 = vmatprep.subr.mxu0 %v113
  %2670 = vmatpush1.msra.mxu0 %v112
  %2671 = vmatprep.subr.mxu0 %v117
  %2672 = vmatpush1.msra.mxu0 %v116
  %2673 = vmatprep.subr.mxu0 %v121
  %2674 = vmatpush1.msra.mxu0 %v120
  %2675 = vmatprep.subr.mxu0 %v125
  %2676 = vmatpush1.msra.mxu0 %v124
  %2677 = vmatprep.subr.mxu0 0.0
  %2678 = vmatpush1.msra.mxu0 0.0
  %2679 = vmatprep.subr.mxu0 0.0
  %2680 = vmatpush1.msra.mxu0 0.0
  %2681 = vmatprep.subr.mxu0 0.0
  %2682 = vmatpush1.msra.mxu0 0.0
  %2683 = vmatprep.subr.mxu0 0.0
  %2684 = vmatpush1.msra.mxu0 0.0
  %2685 = vmatprep.subr.mxu0 0.0
  %2686 = vmatpush1.msra.mxu0 0.0
  %2687 = vmatprep.subr.mxu0 0.0
  %2688 = vmatpush1.msra.mxu0 0.0
  %2689 = vmatprep.subr.mxu0 0.0
  %2690 = vmatpush1.msra.mxu0 0.0
  %2691 = vmatprep.subr.mxu0 0.0
  %2692 = vmatpush1.msra.mxu0 0.0
  %2693 = vmatprep.subr.mxu0 0.0
  %2694 = vmatpush1.msra.mxu0 0.0
  %2695 = vmatprep.subr.mxu0 0.0
  %2696 = vmatpush1.msra.mxu0 0.0
  %2697 = vmatprep.subr.mxu0 0.0
  %2698 = vmatpush1.msra.mxu0 0.0
  %2699 = vmatprep.subr.mxu0 0.0
  %2700 = vmatpush1.msra.mxu0 0.0
  %2701 = vmatprep.subr.mxu0 0.0
  %2702 = vmatpush1.msra.mxu0 0.0
  %2703 = vmatprep.subr.mxu0 0.0
  %2704 = vmatpush1.msra.mxu0 0.0
  %2705 = vmatprep.subr.mxu0 0.0
  %2706 = vmatpush1.msra.mxu0 0.0
  %2707 = vmatprep.subr.mxu0 0.0
  %2708 = vmatpush1.msra.mxu0 0.0
  %2709 = vmatprep.mubr.f32.mxu0 0.0
  %2710 = vmatmul.mubr.f32.gmra.mrb[0].mxu0 %v2332
  %v2711 = vpop.f32.mrb[0].mxu0
  %v2712 = vadd.f32 0.0, %v2711
  %v2713 = vpop.f32.mrb[0].mxu0
  %v2714 = vadd.f32 0.0, %v2713
  %2715 = vdwg.mxu0
  %2716 = vmatprep.subr.mxu0 %v67
  %2717 = vmatpush1.msra.mxu0 %v66
  %2718 = vmatprep.subr.mxu0 %v71
  %2719 = vmatpush1.msra.mxu0 %v70
  %2720 = vmatprep.subr.mxu0 %v75
  %2721 = vmatpush1.msra.mxu0 %v74
  %2722 = vmatprep.subr.mxu0 %v79
  %2723 = vmatpush1.msra.mxu0 %v78
  %2724 = vmatprep.subr.mxu0 %v83
  %2725 = vmatpush1.msra.mxu0 %v82
  %2726 = vmatprep.subr.mxu0 %v87
  %2727 = vmatpush1.msra.mxu0 %v86
  %2728 = vmatprep.subr.mxu0 %v91
  %2729 = vmatpush1.msra.mxu0 %v90
  %2730 = vmatprep.subr.mxu0 %v95
  %2731 = vmatpush1.msra.mxu0 %v94
  %2732 = vmatprep.subr.mxu0 %v99
  %2733 = vmatpush1.msra.mxu0 %v98
  %2734 = vmatprep.subr.mxu0 %v103
  %2735 = vmatpush1.msra.mxu0 %v102
  %2736 = vmatprep.subr.mxu0 %v107
  %2737 = vmatpush1.msra.mxu0 %v106
  %2738 = vmatprep.subr.mxu0 %v111
  %2739 = vmatpush1.msra.mxu0 %v110
  %2740 = vmatprep.subr.mxu0 %v115
  %2741 = vmatpush1.msra.mxu0 %v114
  %2742 = vmatprep.subr.mxu0 %v119
  %2743 = vmatpush1.msra.mxu0 %v118
  %2744 = vmatprep.subr.mxu0 %v123
  %2745 = vmatpush1.msra.mxu0 %v122
  %2746 = vmatprep.subr.mxu0 %v127
  %2747 = vmatpush1.msra.mxu0 %v126
  %2748 = vmatprep.subr.mxu0 0.0
  %2749 = vmatpush1.msra.mxu0 0.0
  %2750 = vmatprep.subr.mxu0 0.0
  %2751 = vmatpush1.msra.mxu0 0.0
  %2752 = vmatprep.subr.mxu0 0.0
  %2753 = vmatpush1.msra.mxu0 0.0
  %2754 = vmatprep.subr.mxu0 0.0
  %2755 = vmatpush1.msra.mxu0 0.0
  %2756 = vmatprep.subr.mxu0 0.0
  %2757 = vmatpush1.msra.mxu0 0.0
  %2758 = vmatprep.subr.mxu0 0.0
  %2759 = vmatpush1.msra.mxu0 0.0
  %2760 = vmatprep.subr.mxu0 0.0
  %2761 = vmatpush1.msra.mxu0 0.0
  %2762 = vmatprep.subr.mxu0 0.0
  %2763 = vmatpush1.msra.mxu0 0.0
  %2764 = vmatprep.subr.mxu0 0.0
  %2765 = vmatpush1.msra.mxu0 0.0
  %2766 = vmatprep.subr.mxu0 0.0
  %2767 = vmatpush1.msra.mxu0 0.0
  %2768 = vmatprep.subr.mxu0 0.0
  %2769 = vmatpush1.msra.mxu0 0.0
  %2770 = vmatprep.subr.mxu0 0.0
  %2771 = vmatpush1.msra.mxu0 0.0
  %2772 = vmatprep.subr.mxu0 0.0
  %2773 = vmatpush1.msra.mxu0 0.0
  %2774 = vmatprep.subr.mxu0 0.0
  %2775 = vmatpush1.msra.mxu0 0.0
  %2776 = vmatprep.subr.mxu0 0.0
  %2777 = vmatpush1.msra.mxu0 0.0
  %2778 = vmatprep.subr.mxu0 0.0
  %2779 = vmatpush1.msra.mxu0 0.0
  %2780 = vmatprep.mubr.f32.mxu0 0.0
  %2781 = vmatmul.mubr.f32.gmra.mrb[0].mxu0 %v2332
  %v2782 = vpop.f32.mrb[0].mxu0
  %v2783 = vadd.f32 0.0, %v2782
  %v2784 = vpop.f32.mrb[0].mxu0
  %v2785 = vadd.f32 0.0, %v2784
  %2786 = vdwg.mxu0
  %v2787 = vadd.f32 %v418, %v2712
  %v2788 = vadd.f32 %v420, %v2714
  %v2789 = vadd.f32 %v531, %v2783
  %v2790 = vadd.f32 %v533, %v2785
  %v2791 = vxor.u32 %v2787, 2147483648
  %v2792 = vmul.f32 %v2791, 1.442695
  %v2793 = vpow.pop %v2792
  %v2794 = vadd.f32 %v2793, 1.0
  %v2795 = vrcp.pop %v2794
  %v2796 = vmul.f32 1.0, %v2795
  %v2797 = vxor.u32 %v2788, 2147483648
  %v2798 = vmul.f32 %v2797, 1.442695
  %v2799 = vpow.pop %v2798
  %v2800 = vadd.f32 %v2799, 1.0
  %v2801 = vrcp.pop %v2800
  %v2802 = vmul.f32 1.0, %v2801
  %v2803 = vtanh.pop %v2789
  %v2804 = vxor.u32 %v2790, 2147483648
  %v2805 = vmul.f32 %v2804, 1.442695
  %v2806 = vpow.pop %v2805
  %v2807 = vadd.f32 %v2806, 1.0
  %v2808 = vrcp.pop %v2807
  %v2809 = vmul.f32 1.0, %v2808
  %v2810 = vmul.f32 %v2802, %v2330
  %v2811 = vmul.f32 %v2796, %v2803
  %v2812 = vadd.f32 %v2810, %v2811
  %v2813 = vtanh.pop %v2812
  %v2814 = vmul.f32 %v2809, %v2813
  %2815 = vmatprep.subr.mxu0 %v129
  %2816 = vmatpush1.msra.mxu0 %v128
  %2817 = vmatprep.subr.mxu0 %v133
  %2818 = vmatpush1.msra.mxu0 %v132
  %2819 = vmatprep.subr.mxu0 %v137
  %2820 = vmatpush1.msra.mxu0 %v136
  %2821 = vmatprep.subr.mxu0 %v141
  %2822 = vmatpush1.msra.mxu0 %v140
  %2823 = vmatprep.subr.mxu0 %v145
  %2824 = vmatpush1.msra.mxu0 %v144
  %2825 = vmatprep.subr.mxu0 %v149
  %2826 = vmatpush1.msra.mxu0 %v148
  %2827 = vmatprep.subr.mxu0 %v153
  %2828 = vmatpush1.msra.mxu0 %v152
  %2829 = vmatprep.subr.mxu0 %v157
  %2830 = vmatpush1.msra.mxu0 %v156
  %2831 = vmatprep.subr.mxu0 %v161
  %2832 = vmatpush1.msra.mxu0 %v160
  %2833 = vmatprep.subr.mxu0 %v165
  %2834 = vmatpush1.msra.mxu0 %v164
  %2835 = vmatprep.subr.mxu0 %v169
  %2836 = vmatpush1.msra.mxu0 %v168
  %2837 = vmatprep.subr.mxu0 %v173
  %2838 = vmatpush1.msra.mxu0 %v172
  %2839 = vmatprep.subr.mxu0 %v177
  %2840 = vmatpush1.msra.mxu0 %v176
  %2841 = vmatprep.subr.mxu0 %v181
  %2842 = vmatpush1.msra.mxu0 %v180
  %2843 = vmatprep.subr.mxu0 %v185
  %2844 = vmatpush1.msra.mxu0 %v184
  %2845 = vmatprep.subr.mxu0 %v189
  %2846 = vmatpush1.msra.mxu0 %v188
  %2847 = vmatprep.subr.mxu0 0.0
  %2848 = vmatpush1.msra.mxu0 0.0
  %2849 = vmatprep.subr.mxu0 0.0
  %2850 = vmatpush1.msra.mxu0 0.0
  %2851 = vmatprep.subr.mxu0 0.0
  %2852 = vmatpush1.msra.mxu0 0.0
  %2853 = vmatprep.subr.mxu0 0.0
  %2854 = vmatpush1.msra.mxu0 0.0
  %2855 = vmatprep.subr.mxu0 0.0
  %2856 = vmatpush1.msra.mxu0 0.0
  %2857 = vmatprep.subr.mxu0 0.0
  %2858 = vmatpush1.msra.mxu0 0.0
  %2859 = vmatprep.subr.mxu0 0.0
  %2860 = vmatpush1.msra.mxu0 0.0
  %2861 = vmatprep.subr.mxu0 0.0
  %2862 = vmatpush1.msra.mxu0 0.0
  %2863 = vmatprep.subr.mxu0 0.0
  %2864 = vmatpush1.msra.mxu0 0.0
  %2865 = vmatprep.subr.mxu0 0.0
  %2866 = vmatpush1.msra.mxu0 0.0
  %2867 = vmatprep.subr.mxu0 0.0
  %2868 = vmatpush1.msra.mxu0 0.0
  %2869 = vmatprep.subr.mxu0 0.0
  %2870 = vmatpush1.msra.mxu0 0.0
  %2871 = vmatprep.subr.mxu0 0.0
  %2872 = vmatpush1.msra.mxu0 0.0
  %2873 = vmatprep.subr.mxu0 0.0
  %2874 = vmatpush1.msra.mxu0 0.0
  %2875 = vmatprep.subr.mxu0 0.0
  %2876 = vmatpush1.msra.mxu0 0.0
  %2877 = vmatprep.subr.mxu0 0.0
  %2878 = vmatpush1.msra.mxu0 0.0
  %2879 = vmatprep.mubr.f32.mxu0 0.0
  %2880 = vmatmul.mubr.f32.gmra.mrb[0].mxu0 %v2814
  %v2881 = vpop.f32.mrb[0].mxu0
  %v2882 = vadd.f32 %v2570, %v2881
  %v2883 = vpop.f32.mrb[0].mxu0
  %v2884 = vadd.f32 %v2572, %v2883
  %2885 = vdwg.mxu0
  %2886 = vmatprep.subr.mxu0 %v131
  %2887 = vmatpush1.msra.mxu0 %v130
  %2888 = vmatprep.subr.mxu0 %v135
  %2889 = vmatpush1.msra.mxu0 %v134
  %2890 = vmatprep.subr.mxu0 %v139
  %2891 = vmatpush1.msra.mxu0 %v138
  %2892 = vmatprep.subr.mxu0 %v143
  %2893 = vmatpush1.msra.mxu0 %v142
  %2894 = vmatprep.subr.mxu0 %v147
  %2895 = vmatpush1.msra.mxu0 %v146
  %2896 = vmatprep.subr.mxu0 %v151
  %2897 = vmatpush1.msra.mxu0 %v150
  %2898 = vmatprep.subr.mxu0 %v155
  %2899 = vmatpush1.msra.mxu0 %v154
  %2900 = vmatprep.subr.mxu0 %v159
  %2901 = vmatpush1.msra.mxu0 %v158
  %2902 = vmatprep.subr.mxu0 %v163
  %2903 = vmatpush1.msra.mxu0 %v162
  %2904 = vmatprep.subr.mxu0 %v167
  %2905 = vmatpush1.msra.mxu0 %v166
  %2906 = vmatprep.subr.mxu0 %v171
  %2907 = vmatpush1.msra.mxu0 %v170
  %2908 = vmatprep.subr.mxu0 %v175
  %2909 = vmatpush1.msra.mxu0 %v174
  %2910 = vmatprep.subr.mxu0 %v179
  %2911 = vmatpush1.msra.mxu0 %v178
  %2912 = vmatprep.subr.mxu0 %v183
  %2913 = vmatpush1.msra.mxu0 %v182
  %2914 = vmatprep.subr.mxu0 %v187
  %2915 = vmatpush1.msra.mxu0 %v186
  %2916 = vmatprep.subr.mxu0 %v191
  %2917 = vmatpush1.msra.mxu0 %v190
  %2918 = vmatprep.subr.mxu0 0.0
  %2919 = vmatpush1.msra.mxu0 0.0
  %2920 = vmatprep.subr.mxu0 0.0
  %2921 = vmatpush1.msra.mxu0 0.0
  %2922 = vmatprep.subr.mxu0 0.0
  %2923 = vmatpush1.msra.mxu0 0.0
  %2924 = vmatprep.subr.mxu0 0.0
  %2925 = vmatpush1.msra.mxu0 0.0
  %2926 = vmatprep.subr.mxu0 0.0
  %2927 = vmatpush1.msra.mxu0 0.0
  %2928 = vmatprep.subr.mxu0 0.0
  %2929 = vmatpush1.msra.mxu0 0.0
  %2930 = vmatprep.subr.mxu0 0.0
  %2931 = vmatpush1.msra.mxu0 0.0
  %2932 = vmatprep.subr.mxu0 0.0
  %2933 = vmatpush1.msra.mxu0 0.0
  %2934 = vmatprep.subr.mxu0 0.0
  %2935 = vmatpush1.msra.mxu0 0.0
  %2936 = vmatprep.subr.mxu0 0.0
  %2937 = vmatpush1.msra.mxu0 0.0
  %2938 = vmatprep.subr.mxu0 0.0
  %2939 = vmatpush1.msra.mxu0 0.0
  %2940 = vmatprep.subr.mxu0 0.0
  %2941 = vmatpush1.msra.mxu0 0.0
  %2942 = vmatprep.subr.mxu0 0.0
  %2943 = vmatpush1.msra.mxu0 0.0
  %2944 = vmatprep.subr.mxu0 0.0
  %2945 = vmatpush1.msra.mxu0 0.0
  %2946 = vmatprep.subr.mxu0 0.0
  %2947 = vmatpush1.msra.mxu0 0.0
  %2948 = vmatprep.subr.mxu0 0.0
  %2949 = vmatpush1.msra.mxu0 0.0
  %2950 = vmatprep.mubr.f32.mxu0 0.0
  %2951 = vmatmul.mubr.f32.gmra.mrb[0].mxu0 %v2814
  %v2952 = vpop.f32.mrb[0].mxu0
  %v2953 = vadd.f32 %v2641, %v2952
  %v2954 = vpop.f32.mrb[0].mxu0
  %v2955 = vadd.f32 %v2643, %v2954
  %2956 = vdwg.mxu0
  %v2957 = vadd.f32 %v2882, %v558
  %v2958 = vadd.f32 %v2884, %v562
  %v2959 = vadd.f32 %v2953, %v566
  %v2960 = vadd.f32 %v2955, %v570
  %v2961 = vxor.u32 %v2957, 2147483648
  %v2962 = vmul.f32 %v2961, 1.442695
  %v2963 = vpow.pop %v2962
  %v2964 = vadd.f32 %v2963, 1.0
  %v2965 = vrcp.pop %v2964
  %v2966 = vmul.f32 1.0, %v2965
  %v2967 = vxor.u32 %v2958, 2147483648
  %v2968 = vmul.f32 %v2967, 1.442695
  %v2969 = vpow.pop %v2968
  %v2970 = vadd.f32 %v2969, 1.0
  %v2971 = vrcp.pop %v2970
  %v2972 = vmul.f32 1.0, %v2971
  %v2973 = vtanh.pop %v2959
  %v2974 = vxor.u32 %v2960, 2147483648
  %v2975 = vmul.f32 %v2974, 1.442695
  %v2976 = vpow.pop %v2975
  %v2977 = vadd.f32 %v2976, 1.0
  %v2978 = vrcp.pop %v2977
  %v2979 = vmul.f32 1.0, %v2978
  %v2980 = vmul.f32 %v2972, %v2500
  %v2981 = vmul.f32 %v2966, %v2973
  %v2982 = vadd.f32 %v2980, %v2981
  %v2983 = vtanh.pop %v2982
  %v2984 = vmul.f32 %v2979, %v2983
  %2985 = vmatprep.subr.mxu0 %v193
  %2986 = vmatpush1.msra.mxu0 %v192
  %2987 = vmatprep.subr.mxu0 %v197
  %2988 = vmatpush1.msra.mxu0 %v196
  %2989 = vmatprep.subr.mxu0 %v201
  %2990 = vmatpush1.msra.mxu0 %v200
  %2991 = vmatprep.subr.mxu0 %v205
  %2992 = vmatpush1.msra.mxu0 %v204
  %2993 = vmatprep.subr.mxu0 %v209
  %2994 = vmatpush1.msra.mxu0 %v208
  %2995 = vmatprep.subr.mxu0 %v213
  %2996 = vmatpush1.msra.mxu0 %v212
  %2997 = vmatprep.subr.mxu0 %v217
  %2998 = vmatpush1.msra.mxu0 %v216
  %2999 = vmatprep.subr.mxu0 %v221
  %3000 = vmatpush1.msra.mxu0 %v220
  %3001 = vmatprep.subr.mxu0 %v225
  %3002 = vmatpush1.msra.mxu0 %v224
  %3003 = vmatprep.subr.mxu0 %v229
  %3004 = vmatpush1.msra.mxu0 %v228
  %3005 = vmatprep.subr.mxu0 %v233
  %3006 = vmatpush1.msra.mxu0 %v232
  %3007 = vmatprep.subr.mxu0 %v237
  %3008 = vmatpush1.msra.mxu0 %v236
  %3009 = vmatprep.subr.mxu0 %v241
  %3010 = vmatpush1.msra.mxu0 %v240
  %3011 = vmatprep.subr.mxu0 %v245
  %3012 = vmatpush1.msra.mxu0 %v244
  %3013 = vmatprep.subr.mxu0 %v249
  %3014 = vmatpush1.msra.mxu0 %v248
  %3015 = vmatprep.subr.mxu0 %v253
  %3016 = vmatpush1.msra.mxu0 %v252
  %3017 = vmatprep.subr.mxu0 0.0
  %3018 = vmatpush1.msra.mxu0 0.0
  %3019 = vmatprep.subr.mxu0 0.0
  %3020 = vmatpush1.msra.mxu0 0.0
  %3021 = vmatprep.subr.mxu0 0.0
  %3022 = vmatpush1.msra.mxu0 0.0
  %3023 = vmatprep.subr.mxu0 0.0
  %3024 = vmatpush1.msra.mxu0 0.0
  %3025 = vmatprep.subr.mxu0 0.0
  %3026 = vmatpush1.msra.mxu0 0.0
  %3027 = vmatprep.subr.mxu0 0.0
  %3028 = vmatpush1.msra.mxu0 0.0
  %3029 = vmatprep.subr.mxu0 0.0
  %3030 = vmatpush1.msra.mxu0 0.0
  %3031 = vmatprep.subr.mxu0 0.0
  %3032 = vmatpush1.msra.mxu0 0.0
  %3033 = vmatprep.subr.mxu0 0.0
  %3034 = vmatpush1.msra.mxu0 0.0
  %3035 = vmatprep.subr.mxu0 0.0
  %3036 = vmatpush1.msra.mxu0 0.0
  %3037 = vmatprep.subr.mxu0 0.0
  %3038 = vmatpush1.msra.mxu0 0.0
  %3039 = vmatprep.subr.mxu0 0.0
  %3040 = vmatpush1.msra.mxu0 0.0
  %3041 = vmatprep.subr.mxu0 0.0
  %3042 = vmatpush1.msra.mxu0 0.0
  %3043 = vmatprep.subr.mxu0 0.0
  %3044 = vmatpush1.msra.mxu0 0.0
  %3045 = vmatprep.subr.mxu0 0.0
  %3046 = vmatpush1.msra.mxu0 0.0
  %3047 = vmatprep.subr.mxu0 0.0
  %3048 = vmatpush1.msra.mxu0 0.0
  %3049 = vmatprep.mubr.f32.mxu0 0.0
  %3050 = vmatmul.mubr.f32.gmra.mrb[0].mxu0 %v2984
  %v3051 = vpop.f32.mrb[0].mxu0
  %v3052 = vadd.f32 0.0, %v3051
  %v3053 = vpop.f32.mrb[0].mxu0
  %v3054 = vadd.f32 0.0, %v3053
  %3055 = vdwg.mxu0
  %3056 = vmatprep.subr.mxu0 %v195
  %3057 = vmatpush1.msra.mxu0 %v194
  %3058 = vmatprep.subr.mxu0 %v199
  %3059 = vmatpush1.msra.mxu0 %v198
  %3060 = vmatprep.subr.mxu0 %v203
  %3061 = vmatpush1.msra.mxu0 %v202
  %3062 = vmatprep.subr.mxu0 %v207
  %3063 = vmatpush1.msra.mxu0 %v206
  %3064 = vmatprep.subr.mxu0 %v211
  %3065 = vmatpush1.msra.mxu0 %v210
  %3066 = vmatprep.subr.mxu0 %v215
  %3067 = vmatpush1.msra.mxu0 %v214
  %3068 = vmatprep.subr.mxu0 %v219
  %3069 = vmatpush1.msra.mxu0 %v218
  %3070 = vmatprep.subr.mxu0 %v223
  %3071 = vmatpush1.msra.mxu0 %v222
  %3072 = vmatprep.subr.mxu0 %v227
  %3073 = vmatpush1.msra.mxu0 %v226
  %3074 = vmatprep.subr.mxu0 %v231
  %3075 = vmatpush1.msra.mxu0 %v230
  %3076 = vmatprep.subr.mxu0 %v235
  %3077 = vmatpush1.msra.mxu0 %v234
  %3078 = vmatprep.subr.mxu0 %v239
  %3079 = vmatpush1.msra.mxu0 %v238
  %3080 = vmatprep.subr.mxu0 %v243
  %3081 = vmatpush1.msra.mxu0 %v242
  %3082 = vmatprep.subr.mxu0 %v247
  %3083 = vmatpush1.msra.mxu0 %v246
  %3084 = vmatprep.subr.mxu0 %v251
  %3085 = vmatpush1.msra.mxu0 %v250
  %3086 = vmatprep.subr.mxu0 %v255
  %3087 = vmatpush1.msra.mxu0 %v254
  %3088 = vmatprep.subr.mxu0 0.0
  %3089 = vmatpush1.msra.mxu0 0.0
  %3090 = vmatprep.subr.mxu0 0.0
  %3091 = vmatpush1.msra.mxu0 0.0
  %3092 = vmatprep.subr.mxu0 0.0
  %3093 = vmatpush1.msra.mxu0 0.0
  %3094 = vmatprep.subr.mxu0 0.0
  %3095 = vmatpush1.msra.mxu0 0.0
  %3096 = vmatprep.subr.mxu0 0.0
  %3097 = vmatpush1.msra.mxu0 0.0
  %3098 = vmatprep.subr.mxu0 0.0
  %3099 = vmatpush1.msra.mxu0 0.0
  %3100 = vmatprep.subr.mxu0 0.0
  %3101 = vmatpush1.msra.mxu0 0.0
  %3102 = vmatprep.subr.mxu0 0.0
  %3103 = vmatpush1.msra.mxu0 0.0
  %3104 = vmatprep.subr.mxu0 0.0
  %3105 = vmatpush1.msra.mxu0 0.0
  %3106 = vmatprep.subr.mxu0 0.0
  %3107 = vmatpush1.msra.mxu0 0.0
  %3108 = vmatprep.subr.mxu0 0.0
  %3109 = vmatpush1.msra.mxu0 0.0
  %3110 = vmatprep.subr.mxu0 0.0
  %3111 = vmatpush1.msra.mxu0 0.0
  %3112 = vmatprep.subr.mxu0 0.0
  %3113 = vmatpush1.msra.mxu0 0.0
  %3114 = vmatprep.subr.mxu0 0.0
  %3115 = vmatpush1.msra.mxu0 0.0
  %3116 = vmatprep.subr.mxu0 0.0
  %3117 = vmatpush1.msra.mxu0 0.0
  %3118 = vmatprep.subr.mxu0 0.0
  %3119 = vmatpush1.msra.mxu0 0.0
  %3120 = vmatprep.mubr.f32.mxu0 0.0
  %3121 = vmatmul.mubr.f32.gmra.mrb[0].mxu0 %v2984
  %v3122 = vpop.f32.mrb[0].mxu0
  %v3123 = vadd.f32 0.0, %v3122
  %v3124 = vpop.f32.mrb[0].mxu0
  %v3125 = vadd.f32 0.0, %v3124
  %3126 = vdwg.mxu0
  %3127 = vmatprep.subr.mxu0 %v65
  %3128 = vmatpush1.msra.mxu0 %v64
  %3129 = vmatprep.subr.mxu0 %v69
  %3130 = vmatpush1.msra.mxu0 %v68
  %3131 = vmatprep.subr.mxu0 %v73
  %3132 = vmatpush1.msra.mxu0 %v72
  %3133 = vmatprep.subr.mxu0 %v77
  %3134 = vmatpush1.msra.mxu0 %v76
  %3135 = vmatprep.subr.mxu0 %v81
  %3136 = vmatpush1.msra.mxu0 %v80
  %3137 = vmatprep.subr.mxu0 %v85
  %3138 = vmatpush1.msra.mxu0 %v84
  %3139 = vmatprep.subr.mxu0 %v89
  %3140 = vmatpush1.msra.mxu0 %v88
  %3141 = vmatprep.subr.mxu0 %v93
  %3142 = vmatpush1.msra.mxu0 %v92
  %3143 = vmatprep.subr.mxu0 %v97
  %3144 = vmatpush1.msra.mxu0 %v96
  %3145 = vmatprep.subr.mxu0 %v101
  %3146 = vmatpush1.msra.mxu0 %v100
  %3147 = vmatprep.subr.mxu0 %v105
  %3148 = vmatpush1.msra.mxu0 %v104
  %3149 = vmatprep.subr.mxu0 %v109
  %3150 = vmatpush1.msra.mxu0 %v108
  %3151 = vmatprep.subr.mxu0 %v113
  %3152 = vmatpush1.msra.mxu0 %v112
  %3153 = vmatprep.subr.mxu0 %v117
  %3154 = vmatpush1.msra.mxu0 %v116
  %3155 = vmatprep.subr.mxu0 %v121
  %3156 = vmatpush1.msra.mxu0 %v120
  %3157 = vmatprep.subr.mxu0 %v125
  %3158 = vmatpush1.msra.mxu0 %v124
  %3159 = vmatprep.subr.mxu0 0.0
  %3160 = vmatpush1.msra.mxu0 0.0
  %3161 = vmatprep.subr.mxu0 0.0
  %3162 = vmatpush1.msra.mxu0 0.0
  %3163 = vmatprep.subr.mxu0 0.0
  %3164 = vmatpush1.msra.mxu0 0.0
  %3165 = vmatprep.subr.mxu0 0.0
  %3166 = vmatpush1.msra.mxu0 0.0
  %3167 = vmatprep.subr.mxu0 0.0
  %3168 = vmatpush1.msra.mxu0 0.0
  %3169 = vmatprep.subr.mxu0 0.0
  %3170 = vmatpush1.msra.mxu0 0.0
  %3171 = vmatprep.subr.mxu0 0.0
  %3172 = vmatpush1.msra.mxu0 0.0
  %3173 = vmatprep.subr.mxu0 0.0
  %3174 = vmatpush1.msra.mxu0 0.0
  %3175 = vmatprep.subr.mxu0 0.0
  %3176 = vmatpush1.msra.mxu0 0.0
  %3177 = vmatprep.subr.mxu0 0.0
  %3178 = vmatpush1.msra.mxu0 0.0
  %3179 = vmatprep.subr.mxu0 0.0
  %3180 = vmatpush1.msra.mxu0 0.0
  %3181 = vmatprep.subr.mxu0 0.0
  %3182 = vmatpush1.msra.mxu0 0.0
  %3183 = vmatprep.subr.mxu0 0.0
  %3184 = vmatpush1.msra.mxu0 0.0
  %3185 = vmatprep.subr.mxu0 0.0
  %3186 = vmatpush1.msra.mxu0 0.0
  %3187 = vmatprep.subr.mxu0 0.0
  %3188 = vmatpush1.msra.mxu0 0.0
  %3189 = vmatprep.subr.mxu0 0.0
  %3190 = vmatpush1.msra.mxu0 0.0
  %3191 = vmatprep.mubr.f32.mxu0 0.0
  %3192 = vmatmul.mubr.f32.gmra.mrb[0].mxu0 %v2814
  %v3193 = vpop.f32.mrb[0].mxu0
  %v3194 = vadd.f32 0.0, %v3193
  %v3195 = vpop.f32.mrb[0].mxu0
  %v3196 = vadd.f32 0.0, %v3195
  %3197 = vdwg.mxu0
  %3198 = vmatprep.subr.mxu0 %v67
  %3199 = vmatpush1.msra.mxu0 %v66
  %3200 = vmatprep.subr.mxu0 %v71
  %3201 = vmatpush1.msra.mxu0 %v70
  %3202 = vmatprep.subr.mxu0 %v75
  %3203 = vmatpush1.msra.mxu0 %v74
  %3204 = vmatprep.subr.mxu0 %v79
  %3205 = vmatpush1.msra.mxu0 %v78
  %3206 = vmatprep.subr.mxu0 %v83
  %3207 = vmatpush1.msra.mxu0 %v82
  %3208 = vmatprep.subr.mxu0 %v87
  %3209 = vmatpush1.msra.mxu0 %v86
  %3210 = vmatprep.subr.mxu0 %v91
  %3211 = vmatpush1.msra.mxu0 %v90
  %3212 = vmatprep.subr.mxu0 %v95
  %3213 = vmatpush1.msra.mxu0 %v94
  %3214 = vmatprep.subr.mxu0 %v99
  %3215 = vmatpush1.msra.mxu0 %v98
  %3216 = vmatprep.subr.mxu0 %v103
  %3217 = vmatpush1.msra.mxu0 %v102
  %3218 = vmatprep.subr.mxu0 %v107
  %3219 = vmatpush1.msra.mxu0 %v106
  %3220 = vmatprep.subr.mxu0 %v111
  %3221 = vmatpush1.msra.mxu0 %v110
  %3222 = vmatprep.subr.mxu0 %v115
  %3223 = vmatpush1.msra.mxu0 %v114
  %3224 = vmatprep.subr.mxu0 %v119
  %3225 = vmatpush1.msra.mxu0 %v118
  %3226 = vmatprep.subr.mxu0 %v123
  %3227 = vmatpush1.msra.mxu0 %v122
  %3228 = vmatprep.subr.mxu0 %v127
  %3229 = vmatpush1.msra.mxu0 %v126
  %3230 = vmatprep.subr.mxu0 0.0
  %3231 = vmatpush1.msra.mxu0 0.0
  %3232 = vmatprep.subr.mxu0 0.0
  %3233 = vmatpush1.msra.mxu0 0.0
  %3234 = vmatprep.subr.mxu0 0.0
  %3235 = vmatpush1.msra.mxu0 0.0
  %3236 = vmatprep.subr.mxu0 0.0
  %3237 = vmatpush1.msra.mxu0 0.0
  %3238 = vmatprep.subr.mxu0 0.0
  %3239 = vmatpush1.msra.mxu0 0.0
  %3240 = vmatprep.subr.mxu0 0.0
  %3241 = vmatpush1.msra.mxu0 0.0
  %3242 = vmatprep.subr.mxu0 0.0
  %3243 = vmatpush1.msra.mxu0 0.0
  %3244 = vmatprep.subr.mxu0 0.0
  %3245 = vmatpush1.msra.mxu0 0.0
  %3246 = vmatprep.subr.mxu0 0.0
  %3247 = vmatpush1.msra.mxu0 0.0
  %3248 = vmatprep.subr.mxu0 0.0
  %3249 = vmatpush1.msra.mxu0 0.0
  %3250 = vmatprep.subr.mxu0 0.0
  %3251 = vmatpush1.msra.mxu0 0.0
  %3252 = vmatprep.subr.mxu0 0.0
  %3253 = vmatpush1.msra.mxu0 0.0
  %3254 = vmatprep.subr.mxu0 0.0
  %3255 = vmatpush1.msra.mxu0 0.0
  %3256 = vmatprep.subr.mxu0 0.0
  %3257 = vmatpush1.msra.mxu0 0.0
  %3258 = vmatprep.subr.mxu0 0.0
  %3259 = vmatpush1.msra.mxu0 0.0
  %3260 = vmatprep.subr.mxu0 0.0
  %3261 = vmatpush1.msra.mxu0 0.0
  %3262 = vmatprep.mubr.f32.mxu0 0.0
  %3263 = vmatmul.mubr.f32.gmra.mrb[0].mxu0 %v2814
  %v3264 = vpop.f32.mrb[0].mxu0
  %v3265 = vadd.f32 0.0, %v3264
  %v3266 = vpop.f32.mrb[0].mxu0
  %v3267 = vadd.f32 0.0, %v3266
  %3268 = vdwg.mxu0
  %v3269 = vadd.f32 %v424, %v3194
  %v3270 = vadd.f32 %v426, %v3196
  %v3271 = vadd.f32 %v537, %v3265
  %v3272 = vadd.f32 %v539, %v3267
  %v3273 = vxor.u32 %v3269, 2147483648
  %v3274 = vmul.f32 %v3273, 1.442695
  %v3275 = vpow.pop %v3274
  %v3276 = vadd.f32 %v3275, 1.0
  %v3277 = vrcp.pop %v3276
  %v3278 = vmul.f32 1.0, %v3277
  %v3279 = vxor.u32 %v3270, 2147483648
  %v3280 = vmul.f32 %v3279, 1.442695
  %v3281 = vpow.pop %v3280
  %v3282 = vadd.f32 %v3281, 1.0
  %v3283 = vrcp.pop %v3282
  %v3284 = vmul.f32 1.0, %v3283
  %v3285 = vtanh.pop %v3271
  %v3286 = vxor.u32 %v3272, 2147483648
  %v3287 = vmul.f32 %v3286, 1.442695
  %v3288 = vpow.pop %v3287
  %v3289 = vadd.f32 %v3288, 1.0
  %v3290 = vrcp.pop %v3289
  %v3291 = vmul.f32 1.0, %v3290
  %v3292 = vmul.f32 %v3284, %v2812
  %v3293 = vmul.f32 %v3278, %v3285
  %v3294 = vadd.f32 %v3292, %v3293
  %v3295 = vtanh.pop %v3294
  %v3296 = vmul.f32 %v3291, %v3295
  %3297 = vmatprep.subr.mxu0 %v129
  %3298 = vmatpush1.msra.mxu0 %v128
  %3299 = vmatprep.subr.mxu0 %v133
  %3300 = vmatpush1.msra.mxu0 %v132
  %3301 = vmatprep.subr.mxu0 %v137
  %3302 = vmatpush1.msra.mxu0 %v136
  %3303 = vmatprep.subr.mxu0 %v141
  %3304 = vmatpush1.msra.mxu0 %v140
  %3305 = vmatprep.subr.mxu0 %v145
  %3306 = vmatpush1.msra.mxu0 %v144
  %3307 = vmatprep.subr.mxu0 %v149
  %3308 = vmatpush1.msra.mxu0 %v148
  %3309 = vmatprep.subr.mxu0 %v153
  %3310 = vmatpush1.msra.mxu0 %v152
  %3311 = vmatprep.subr.mxu0 %v157
  %3312 = vmatpush1.msra.mxu0 %v156
  %3313 = vmatprep.subr.mxu0 %v161
  %3314 = vmatpush1.msra.mxu0 %v160
  %3315 = vmatprep.subr.mxu0 %v165
  %3316 = vmatpush1.msra.mxu0 %v164
  %3317 = vmatprep.subr.mxu0 %v169
  %3318 = vmatpush1.msra.mxu0 %v168
  %3319 = vmatprep.subr.mxu0 %v173
  %3320 = vmatpush1.msra.mxu0 %v172
  %3321 = vmatprep.subr.mxu0 %v177
  %3322 = vmatpush1.msra.mxu0 %v176
  %3323 = vmatprep.subr.mxu0 %v181
  %3324 = vmatpush1.msra.mxu0 %v180
  %3325 = vmatprep.subr.mxu0 %v185
  %3326 = vmatpush1.msra.mxu0 %v184
  %3327 = vmatprep.subr.mxu0 %v189
  %3328 = vmatpush1.msra.mxu0 %v188
  %3329 = vmatprep.subr.mxu0 0.0
  %3330 = vmatpush1.msra.mxu0 0.0
  %3331 = vmatprep.subr.mxu0 0.0
  %3332 = vmatpush1.msra.mxu0 0.0
  %3333 = vmatprep.subr.mxu0 0.0
  %3334 = vmatpush1.msra.mxu0 0.0
  %3335 = vmatprep.subr.mxu0 0.0
  %3336 = vmatpush1.msra.mxu0 0.0
  %3337 = vmatprep.subr.mxu0 0.0
  %3338 = vmatpush1.msra.mxu0 0.0
  %3339 = vmatprep.subr.mxu0 0.0
  %3340 = vmatpush1.msra.mxu0 0.0
  %3341 = vmatprep.subr.mxu0 0.0
  %3342 = vmatpush1.msra.mxu0 0.0
  %3343 = vmatprep.subr.mxu0 0.0
  %3344 = vmatpush1.msra.mxu0 0.0
  %3345 = vmatprep.subr.mxu0 0.0
  %3346 = vmatpush1.msra.mxu0 0.0
  %3347 = vmatprep.subr.mxu0 0.0
  %3348 = vmatpush1.msra.mxu0 0.0
  %3349 = vmatprep.subr.mxu0 0.0
  %3350 = vmatpush1.msra.mxu0 0.0
  %3351 = vmatprep.subr.mxu0 0.0
  %3352 = vmatpush1.msra.mxu0 0.0
  %3353 = vmatprep.subr.mxu0 0.0
  %3354 = vmatpush1.msra.mxu0 0.0
  %3355 = vmatprep.subr.mxu0 0.0
  %3356 = vmatpush1.msra.mxu0 0.0
  %3357 = vmatprep.subr.mxu0 0.0
  %3358 = vmatpush1.msra.mxu0 0.0
  %3359 = vmatprep.subr.mxu0 0.0
  %3360 = vmatpush1.msra.mxu0 0.0
  %3361 = vmatprep.mubr.f32.mxu0 0.0
  %3362 = vmatmul.mubr.f32.gmra.mrb[0].mxu0 %v3296
  %v3363 = vpop.f32.mrb[0].mxu0
  %v3364 = vadd.f32 %v3052, %v3363
  %v3365 = vpop.f32.mrb[0].mxu0
  %v3366 = vadd.f32 %v3054, %v3365
  %3367 = vdwg.mxu0
  %3368 = vmatprep.subr.mxu0 %v131
  %3369 = vmatpush1.msra.mxu0 %v130
  %3370 = vmatprep.subr.mxu0 %v135
  %3371 = vmatpush1.msra.mxu0 %v134
  %3372 = vmatprep.subr.mxu0 %v139
  %3373 = vmatpush1.msra.mxu0 %v138
  %3374 = vmatprep.subr.mxu0 %v143
  %3375 = vmatpush1.msra.mxu0 %v142
  %3376 = vmatprep.subr.mxu0 %v147
  %3377 = vmatpush1.msra.mxu0 %v146
  %3378 = vmatprep.subr.mxu0 %v151
  %3379 = vmatpush1.msra.mxu0 %v150
  %3380 = vmatprep.subr.mxu0 %v155
  %3381 = vmatpush1.msra.mxu0 %v154
  %3382 = vmatprep.subr.mxu0 %v159
  %3383 = vmatpush1.msra.mxu0 %v158
  %3384 = vmatprep.subr.mxu0 %v163
  %3385 = vmatpush1.msra.mxu0 %v162
  %3386 = vmatprep.subr.mxu0 %v167
  %3387 = vmatpush1.msra.mxu0 %v166
  %3388 = vmatprep.subr.mxu0 %v171
  %3389 = vmatpush1.msra.mxu0 %v170
  %3390 = vmatprep.subr.mxu0 %v175
  %3391 = vmatpush1.msra.mxu0 %v174
  %3392 = vmatprep.subr.mxu0 %v179
  %3393 = vmatpush1.msra.mxu0 %v178
  %3394 = vmatprep.subr.mxu0 %v183
  %3395 = vmatpush1.msra.mxu0 %v182
  %3396 = vmatprep.subr.mxu0 %v187
  %3397 = vmatpush1.msra.mxu0 %v186
  %3398 = vmatprep.subr.mxu0 %v191
  %3399 = vmatpush1.msra.mxu0 %v190
  %3400 = vmatprep.subr.mxu0 0.0
  %3401 = vmatpush1.msra.mxu0 0.0
  %3402 = vmatprep.subr.mxu0 0.0
  %3403 = vmatpush1.msra.mxu0 0.0
  %3404 = vmatprep.subr.mxu0 0.0
  %3405 = vmatpush1.msra.mxu0 0.0
  %3406 = vmatprep.subr.mxu0 0.0
  %3407 = vmatpush1.msra.mxu0 0.0
  %3408 = vmatprep.subr.mxu0 0.0
  %3409 = vmatpush1.msra.mxu0 0.0
  %3410 = vmatprep.subr.mxu0 0.0
  %3411 = vmatpush1.msra.mxu0 0.0
  %3412 = vmatprep.subr.mxu0 0.0
  %3413 = vmatpush1.msra.mxu0 0.0
  %3414 = vmatprep.subr.mxu0 0.0
  %3415 = vmatpush1.msra.mxu0 0.0
  %3416 = vmatprep.subr.mxu0 0.0
  %3417 = vmatpush1.msra.mxu0 0.0
  %3418 = vmatprep.subr.mxu0 0.0
  %3419 = vmatpush1.msra.mxu0 0.0
  %3420 = vmatprep.subr.mxu0 0.0
  %3421 = vmatpush1.msra.mxu0 0.0
  %3422 = vmatprep.subr.mxu0 0.0
  %3423 = vmatpush1.msra.mxu0 0.0
  %3424 = vmatprep.subr.mxu0 0.0
  %3425 = vmatpush1.msra.mxu0 0.0
  %3426 = vmatprep.subr.mxu0 0.0
  %3427 = vmatpush1.msra.mxu0 0.0
  %3428 = vmatprep.subr.mxu0 0.0
  %3429 = vmatpush1.msra.mxu0 0.0
  %3430 = vmatprep.subr.mxu0 0.0
  %3431 = vmatpush1.msra.mxu0 0.0
  %3432 = vmatprep.mubr.f32.mxu0 0.0
  %3433 = vmatmul.mubr.f32.gmra.mrb[0].mxu0 %v3296
  %v3434 = vpop.f32.mrb[0].mxu0
  %v3435 = vadd.f32 %v3123, %v3434
  %v3436 = vpop.f32.mrb[0].mxu0
  %v3437 = vadd.f32 %v3125, %v3436
  %3438 = vdwg.mxu0
  %v3439 = vadd.f32 %v3364, %v558
  %v3440 = vadd.f32 %v3366, %v562
  %v3441 = vadd.f32 %v3435, %v566
  %v3442 = vadd.f32 %v3437, %v570
  %v3443 = vxor.u32 %v3439, 2147483648
  %v3444 = vmul.f32 %v3443, 1.442695
  %v3445 = vpow.pop %v3444
  %v3446 = vadd.f32 %v3445, 1.0
  %v3447 = vrcp.pop %v3446
  %v3448 = vmul.f32 1.0, %v3447
  %v3449 = vxor.u32 %v3440, 2147483648
  %v3450 = vmul.f32 %v3449, 1.442695
  %v3451 = vpow.pop %v3450
  %v3452 = vadd.f32 %v3451, 1.0
  %v3453 = vrcp.pop %v3452
  %v3454 = vmul.f32 1.0, %v3453
  %v3455 = vtanh.pop %v3441
  %v3456 = vxor.u32 %v3442, 2147483648
  %v3457 = vmul.f32 %v3456, 1.442695
  %v3458 = vpow.pop %v3457
  %v3459 = vadd.f32 %v3458, 1.0
  %v3460 = vrcp.pop %v3459
  %v3461 = vmul.f32 1.0, %v3460
  %v3462 = vmul.f32 %v3454, %v2982
  %v3463 = vmul.f32 %v3448, %v3455
  %v3464 = vadd.f32 %v3462, %v3463
  %v3465 = vtanh.pop %v3464
  %v3466 = vmul.f32 %v3461, %v3465
  %3467 = vmatprep.subr.mxu0 %v193
  %3468 = vmatpush1.msra.mxu0 %v192
  %3469 = vmatprep.subr.mxu0 %v197
  %3470 = vmatpush1.msra.mxu0 %v196
  %3471 = vmatprep.subr.mxu0 %v201
  %3472 = vmatpush1.msra.mxu0 %v200
  %3473 = vmatprep.subr.mxu0 %v205
  %3474 = vmatpush1.msra.mxu0 %v204
  %3475 = vmatprep.subr.mxu0 %v209
  %3476 = vmatpush1.msra.mxu0 %v208
  %3477 = vmatprep.subr.mxu0 %v213
  %3478 = vmatpush1.msra.mxu0 %v212
  %3479 = vmatprep.subr.mxu0 %v217
  %3480 = vmatpush1.msra.mxu0 %v216
  %3481 = vmatprep.subr.mxu0 %v221
  %3482 = vmatpush1.msra.mxu0 %v220
  %3483 = vmatprep.subr.mxu0 %v225
  %3484 = vmatpush1.msra.mxu0 %v224
  %3485 = vmatprep.subr.mxu0 %v229
  %3486 = vmatpush1.msra.mxu0 %v228
  %3487 = vmatprep.subr.mxu0 %v233
  %3488 = vmatpush1.msra.mxu0 %v232
  %3489 = vmatprep.subr.mxu0 %v237
  %3490 = vmatpush1.msra.mxu0 %v236
  %3491 = vmatprep.subr.mxu0 %v241
  %3492 = vmatpush1.msra.mxu0 %v240
  %3493 = vmatprep.subr.mxu0 %v245
  %3494 = vmatpush1.msra.mxu0 %v244
  %3495 = vmatprep.subr.mxu0 %v249
  %3496 = vmatpush1.msra.mxu0 %v248
  %3497 = vmatprep.subr.mxu0 %v253
  %3498 = vmatpush1.msra.mxu0 %v252
  %3499 = vmatprep.subr.mxu0 0.0
  %3500 = vmatpush1.msra.mxu0 0.0
  %3501 = vmatprep.subr.mxu0 0.0
  %3502 = vmatpush1.msra.mxu0 0.0
  %3503 = vmatprep.subr.mxu0 0.0
  %3504 = vmatpush1.msra.mxu0 0.0
  %3505 = vmatprep.subr.mxu0 0.0
  %3506 = vmatpush1.msra.mxu0 0.0
  %3507 = vmatprep.subr.mxu0 0.0
  %3508 = vmatpush1.msra.mxu0 0.0
  %3509 = vmatprep.subr.mxu0 0.0
  %3510 = vmatpush1.msra.mxu0 0.0
  %3511 = vmatprep.subr.mxu0 0.0
  %3512 = vmatpush1.msra.mxu0 0.0
  %3513 = vmatprep.subr.mxu0 0.0
  %3514 = vmatpush1.msra.mxu0 0.0
  %3515 = vmatprep.subr.mxu0 0.0
  %3516 = vmatpush1.msra.mxu0 0.0
  %3517 = vmatprep.subr.mxu0 0.0
  %3518 = vmatpush1.msra.mxu0 0.0
  %3519 = vmatprep.subr.mxu0 0.0
  %3520 = vmatpush1.msra.mxu0 0.0
  %3521 = vmatprep.subr.mxu0 0.0
  %3522 = vmatpush1.msra.mxu0 0.0
  %3523 = vmatprep.subr.mxu0 0.0
  %3524 = vmatpush1.msra.mxu0 0.0
  %3525 = vmatprep.subr.mxu0 0.0
  %3526 = vmatpush1.msra.mxu0 0.0
  %3527 = vmatprep.subr.mxu0 0.0
  %3528 = vmatpush1.msra.mxu0 0.0
  %3529 = vmatprep.subr.mxu0 0.0
  %3530 = vmatpush1.msra.mxu0 0.0
  %3531 = vmatprep.mubr.f32.mxu0 0.0
  %3532 = vmatmul.mubr.f32.gmra.mrb[0].mxu0 %v3466
  %v3533 = vpop.f32.mrb[0].mxu0
  %v3534 = vadd.f32 0.0, %v3533
  %v3535 = vpop.f32.mrb[0].mxu0
  %v3536 = vadd.f32 0.0, %v3535
  %3537 = vdwg.mxu0
  %3538 = vmatprep.subr.mxu0 %v195
  %3539 = vmatpush1.msra.mxu0 %v194
  %3540 = vmatprep.subr.mxu0 %v199
  %3541 = vmatpush1.msra.mxu0 %v198
  %3542 = vmatprep.subr.mxu0 %v203
  %3543 = vmatpush1.msra.mxu0 %v202
  %3544 = vmatprep.subr.mxu0 %v207
  %3545 = vmatpush1.msra.mxu0 %v206
  %3546 = vmatprep.subr.mxu0 %v211
  %3547 = vmatpush1.msra.mxu0 %v210
  %3548 = vmatprep.subr.mxu0 %v215
  %3549 = vmatpush1.msra.mxu0 %v214
  %3550 = vmatprep.subr.mxu0 %v219
  %3551 = vmatpush1.msra.mxu0 %v218
  %3552 = vmatprep.subr.mxu0 %v223
  %3553 = vmatpush1.msra.mxu0 %v222
  %3554 = vmatprep.subr.mxu0 %v227
  %3555 = vmatpush1.msra.mxu0 %v226
  %3556 = vmatprep.subr.mxu0 %v231
  %3557 = vmatpush1.msra.mxu0 %v230
  %3558 = vmatprep.subr.mxu0 %v235
  %3559 = vmatpush1.msra.mxu0 %v234
  %3560 = vmatprep.subr.mxu0 %v239
  %3561 = vmatpush1.msra.mxu0 %v238
  %3562 = vmatprep.subr.mxu0 %v243
  %3563 = vmatpush1.msra.mxu0 %v242
  %3564 = vmatprep.subr.mxu0 %v247
  %3565 = vmatpush1.msra.mxu0 %v246
  %3566 = vmatprep.subr.mxu0 %v251
  %3567 = vmatpush1.msra.mxu0 %v250
  %3568 = vmatprep.subr.mxu0 %v255
  %3569 = vmatpush1.msra.mxu0 %v254
  %3570 = vmatprep.subr.mxu0 0.0
  %3571 = vmatpush1.msra.mxu0 0.0
  %3572 = vmatprep.subr.mxu0 0.0
  %3573 = vmatpush1.msra.mxu0 0.0
  %3574 = vmatprep.subr.mxu0 0.0
  %3575 = vmatpush1.msra.mxu0 0.0
  %3576 = vmatprep.subr.mxu0 0.0
  %3577 = vmatpush1.msra.mxu0 0.0
  %3578 = vmatprep.subr.mxu0 0.0
  %3579 = vmatpush1.msra.mxu0 0.0
  %3580 = vmatprep.subr.mxu0 0.0
  %3581 = vmatpush1.msra.mxu0 0.0
  %3582 = vmatprep.subr.mxu0 0.0
  %3583 = vmatpush1.msra.mxu0 0.0
  %3584 = vmatprep.subr.mxu0 0.0
  %3585 = vmatpush1.msra.mxu0 0.0
  %3586 = vmatprep.subr.mxu0 0.0
  %3587 = vmatpush1.msra.mxu0 0.0
  %3588 = vmatprep.subr.mxu0 0.0
  %3589 = vmatpush1.msra.mxu0 0.0
  %3590 = vmatprep.subr.mxu0 0.0
  %3591 = vmatpush1.msra.mxu0 0.0
  %3592 = vmatprep.subr.mxu0 0.0
  %3593 = vmatpush1.msra.mxu0 0.0
  %3594 = vmatprep.subr.mxu0 0.0
  %3595 = vmatpush1.msra.mxu0 0.0
  %3596 = vmatprep.subr.mxu0 0.0
  %3597 = vmatpush1.msra.mxu0 0.0
  %3598 = vmatprep.subr.mxu0 0.0
  %3599 = vmatpush1.msra.mxu0 0.0
  %3600 = vmatprep.subr.mxu0 0.0
  %3601 = vmatpush1.msra.mxu0 0.0
  %3602 = vmatprep.mubr.f32.mxu0 0.0
  %3603 = vmatmul.mubr.f32.gmra.mrb[0].mxu0 %v3466
  %v3604 = vpop.f32.mrb[0].mxu0
  %v3605 = vadd.f32 0.0, %v3604
  %v3606 = vpop.f32.mrb[0].mxu0
  %v3607 = vadd.f32 0.0, %v3606
  %3608 = vdwg.mxu0
  %3609 = vmatprep.subr.mxu0 %v65
  %3610 = vmatpush1.msra.mxu0 %v64
  %3611 = vmatprep.subr.mxu0 %v69
  %3612 = vmatpush1.msra.mxu0 %v68
  %3613 = vmatprep.subr.mxu0 %v73
  %3614 = vmatpush1.msra.mxu0 %v72
  %3615 = vmatprep.subr.mxu0 %v77
  %3616 = vmatpush1.msra.mxu0 %v76
  %3617 = vmatprep.subr.mxu0 %v81
  %3618 = vmatpush1.msra.mxu0 %v80
  %3619 = vmatprep.subr.mxu0 %v85
  %3620 = vmatpush1.msra.mxu0 %v84
  %3621 = vmatprep.subr.mxu0 %v89
  %3622 = vmatpush1.msra.mxu0 %v88
  %3623 = vmatprep.subr.mxu0 %v93
  %3624 = vmatpush1.msra.mxu0 %v92
  %3625 = vmatprep.subr.mxu0 %v97
  %3626 = vmatpush1.msra.mxu0 %v96
  %3627 = vmatprep.subr.mxu0 %v101
  %3628 = vmatpush1.msra.mxu0 %v100
  %3629 = vmatprep.subr.mxu0 %v105
  %3630 = vmatpush1.msra.mxu0 %v104
  %3631 = vmatprep.subr.mxu0 %v109
  %3632 = vmatpush1.msra.mxu0 %v108
  %3633 = vmatprep.subr.mxu0 %v113
  %3634 = vmatpush1.msra.mxu0 %v112
  %3635 = vmatprep.subr.mxu0 %v117
  %3636 = vmatpush1.msra.mxu0 %v116
  %3637 = vmatprep.subr.mxu0 %v121
  %3638 = vmatpush1.msra.mxu0 %v120
  %3639 = vmatprep.subr.mxu0 %v125
  %3640 = vmatpush1.msra.mxu0 %v124
  %3641 = vmatprep.subr.mxu0 0.0
  %3642 = vmatpush1.msra.mxu0 0.0
  %3643 = vmatprep.subr.mxu0 0.0
  %3644 = vmatpush1.msra.mxu0 0.0
  %3645 = vmatprep.subr.mxu0 0.0
  %3646 = vmatpush1.msra.mxu0 0.0
  %3647 = vmatprep.subr.mxu0 0.0
  %3648 = vmatpush1.msra.mxu0 0.0
  %3649 = vmatprep.subr.mxu0 0.0
  %3650 = vmatpush1.msra.mxu0 0.0
  %3651 = vmatprep.subr.mxu0 0.0
  %3652 = vmatpush1.msra.mxu0 0.0
  %3653 = vmatprep.subr.mxu0 0.0
  %3654 = vmatpush1.msra.mxu0 0.0
  %3655 = vmatprep.subr.mxu0 0.0
  %3656 = vmatpush1.msra.mxu0 0.0
  %3657 = vmatprep.subr.mxu0 0.0
  %3658 = vmatpush1.msra.mxu0 0.0
  %3659 = vmatprep.subr.mxu0 0.0
  %3660 = vmatpush1.msra.mxu0 0.0
  %3661 = vmatprep.subr.mxu0 0.0
  %3662 = vmatpush1.msra.mxu0 0.0
  %3663 = vmatprep.subr.mxu0 0.0
  %3664 = vmatpush1.msra.mxu0 0.0
  %3665 = vmatprep.subr.mxu0 0.0
  %3666 = vmatpush1.msra.mxu0 0.0
  %3667 = vmatprep.subr.mxu0 0.0
  %3668 = vmatpush1.msra.mxu0 0.0
  %3669 = vmatprep.subr.mxu0 0.0
  %3670 = vmatpush1.msra.mxu0 0.0
  %3671 = vmatprep.subr.mxu0 0.0
  %3672 = vmatpush1.msra.mxu0 0.0
  %3673 = vmatprep.mubr.f32.mxu0 0.0
  %3674 = vmatmul.mubr.f32.gmra.mrb[0].mxu0 %v3296
  %v3675 = vpop.f32.mrb[0].mxu0
  %v3676 = vadd.f32 0.0, %v3675
  %v3677 = vpop.f32.mrb[0].mxu0
  %v3678 = vadd.f32 0.0, %v3677
  %3679 = vdwg.mxu0
  %3680 = vmatprep.subr.mxu0 %v67
  %3681 = vmatpush1.msra.mxu0 %v66
  %3682 = vmatprep.subr.mxu0 %v71
  %3683 = vmatpush1.msra.mxu0 %v70
  %3684 = vmatprep.subr.mxu0 %v75
  %3685 = vmatpush1.msra.mxu0 %v74
  %3686 = vmatprep.subr.mxu0 %v79
  %3687 = vmatpush1.msra.mxu0 %v78
  %3688 = vmatprep.subr.mxu0 %v83
  %3689 = vmatpush1.msra.mxu0 %v82
  %3690 = vmatprep.subr.mxu0 %v87
  %3691 = vmatpush1.msra.mxu0 %v86
  %3692 = vmatprep.subr.mxu0 %v91
  %3693 = vmatpush1.msra.mxu0 %v90
  %3694 = vmatprep.subr.mxu0 %v95
  %3695 = vmatpush1.msra.mxu0 %v94
  %3696 = vmatprep.subr.mxu0 %v99
  %3697 = vmatpush1.msra.mxu0 %v98
  %3698 = vmatprep.subr.mxu0 %v103
  %3699 = vmatpush1.msra.mxu0 %v102
  %3700 = vmatprep.subr.mxu0 %v107
  %3701 = vmatpush1.msra.mxu0 %v106
  %3702 = vmatprep.subr.mxu0 %v111
  %3703 = vmatpush1.msra.mxu0 %v110
  %3704 = vmatprep.subr.mxu0 %v115
  %3705 = vmatpush1.msra.mxu0 %v114
  %3706 = vmatprep.subr.mxu0 %v119
  %3707 = vmatpush1.msra.mxu0 %v118
  %3708 = vmatprep.subr.mxu0 %v123
  %3709 = vmatpush1.msra.mxu0 %v122
  %3710 = vmatprep.subr.mxu0 %v127
  %3711 = vmatpush1.msra.mxu0 %v126
  %3712 = vmatprep.subr.mxu0 0.0
  %3713 = vmatpush1.msra.mxu0 0.0
  %3714 = vmatprep.subr.mxu0 0.0
  %3715 = vmatpush1.msra.mxu0 0.0
  %3716 = vmatprep.subr.mxu0 0.0
  %3717 = vmatpush1.msra.mxu0 0.0
  %3718 = vmatprep.subr.mxu0 0.0
  %3719 = vmatpush1.msra.mxu0 0.0
  %3720 = vmatprep.subr.mxu0 0.0
  %3721 = vmatpush1.msra.mxu0 0.0
  %3722 = vmatprep.subr.mxu0 0.0
  %3723 = vmatpush1.msra.mxu0 0.0
  %3724 = vmatprep.subr.mxu0 0.0
  %3725 = vmatpush1.msra.mxu0 0.0
  %3726 = vmatprep.subr.mxu0 0.0
  %3727 = vmatpush1.msra.mxu0 0.0
  %3728 = vmatprep.subr.mxu0 0.0
  %3729 = vmatpush1.msra.mxu0 0.0
  %3730 = vmatprep.subr.mxu0 0.0
  %3731 = vmatpush1.msra.mxu0 0.0
  %3732 = vmatprep.subr.mxu0 0.0
  %3733 = vmatpush1.msra.mxu0 0.0
  %3734 = vmatprep.subr.mxu0 0.0
  %3735 = vmatpush1.msra.mxu0 0.0
  %3736 = vmatprep.subr.mxu0 0.0
  %3737 = vmatpush1.msra.mxu0 0.0
  %3738 = vmatprep.subr.mxu0 0.0
  %3739 = vmatpush1.msra.mxu0 0.0
  %3740 = vmatprep.subr.mxu0 0.0
  %3741 = vmatpush1.msra.mxu0 0.0
  %3742 = vmatprep.subr.mxu0 0.0
  %3743 = vmatpush1.msra.mxu0 0.0
  %3744 = vmatprep.mubr.f32.mxu0 0.0
  %3745 = vmatmul.mubr.f32.gmra.mrb[0].mxu0 %v3296
  %v3746 = vpop.f32.mrb[0].mxu0
  %v3747 = vadd.f32 0.0, %v3746
  %v3748 = vpop.f32.mrb[0].mxu0
  %v3749 = vadd.f32 0.0, %v3748
  %3750 = vdwg.mxu0
  %v3751 = vadd.f32 %v430, %v3676
  %v3752 = vadd.f32 %v432, %v3678
  %v3753 = vadd.f32 %v543, %v3747
  %v3754 = vadd.f32 %v545, %v3749
  %v3755 = vxor.u32 %v3751, 2147483648
  %v3756 = vmul.f32 %v3755, 1.442695
  %v3757 = vpow.pop %v3756
  %v3758 = vadd.f32 %v3757, 1.0
  %v3759 = vrcp.pop %v3758
  %v3760 = vmul.f32 1.0, %v3759
  %v3761 = vxor.u32 %v3752, 2147483648
  %v3762 = vmul.f32 %v3761, 1.442695
  %v3763 = vpow.pop %v3762
  %v3764 = vadd.f32 %v3763, 1.0
  %v3765 = vrcp.pop %v3764
  %v3766 = vmul.f32 1.0, %v3765
  %v3767 = vtanh.pop %v3753
  %v3768 = vxor.u32 %v3754, 2147483648
  %v3769 = vmul.f32 %v3768, 1.442695
  %v3770 = vpow.pop %v3769
  %v3771 = vadd.f32 %v3770, 1.0
  %v3772 = vrcp.pop %v3771
  %v3773 = vmul.f32 1.0, %v3772
  %v3774 = vmul.f32 %v3766, %v3294
  %v3775 = vmul.f32 %v3760, %v3767
  %v3776 = vadd.f32 %v3774, %v3775
  %v3777 = vtanh.pop %v3776
  %v3778 = vmul.f32 %v3773, %v3777
  %3779 = vmatprep.subr.mxu0 %v129
  %3780 = vmatpush1.msra.mxu0 %v128
  %3781 = vmatprep.subr.mxu0 %v133
  %3782 = vmatpush1.msra.mxu0 %v132
  %3783 = vmatprep.subr.mxu0 %v137
  %3784 = vmatpush1.msra.mxu0 %v136
  %3785 = vmatprep.subr.mxu0 %v141
  %3786 = vmatpush1.msra.mxu0 %v140
  %3787 = vmatprep.subr.mxu0 %v145
  %3788 = vmatpush1.msra.mxu0 %v144
  %3789 = vmatprep.subr.mxu0 %v149
  %3790 = vmatpush1.msra.mxu0 %v148
  %3791 = vmatprep.subr.mxu0 %v153
  %3792 = vmatpush1.msra.mxu0 %v152
  %3793 = vmatprep.subr.mxu0 %v157
  %3794 = vmatpush1.msra.mxu0 %v156
  %3795 = vmatprep.subr.mxu0 %v161
  %3796 = vmatpush1.msra.mxu0 %v160
  %3797 = vmatprep.subr.mxu0 %v165
  %3798 = vmatpush1.msra.mxu0 %v164
  %3799 = vmatprep.subr.mxu0 %v169
  %3800 = vmatpush1.msra.mxu0 %v168
  %3801 = vmatprep.subr.mxu0 %v173
  %3802 = vmatpush1.msra.mxu0 %v172
  %3803 = vmatprep.subr.mxu0 %v177
  %3804 = vmatpush1.msra.mxu0 %v176
  %3805 = vmatprep.subr.mxu0 %v181
  %3806 = vmatpush1.msra.mxu0 %v180
  %3807 = vmatprep.subr.mxu0 %v185
  %3808 = vmatpush1.msra.mxu0 %v184
  %3809 = vmatprep.subr.mxu0 %v189
  %3810 = vmatpush1.msra.mxu0 %v188
  %3811 = vmatprep.subr.mxu0 0.0
  %3812 = vmatpush1.msra.mxu0 0.0
  %3813 = vmatprep.subr.mxu0 0.0
  %3814 = vmatpush1.msra.mxu0 0.0
  %3815 = vmatprep.subr.mxu0 0.0
  %3816 = vmatpush1.msra.mxu0 0.0
  %3817 = vmatprep.subr.mxu0 0.0
  %3818 = vmatpush1.msra.mxu0 0.0
  %3819 = vmatprep.subr.mxu0 0.0
  %3820 = vmatpush1.msra.mxu0 0.0
  %3821 = vmatprep.subr.mxu0 0.0
  %3822 = vmatpush1.msra.mxu0 0.0
  %3823 = vmatprep.subr.mxu0 0.0
  %3824 = vmatpush1.msra.mxu0 0.0
  %3825 = vmatprep.subr.mxu0 0.0
  %3826 = vmatpush1.msra.mxu0 0.0
  %3827 = vmatprep.subr.mxu0 0.0
  %3828 = vmatpush1.msra.mxu0 0.0
  %3829 = vmatprep.subr.mxu0 0.0
  %3830 = vmatpush1.msra.mxu0 0.0
  %3831 = vmatprep.subr.mxu0 0.0
  %3832 = vmatpush1.msra.mxu0 0.0
  %3833 = vmatprep.subr.mxu0 0.0
  %3834 = vmatpush1.msra.mxu0 0.0
  %3835 = vmatprep.subr.mxu0 0.0
  %3836 = vmatpush1.msra.mxu0 0.0
  %3837 = vmatprep.subr.mxu0 0.0
  %3838 = vmatpush1.msra.mxu0 0.0
  %3839 = vmatprep.subr.mxu0 0.0
  %3840 = vmatpush1.msra.mxu0 0.0
  %3841 = vmatprep.subr.mxu0 0.0
  %3842 = vmatpush1.msra.mxu0 0.0
  %3843 = vmatprep.mubr.f32.mxu0 0.0
  %3844 = vmatmul.mubr.f32.gmra.mrb[0].mxu0 %v3778
  %v3845 = vpop.f32.mrb[0].mxu0
  %v3846 = vadd.f32 %v3534, %v3845
  %v3847 = vpop.f32.mrb[0].mxu0
  %v3848 = vadd.f32 %v3536, %v3847
  %3849 = vdwg.mxu0
  %3850 = vmatprep.subr.mxu0 %v131
  %3851 = vmatpush1.msra.mxu0 %v130
  %3852 = vmatprep.subr.mxu0 %v135
  %3853 = vmatpush1.msra.mxu0 %v134
  %3854 = vmatprep.subr.mxu0 %v139
  %3855 = vmatpush1.msra.mxu0 %v138
  %3856 = vmatprep.subr.mxu0 %v143
  %3857 = vmatpush1.msra.mxu0 %v142
  %3858 = vmatprep.subr.mxu0 %v147
  %3859 = vmatpush1.msra.mxu0 %v146
  %3860 = vmatprep.subr.mxu0 %v151
  %3861 = vmatpush1.msra.mxu0 %v150
  %3862 = vmatprep.subr.mxu0 %v155
  %3863 = vmatpush1.msra.mxu0 %v154
  %3864 = vmatprep.subr.mxu0 %v159
  %3865 = vmatpush1.msra.mxu0 %v158
  %3866 = vmatprep.subr.mxu0 %v163
  %3867 = vmatpush1.msra.mxu0 %v162
  %3868 = vmatprep.subr.mxu0 %v167
  %3869 = vmatpush1.msra.mxu0 %v166
  %3870 = vmatprep.subr.mxu0 %v171
  %3871 = vmatpush1.msra.mxu0 %v170
  %3872 = vmatprep.subr.mxu0 %v175
  %3873 = vmatpush1.msra.mxu0 %v174
  %3874 = vmatprep.subr.mxu0 %v179
  %3875 = vmatpush1.msra.mxu0 %v178
  %3876 = vmatprep.subr.mxu0 %v183
  %3877 = vmatpush1.msra.mxu0 %v182
  %3878 = vmatprep.subr.mxu0 %v187
  %3879 = vmatpush1.msra.mxu0 %v186
  %3880 = vmatprep.subr.mxu0 %v191
  %3881 = vmatpush1.msra.mxu0 %v190
  %3882 = vmatprep.subr.mxu0 0.0
  %3883 = vmatpush1.msra.mxu0 0.0
  %3884 = vmatprep.subr.mxu0 0.0
  %3885 = vmatpush1.msra.mxu0 0.0
  %3886 = vmatprep.subr.mxu0 0.0
  %3887 = vmatpush1.msra.mxu0 0.0
  %3888 = vmatprep.subr.mxu0 0.0
  %3889 = vmatpush1.msra.mxu0 0.0
  %3890 = vmatprep.subr.mxu0 0.0
  %3891 = vmatpush1.msra.mxu0 0.0
  %3892 = vmatprep.subr.mxu0 0.0
  %3893 = vmatpush1.msra.mxu0 0.0
  %3894 = vmatprep.subr.mxu0 0.0
  %3895 = vmatpush1.msra.mxu0 0.0
  %3896 = vmatprep.subr.mxu0 0.0
  %3897 = vmatpush1.msra.mxu0 0.0
  %3898 = vmatprep.subr.mxu0 0.0
  %3899 = vmatpush1.msra.mxu0 0.0
  %3900 = vmatprep.subr.mxu0 0.0
  %3901 = vmatpush1.msra.mxu0 0.0
  %3902 = vmatprep.subr.mxu0 0.0
  %3903 = vmatpush1.msra.mxu0 0.0
  %3904 = vmatprep.subr.mxu0 0.0
  %3905 = vmatpush1.msra.mxu0 0.0
  %3906 = vmatprep.subr.mxu0 0.0
  %3907 = vmatpush1.msra.mxu0 0.0
  %3908 = vmatprep.subr.mxu0 0.0
  %3909 = vmatpush1.msra.mxu0 0.0
  %3910 = vmatprep.subr.mxu0 0.0
  %3911 = vmatpush1.msra.mxu0 0.0
  %3912 = vmatprep.subr.mxu0 0.0
  %3913 = vmatpush1.msra.mxu0 0.0
  %3914 = vmatprep.mubr.f32.mxu0 0.0
  %3915 = vmatmul.mubr.f32.gmra.mrb[0].mxu0 %v3778
  %v3916 = vpop.f32.mrb[0].mxu0
  %v3917 = vadd.f32 %v3605, %v3916
  %v3918 = vpop.f32.mrb[0].mxu0
  %v3919 = vadd.f32 %v3607, %v3918
  %3920 = vdwg.mxu0
  %v3921 = vadd.f32 %v3846, %v558
  %v3922 = vadd.f32 %v3848, %v562
  %v3923 = vadd.f32 %v3917, %v566
  %v3924 = vadd.f32 %v3919, %v570
  %v3925 = vxor.u32 %v3921, 2147483648
  %v3926 = vmul.f32 %v3925, 1.442695
  %v3927 = vpow.pop %v3926
  %v3928 = vadd.f32 %v3927, 1.0
  %v3929 = vrcp.pop %v3928
  %v3930 = vmul.f32 1.0, %v3929
  %v3931 = vxor.u32 %v3922, 2147483648
  %v3932 = vmul.f32 %v3931, 1.442695
  %v3933 = vpow.pop %v3932
  %v3934 = vadd.f32 %v3933, 1.0
  %v3935 = vrcp.pop %v3934
  %v3936 = vmul.f32 1.0, %v3935
  %v3937 = vtanh.pop %v3923
  %v3938 = vxor.u32 %v3924, 2147483648
  %v3939 = vmul.f32 %v3938, 1.442695
  %v3940 = vpow.pop %v3939
  %v3941 = vadd.f32 %v3940, 1.0
  %v3942 = vrcp.pop %v3941
  %v3943 = vmul.f32 1.0, %v3942
  %v3944 = vmul.f32 %v3936, %v3464
  %v3945 = vmul.f32 %v3930, %v3937
  %v3946 = vadd.f32 %v3944, %v3945
  %v3947 = vtanh.pop %v3946
  %v3948 = vmul.f32 %v3943, %v3947
  %3949 = vmatprep.subr.mxu0 %v193
  %3950 = vmatpush1.msra.mxu0 %v192
  %3951 = vmatprep.subr.mxu0 %v197
  %3952 = vmatpush1.msra.mxu0 %v196
  %3953 = vmatprep.subr.mxu0 %v201
  %3954 = vmatpush1.msra.mxu0 %v200
  %3955 = vmatprep.subr.mxu0 %v205
  %3956 = vmatpush1.msra.mxu0 %v204
  %3957 = vmatprep.subr.mxu0 %v209
  %3958 = vmatpush1.msra.mxu0 %v208
  %3959 = vmatprep.subr.mxu0 %v213
  %3960 = vmatpush1.msra.mxu0 %v212
  %3961 = vmatprep.subr.mxu0 %v217
  %3962 = vmatpush1.msra.mxu0 %v216
  %3963 = vmatprep.subr.mxu0 %v221
  %3964 = vmatpush1.msra.mxu0 %v220
  %3965 = vmatprep.subr.mxu0 %v225
  %3966 = vmatpush1.msra.mxu0 %v224
  %3967 = vmatprep.subr.mxu0 %v229
  %3968 = vmatpush1.msra.mxu0 %v228
  %3969 = vmatprep.subr.mxu0 %v233
  %3970 = vmatpush1.msra.mxu0 %v232
  %3971 = vmatprep.subr.mxu0 %v237
  %3972 = vmatpush1.msra.mxu0 %v236
  %3973 = vmatprep.subr.mxu0 %v241
  %3974 = vmatpush1.msra.mxu0 %v240
  %3975 = vmatprep.subr.mxu0 %v245
  %3976 = vmatpush1.msra.mxu0 %v244
  %3977 = vmatprep.subr.mxu0 %v249
  %3978 = vmatpush1.msra.mxu0 %v248
  %3979 = vmatprep.subr.mxu0 %v253
  %3980 = vmatpush1.msra.mxu0 %v252
  %3981 = vmatprep.subr.mxu0 0.0
  %3982 = vmatpush1.msra.mxu0 0.0
  %3983 = vmatprep.subr.mxu0 0.0
  %3984 = vmatpush1.msra.mxu0 0.0
  %3985 = vmatprep.subr.mxu0 0.0
  %3986 = vmatpush1.msra.mxu0 0.0
  %3987 = vmatprep.subr.mxu0 0.0
  %3988 = vmatpush1.msra.mxu0 0.0
  %3989 = vmatprep.subr.mxu0 0.0
  %3990 = vmatpush1.msra.mxu0 0.0
  %3991 = vmatprep.subr.mxu0 0.0
  %3992 = vmatpush1.msra.mxu0 0.0
  %3993 = vmatprep.subr.mxu0 0.0
  %3994 = vmatpush1.msra.mxu0 0.0
  %3995 = vmatprep.subr.mxu0 0.0
  %3996 = vmatpush1.msra.mxu0 0.0
  %3997 = vmatprep.subr.mxu0 0.0
  %3998 = vmatpush1.msra.mxu0 0.0
  %3999 = vmatprep.subr.mxu0 0.0
  %4000 = vmatpush1.msra.mxu0 0.0
  %4001 = vmatprep.subr.mxu0 0.0
  %4002 = vmatpush1.msra.mxu0 0.0
  %4003 = vmatprep.subr.mxu0 0.0
  %4004 = vmatpush1.msra.mxu0 0.0
  %4005 = vmatprep.subr.mxu0 0.0
  %4006 = vmatpush1.msra.mxu0 0.0
  %4007 = vmatprep.subr.mxu0 0.0
  %4008 = vmatpush1.msra.mxu0 0.0
  %4009 = vmatprep.subr.mxu0 0.0
  %4010 = vmatpush1.msra.mxu0 0.0
  %4011 = vmatprep.subr.mxu0 0.0
  %4012 = vmatpush1.msra.mxu0 0.0
  %4013 = vmatprep.mubr.f32.mxu0 0.0
  %4014 = vmatmul.mubr.f32.gmra.mrb[0].mxu0 %v3948
  %v4015 = vpop.f32.mrb[0].mxu0
  %v4016 = vadd.f32 0.0, %v4015
  %v4017 = vpop.f32.mrb[0].mxu0
  %v4018 = vadd.f32 0.0, %v4017
  %4019 = vdwg.mxu0
  %4020 = vmatprep.subr.mxu0 %v195
  %4021 = vmatpush1.msra.mxu0 %v194
  %4022 = vmatprep.subr.mxu0 %v199
  %4023 = vmatpush1.msra.mxu0 %v198
  %4024 = vmatprep.subr.mxu0 %v203
  %4025 = vmatpush1.msra.mxu0 %v202
  %4026 = vmatprep.subr.mxu0 %v207
  %4027 = vmatpush1.msra.mxu0 %v206
  %4028 = vmatprep.subr.mxu0 %v211
  %4029 = vmatpush1.msra.mxu0 %v210
  %4030 = vmatprep.subr.mxu0 %v215
  %4031 = vmatpush1.msra.mxu0 %v214
  %4032 = vmatprep.subr.mxu0 %v219
  %4033 = vmatpush1.msra.mxu0 %v218
  %4034 = vmatprep.subr.mxu0 %v223
  %4035 = vmatpush1.msra.mxu0 %v222
  %4036 = vmatprep.subr.mxu0 %v227
  %4037 = vmatpush1.msra.mxu0 %v226
  %4038 = vmatprep.subr.mxu0 %v231
  %4039 = vmatpush1.msra.mxu0 %v230
  %4040 = vmatprep.subr.mxu0 %v235
  %4041 = vmatpush1.msra.mxu0 %v234
  %4042 = vmatprep.subr.mxu0 %v239
  %4043 = vmatpush1.msra.mxu0 %v238
  %4044 = vmatprep.subr.mxu0 %v243
  %4045 = vmatpush1.msra.mxu0 %v242
  %4046 = vmatprep.subr.mxu0 %v247
  %4047 = vmatpush1.msra.mxu0 %v246
  %4048 = vmatprep.subr.mxu0 %v251
  %4049 = vmatpush1.msra.mxu0 %v250
  %4050 = vmatprep.subr.mxu0 %v255
  %4051 = vmatpush1.msra.mxu0 %v254
  %4052 = vmatprep.subr.mxu0 0.0
  %4053 = vmatpush1.msra.mxu0 0.0
  %4054 = vmatprep.subr.mxu0 0.0
  %4055 = vmatpush1.msra.mxu0 0.0
  %4056 = vmatprep.subr.mxu0 0.0
  %4057 = vmatpush1.msra.mxu0 0.0
  %4058 = vmatprep.subr.mxu0 0.0
  %4059 = vmatpush1.msra.mxu0 0.0
  %4060 = vmatprep.subr.mxu0 0.0
  %4061 = vmatpush1.msra.mxu0 0.0
  %4062 = vmatprep.subr.mxu0 0.0
  %4063 = vmatpush1.msra.mxu0 0.0
  %4064 = vmatprep.subr.mxu0 0.0
  %4065 = vmatpush1.msra.mxu0 0.0
  %4066 = vmatprep.subr.mxu0 0.0
  %4067 = vmatpush1.msra.mxu0 0.0
  %4068 = vmatprep.subr.mxu0 0.0
  %4069 = vmatpush1.msra.mxu0 0.0
  %4070 = vmatprep.subr.mxu0 0.0
  %4071 = vmatpush1.msra.mxu0 0.0
  %4072 = vmatprep.subr.mxu0 0.0
  %4073 = vmatpush1.msra.mxu0 0.0
  %4074 = vmatprep.subr.mxu0 0.0
  %4075 = vmatpush1.msra.mxu0 0.0
  %4076 = vmatprep.subr.mxu0 0.0
  %4077 = vmatpush1.msra.mxu0 0.0
  %4078 = vmatprep.subr.mxu0 0.0
  %4079 = vmatpush1.msra.mxu0 0.0
  %4080 = vmatprep.subr.mxu0 0.0
  %4081 = vmatpush1.msra.mxu0 0.0
  %4082 = vmatprep.subr.mxu0 0.0
  %4083 = vmatpush1.msra.mxu0 0.0
  %4084 = vmatprep.mubr.f32.mxu0 0.0
  %4085 = vmatmul.mubr.f32.gmra.mrb[0].mxu0 %v3948
  %v4086 = vpop.f32.mrb[0].mxu0
  %v4087 = vadd.f32 0.0, %v4086
  %v4088 = vpop.f32.mrb[0].mxu0
  %v4089 = vadd.f32 0.0, %v4088
  %4090 = vdwg.mxu0
  %4091 = vmatprep.subr.mxu0 %v65
  %4092 = vmatpush1.msra.mxu0 %v64
  %4093 = vmatprep.subr.mxu0 %v69
  %4094 = vmatpush1.msra.mxu0 %v68
  %4095 = vmatprep.subr.mxu0 %v73
  %4096 = vmatpush1.msra.mxu0 %v72
  %4097 = vmatprep.subr.mxu0 %v77
  %4098 = vmatpush1.msra.mxu0 %v76
  %4099 = vmatprep.subr.mxu0 %v81
  %4100 = vmatpush1.msra.mxu0 %v80
  %4101 = vmatprep.subr.mxu0 %v85
  %4102 = vmatpush1.msra.mxu0 %v84
  %4103 = vmatprep.subr.mxu0 %v89
  %4104 = vmatpush1.msra.mxu0 %v88
  %4105 = vmatprep.subr.mxu0 %v93
  %4106 = vmatpush1.msra.mxu0 %v92
  %4107 = vmatprep.subr.mxu0 %v97
  %4108 = vmatpush1.msra.mxu0 %v96
  %4109 = vmatprep.subr.mxu0 %v101
  %4110 = vmatpush1.msra.mxu0 %v100
  %4111 = vmatprep.subr.mxu0 %v105
  %4112 = vmatpush1.msra.mxu0 %v104
  %4113 = vmatprep.subr.mxu0 %v109
  %4114 = vmatpush1.msra.mxu0 %v108
  %4115 = vmatprep.subr.mxu0 %v113
  %4116 = vmatpush1.msra.mxu0 %v112
  %4117 = vmatprep.subr.mxu0 %v117
  %4118 = vmatpush1.msra.mxu0 %v116
  %4119 = vmatprep.subr.mxu0 %v121
  %4120 = vmatpush1.msra.mxu0 %v120
  %4121 = vmatprep.subr.mxu0 %v125
  %4122 = vmatpush1.msra.mxu0 %v124
  %4123 = vmatprep.subr.mxu0 0.0
  %4124 = vmatpush1.msra.mxu0 0.0
  %4125 = vmatprep.subr.mxu0 0.0
  %4126 = vmatpush1.msra.mxu0 0.0
  %4127 = vmatprep.subr.mxu0 0.0
  %4128 = vmatpush1.msra.mxu0 0.0
  %4129 = vmatprep.subr.mxu0 0.0
  %4130 = vmatpush1.msra.mxu0 0.0
  %4131 = vmatprep.subr.mxu0 0.0
  %4132 = vmatpush1.msra.mxu0 0.0
  %4133 = vmatprep.subr.mxu0 0.0
  %4134 = vmatpush1.msra.mxu0 0.0
  %4135 = vmatprep.subr.mxu0 0.0
  %4136 = vmatpush1.msra.mxu0 0.0
  %4137 = vmatprep.subr.mxu0 0.0
  %4138 = vmatpush1.msra.mxu0 0.0
  %4139 = vmatprep.subr.mxu0 0.0
  %4140 = vmatpush1.msra.mxu0 0.0
  %4141 = vmatprep.subr.mxu0 0.0
  %4142 = vmatpush1.msra.mxu0 0.0
  %4143 = vmatprep.subr.mxu0 0.0
  %4144 = vmatpush1.msra.mxu0 0.0
  %4145 = vmatprep.subr.mxu0 0.0
  %4146 = vmatpush1.msra.mxu0 0.0
  %4147 = vmatprep.subr.mxu0 0.0
  %4148 = vmatpush1.msra.mxu0 0.0
  %4149 = vmatprep.subr.mxu0 0.0
  %4150 = vmatpush1.msra.mxu0 0.0
  %4151 = vmatprep.subr.mxu0 0.0
  %4152 = vmatpush1.msra.mxu0 0.0
  %4153 = vmatprep.subr.mxu0 0.0
  %4154 = vmatpush1.msra.mxu0 0.0
  %4155 = vmatprep.mubr.f32.mxu0 0.0
  %4156 = vmatmul.mubr.f32.gmra.mrb[0].mxu0 %v3778
  %v4157 = vpop.f32.mrb[0].mxu0
  %v4158 = vadd.f32 0.0, %v4157
  %v4159 = vpop.f32.mrb[0].mxu0
  %v4160 = vadd.f32 0.0, %v4159
  %4161 = vdwg.mxu0
  %4162 = vmatprep.subr.mxu0 %v67
  %4163 = vmatpush1.msra.mxu0 %v66
  %4164 = vmatprep.subr.mxu0 %v71
  %4165 = vmatpush1.msra.mxu0 %v70
  %4166 = vmatprep.subr.mxu0 %v75
  %4167 = vmatpush1.msra.mxu0 %v74
  %4168 = vmatprep.subr.mxu0 %v79
  %4169 = vmatpush1.msra.mxu0 %v78
  %4170 = vmatprep.subr.mxu0 %v83
  %4171 = vmatpush1.msra.mxu0 %v82
  %4172 = vmatprep.subr.mxu0 %v87
  %4173 = vmatpush1.msra.mxu0 %v86
  %4174 = vmatprep.subr.mxu0 %v91
  %4175 = vmatpush1.msra.mxu0 %v90
  %4176 = vmatprep.subr.mxu0 %v95
  %4177 = vmatpush1.msra.mxu0 %v94
  %4178 = vmatprep.subr.mxu0 %v99
  %4179 = vmatpush1.msra.mxu0 %v98
  %4180 = vmatprep.subr.mxu0 %v103
  %4181 = vmatpush1.msra.mxu0 %v102
  %4182 = vmatprep.subr.mxu0 %v107
  %4183 = vmatpush1.msra.mxu0 %v106
  %4184 = vmatprep.subr.mxu0 %v111
  %4185 = vmatpush1.msra.mxu0 %v110
  %4186 = vmatprep.subr.mxu0 %v115
  %4187 = vmatpush1.msra.mxu0 %v114
  %4188 = vmatprep.subr.mxu0 %v119
  %4189 = vmatpush1.msra.mxu0 %v118
  %4190 = vmatprep.subr.mxu0 %v123
  %4191 = vmatpush1.msra.mxu0 %v122
  %4192 = vmatprep.subr.mxu0 %v127
  %4193 = vmatpush1.msra.mxu0 %v126
  %4194 = vmatprep.subr.mxu0 0.0
  %4195 = vmatpush1.msra.mxu0 0.0
  %4196 = vmatprep.subr.mxu0 0.0
  %4197 = vmatpush1.msra.mxu0 0.0
  %4198 = vmatprep.subr.mxu0 0.0
  %4199 = vmatpush1.msra.mxu0 0.0
  %4200 = vmatprep.subr.mxu0 0.0
  %4201 = vmatpush1.msra.mxu0 0.0
  %4202 = vmatprep.subr.mxu0 0.0
  %4203 = vmatpush1.msra.mxu0 0.0
  %4204 = vmatprep.subr.mxu0 0.0
  %4205 = vmatpush1.msra.mxu0 0.0
  %4206 = vmatprep.subr.mxu0 0.0
  %4207 = vmatpush1.msra.mxu0 0.0
  %4208 = vmatprep.subr.mxu0 0.0
  %4209 = vmatpush1.msra.mxu0 0.0
  %4210 = vmatprep.subr.mxu0 0.0
  %4211 = vmatpush1.msra.mxu0 0.0
  %4212 = vmatprep.subr.mxu0 0.0
  %4213 = vmatpush1.msra.mxu0 0.0
  %4214 = vmatprep.subr.mxu0 0.0
  %4215 = vmatpush1.msra.mxu0 0.0
  %4216 = vmatprep.subr.mxu0 0.0
  %4217 = vmatpush1.msra.mxu0 0.0
  %4218 = vmatprep.subr.mxu0 0.0
  %4219 = vmatpush1.msra.mxu0 0.0
  %4220 = vmatprep.subr.mxu0 0.0
  %4221 = vmatpush1.msra.mxu0 0.0
  %4222 = vmatprep.subr.mxu0 0.0
  %4223 = vmatpush1.msra.mxu0 0.0
  %4224 = vmatprep.subr.mxu0 0.0
  %4225 = vmatpush1.msra.mxu0 0.0
  %4226 = vmatprep.mubr.f32.mxu0 0.0
  %4227 = vmatmul.mubr.f32.gmra.mrb[0].mxu0 %v3778
  %v4228 = vpop.f32.mrb[0].mxu0
  %v4229 = vadd.f32 0.0, %v4228
  %v4230 = vpop.f32.mrb[0].mxu0
  %v4231 = vadd.f32 0.0, %v4230
  %4232 = vdwg.mxu0
  %v4233 = vadd.f32 %v436, %v4158
  %v4234 = vadd.f32 %v438, %v4160
  %v4235 = vadd.f32 %v549, %v4229
  %v4236 = vadd.f32 %v551, %v4231
  %v4237 = vxor.u32 %v4233, 2147483648
  %v4238 = vmul.f32 %v4237, 1.442695
  %v4239 = vpow.pop %v4238
  %v4240 = vadd.f32 %v4239, 1.0
  %v4241 = vrcp.pop %v4240
  %v4242 = vmul.f32 1.0, %v4241
  %v4243 = vxor.u32 %v4234, 2147483648
  %v4244 = vmul.f32 %v4243, 1.442695
  %v4245 = vpow.pop %v4244
  %v4246 = vadd.f32 %v4245, 1.0
  %v4247 = vrcp.pop %v4246
  %v4248 = vmul.f32 1.0, %v4247
  %v4249 = vtanh.pop %v4235
  %v4250 = vxor.u32 %v4236, 2147483648
  %v4251 = vmul.f32 %v4250, 1.442695
  %v4252 = vpow.pop %v4251
  %v4253 = vadd.f32 %v4252, 1.0
  %v4254 = vrcp.pop %v4253
  %v4255 = vmul.f32 1.0, %v4254
  %v4256 = vmul.f32 %v4248, %v3776
  %v4257 = vmul.f32 %v4242, %v4249
  %v4258 = vadd.f32 %v4256, %v4257
  %v4259 = vtanh.pop %v4258
  %v4260 = vmul.f32 %v4255, %v4259
  %4261 = vmatprep.subr.mxu0 %v129
  %4262 = vmatpush1.msra.mxu0 %v128
  %4263 = vmatprep.subr.mxu0 %v133
  %4264 = vmatpush1.msra.mxu0 %v132
  %4265 = vmatprep.subr.mxu0 %v137
  %4266 = vmatpush1.msra.mxu0 %v136
  %4267 = vmatprep.subr.mxu0 %v141
  %4268 = vmatpush1.msra.mxu0 %v140
  %4269 = vmatprep.subr.mxu0 %v145
  %4270 = vmatpush1.msra.mxu0 %v144
  %4271 = vmatprep.subr.mxu0 %v149
  %4272 = vmatpush1.msra.mxu0 %v148
  %4273 = vmatprep.subr.mxu0 %v153
  %4274 = vmatpush1.msra.mxu0 %v152
  %4275 = vmatprep.subr.mxu0 %v157
  %4276 = vmatpush1.msra.mxu0 %v156
  %4277 = vmatprep.subr.mxu0 %v161
  %4278 = vmatpush1.msra.mxu0 %v160
  %4279 = vmatprep.subr.mxu0 %v165
  %4280 = vmatpush1.msra.mxu0 %v164
  %4281 = vmatprep.subr.mxu0 %v169
  %4282 = vmatpush1.msra.mxu0 %v168
  %4283 = vmatprep.subr.mxu0 %v173
  %4284 = vmatpush1.msra.mxu0 %v172
  %4285 = vmatprep.subr.mxu0 %v177
  %4286 = vmatpush1.msra.mxu0 %v176
  %4287 = vmatprep.subr.mxu0 %v181
  %4288 = vmatpush1.msra.mxu0 %v180
  %4289 = vmatprep.subr.mxu0 %v185
  %4290 = vmatpush1.msra.mxu0 %v184
  %4291 = vmatprep.subr.mxu0 %v189
  %4292 = vmatpush1.msra.mxu0 %v188
  %4293 = vmatprep.subr.mxu0 0.0
  %4294 = vmatpush1.msra.mxu0 0.0
  %4295 = vmatprep.subr.mxu0 0.0
  %4296 = vmatpush1.msra.mxu0 0.0
  %4297 = vmatprep.subr.mxu0 0.0
  %4298 = vmatpush1.msra.mxu0 0.0
  %4299 = vmatprep.subr.mxu0 0.0
  %4300 = vmatpush1.msra.mxu0 0.0
  %4301 = vmatprep.subr.mxu0 0.0
  %4302 = vmatpush1.msra.mxu0 0.0
  %4303 = vmatprep.subr.mxu0 0.0
  %4304 = vmatpush1.msra.mxu0 0.0
  %4305 = vmatprep.subr.mxu0 0.0
  %4306 = vmatpush1.msra.mxu0 0.0
  %4307 = vmatprep.subr.mxu0 0.0
  %4308 = vmatpush1.msra.mxu0 0.0
  %4309 = vmatprep.subr.mxu0 0.0
  %4310 = vmatpush1.msra.mxu0 0.0
  %4311 = vmatprep.subr.mxu0 0.0
  %4312 = vmatpush1.msra.mxu0 0.0
  %4313 = vmatprep.subr.mxu0 0.0
  %4314 = vmatpush1.msra.mxu0 0.0
  %4315 = vmatprep.subr.mxu0 0.0
  %4316 = vmatpush1.msra.mxu0 0.0
  %4317 = vmatprep.subr.mxu0 0.0
  %4318 = vmatpush1.msra.mxu0 0.0
  %4319 = vmatprep.subr.mxu0 0.0
  %4320 = vmatpush1.msra.mxu0 0.0
  %4321 = vmatprep.subr.mxu0 0.0
  %4322 = vmatpush1.msra.mxu0 0.0
  %4323 = vmatprep.subr.mxu0 0.0
  %4324 = vmatpush1.msra.mxu0 0.0
  %4325 = vmatprep.mubr.f32.mxu0 0.0
  %4326 = vmatmul.mubr.f32.gmra.mrb[0].mxu0 %v4260
  %v4327 = vpop.f32.mrb[0].mxu0
  %v4328 = vadd.f32 %v4016, %v4327
  %v4329 = vpop.f32.mrb[0].mxu0
  %v4330 = vadd.f32 %v4018, %v4329
  %4331 = vdwg.mxu0
  %4332 = vmatprep.subr.mxu0 %v131
  %4333 = vmatpush1.msra.mxu0 %v130
  %4334 = vmatprep.subr.mxu0 %v135
  %4335 = vmatpush1.msra.mxu0 %v134
  %4336 = vmatprep.subr.mxu0 %v139
  %4337 = vmatpush1.msra.mxu0 %v138
  %4338 = vmatprep.subr.mxu0 %v143
  %4339 = vmatpush1.msra.mxu0 %v142
  %4340 = vmatprep.subr.mxu0 %v147
  %4341 = vmatpush1.msra.mxu0 %v146
  %4342 = vmatprep.subr.mxu0 %v151
  %4343 = vmatpush1.msra.mxu0 %v150
  %4344 = vmatprep.subr.mxu0 %v155
  %4345 = vmatpush1.msra.mxu0 %v154
  %4346 = vmatprep.subr.mxu0 %v159
  %4347 = vmatpush1.msra.mxu0 %v158
  %4348 = vmatprep.subr.mxu0 %v163
  %4349 = vmatpush1.msra.mxu0 %v162
  %4350 = vmatprep.subr.mxu0 %v167
  %4351 = vmatpush1.msra.mxu0 %v166
  %4352 = vmatprep.subr.mxu0 %v171
  %4353 = vmatpush1.msra.mxu0 %v170
  %4354 = vmatprep.subr.mxu0 %v175
  %4355 = vmatpush1.msra.mxu0 %v174
  %4356 = vmatprep.subr.mxu0 %v179
  %4357 = vmatpush1.msra.mxu0 %v178
  %4358 = vmatprep.subr.mxu0 %v183
  %4359 = vmatpush1.msra.mxu0 %v182
  %4360 = vmatprep.subr.mxu0 %v187
  %4361 = vmatpush1.msra.mxu0 %v186
  %4362 = vmatprep.subr.mxu0 %v191
  %4363 = vmatpush1.msra.mxu0 %v190
  %4364 = vmatprep.subr.mxu0 0.0
  %4365 = vmatpush1.msra.mxu0 0.0
  %4366 = vmatprep.subr.mxu0 0.0
  %4367 = vmatpush1.msra.mxu0 0.0
  %4368 = vmatprep.subr.mxu0 0.0
  %4369 = vmatpush1.msra.mxu0 0.0
  %4370 = vmatprep.subr.mxu0 0.0
  %4371 = vmatpush1.msra.mxu0 0.0
  %4372 = vmatprep.subr.mxu0 0.0
  %4373 = vmatpush1.msra.mxu0 0.0
  %4374 = vmatprep.subr.mxu0 0.0
  %4375 = vmatpush1.msra.mxu0 0.0
  %4376 = vmatprep.subr.mxu0 0.0
  %4377 = vmatpush1.msra.mxu0 0.0
  %4378 = vmatprep.subr.mxu0 0.0
  %4379 = vmatpush1.msra.mxu0 0.0
  %4380 = vmatprep.subr.mxu0 0.0
  %4381 = vmatpush1.msra.mxu0 0.0
  %4382 = vmatprep.subr.mxu0 0.0
  %4383 = vmatpush1.msra.mxu0 0.0
  %4384 = vmatprep.subr.mxu0 0.0
  %4385 = vmatpush1.msra.mxu0 0.0
  %4386 = vmatprep.subr.mxu0 0.0
  %4387 = vmatpush1.msra.mxu0 0.0
  %4388 = vmatprep.subr.mxu0 0.0
  %4389 = vmatpush1.msra.mxu0 0.0
  %4390 = vmatprep.subr.mxu0 0.0
  %4391 = vmatpush1.msra.mxu0 0.0
  %4392 = vmatprep.subr.mxu0 0.0
  %4393 = vmatpush1.msra.mxu0 0.0
  %4394 = vmatprep.subr.mxu0 0.0
  %4395 = vmatpush1.msra.mxu0 0.0
  %4396 = vmatprep.mubr.f32.mxu0 0.0
  %4397 = vmatmul.mubr.f32.gmra.mrb[0].mxu0 %v4260
  %v4398 = vpop.f32.mrb[0].mxu0
  %v4399 = vadd.f32 %v4087, %v4398
  %v4400 = vpop.f32.mrb[0].mxu0
  %v4401 = vadd.f32 %v4089, %v4400
  %4402 = vdwg.mxu0
  %v4403 = vadd.f32 %v4328, %v558
  %v4404 = vadd.f32 %v4330, %v562
  %v4405 = vadd.f32 %v4399, %v566
  %v4406 = vadd.f32 %v4401, %v570
  %v4407 = vxor.u32 %v4403, 2147483648
  %v4408 = vmul.f32 %v4407, 1.442695
  %v4409 = vpow.pop %v4408
  %v4410 = vadd.f32 %v4409, 1.0
  %v4411 = vrcp.pop %v4410
  %v4412 = vmul.f32 1.0, %v4411
  %v4413 = vxor.u32 %v4404, 2147483648
  %v4414 = vmul.f32 %v4413, 1.442695
  %v4415 = vpow.pop %v4414
  %v4416 = vadd.f32 %v4415, 1.0
  %v4417 = vrcp.pop %v4416
  %v4418 = vmul.f32 1.0, %v4417
  %v4419 = vtanh.pop %v4405
  %v4420 = vxor.u32 %v4406, 2147483648
  %v4421 = vmul.f32 %v4420, 1.442695
  %v4422 = vpow.pop %v4421
  %v4423 = vadd.f32 %v4422, 1.0
  %v4424 = vrcp.pop %v4423
  %v4425 = vmul.f32 1.0, %v4424
  %v4426 = vmul.f32 %v4418, %v3946
  %v4427 = vmul.f32 %v4412, %v4419
  %v4428 = vadd.f32 %v4426, %v4427
  %v4429 = vtanh.pop %v4428
  %v4430 = vmul.f32 %v4425, %v4429
  %v4431 = vld [vmem:[%s8] sm:$0x1]
  %v4433 = vlaneseq
  %v4434 = vshrl.u32 %v4433, 7
  %v4435 = vsub.s32 0, %v4434
  %v4436 = vrot.slane %v4431, %v4435
  %4438 = vmatprep.subr.mxu0 0.0
  %4439 = vmatpush1.msra.mxu0 %v256
  %4440 = vmatprep.subr.mxu0 0.0
  %4441 = vmatpush1.msra.mxu0 %v257
  %4442 = vmatprep.subr.mxu0 0.0
  %4443 = vmatpush1.msra.mxu0 %v258
  %4444 = vmatprep.subr.mxu0 0.0
  %4445 = vmatpush1.msra.mxu0 %v259
  %4446 = vmatprep.subr.mxu0 0.0
  %4447 = vmatpush1.msra.mxu0 %v260
  %4448 = vmatprep.subr.mxu0 0.0
  %4449 = vmatpush1.msra.mxu0 %v261
  %4450 = vmatprep.subr.mxu0 0.0
  %4451 = vmatpush1.msra.mxu0 %v262
  %4452 = vmatprep.subr.mxu0 0.0
  %4453 = vmatpush1.msra.mxu0 %v263
  %4454 = vmatprep.subr.mxu0 0.0
  %4455 = vmatpush1.msra.mxu0 %v264
  %4456 = vmatprep.subr.mxu0 0.0
  %4457 = vmatpush1.msra.mxu0 %v265
  %4458 = vmatprep.subr.mxu0 0.0
  %4459 = vmatpush1.msra.mxu0 %v266
  %4460 = vmatprep.subr.mxu0 0.0
  %4461 = vmatpush1.msra.mxu0 %v267
  %4462 = vmatprep.subr.mxu0 0.0
  %4463 = vmatpush1.msra.mxu0 %v268
  %4464 = vmatprep.subr.mxu0 0.0
  %4465 = vmatpush1.msra.mxu0 %v269
  %4466 = vmatprep.subr.mxu0 0.0
  %4467 = vmatpush1.msra.mxu0 %v270
  %4468 = vmatprep.subr.mxu0 0.0
  %4469 = vmatpush1.msra.mxu0 %v271
  %4470 = vmatprep.subr.mxu0 0.0
  %4471 = vmatpush1.msra.mxu0 0.0
  %4472 = vmatprep.subr.mxu0 0.0
  %4473 = vmatpush1.msra.mxu0 0.0
  %4474 = vmatprep.subr.mxu0 0.0
  %4475 = vmatpush1.msra.mxu0 0.0
  %4476 = vmatprep.subr.mxu0 0.0
  %4477 = vmatpush1.msra.mxu0 0.0
  %4478 = vmatprep.subr.mxu0 0.0
  %4479 = vmatpush1.msra.mxu0 0.0
  %4480 = vmatprep.subr.mxu0 0.0
  %4481 = vmatpush1.msra.mxu0 0.0
  %4482 = vmatprep.subr.mxu0 0.0
  %4483 = vmatpush1.msra.mxu0 0.0
  %4484 = vmatprep.subr.mxu0 0.0
  %4485 = vmatpush1.msra.mxu0 0.0
  %4486 = vmatprep.subr.mxu0 0.0
  %4487 = vmatpush1.msra.mxu0 0.0
  %4488 = vmatprep.subr.mxu0 0.0
  %4489 = vmatpush1.msra.mxu0 0.0
  %4490 = vmatprep.subr.mxu0 0.0
  %4491 = vmatpush1.msra.mxu0 0.0
  %4492 = vmatprep.subr.mxu0 0.0
  %4493 = vmatpush1.msra.mxu0 0.0
  %4494 = vmatprep.subr.mxu0 0.0
  %4495 = vmatpush1.msra.mxu0 0.0
  %4496 = vmatprep.subr.mxu0 0.0
  %4497 = vmatpush1.msra.mxu0 0.0
  %4498 = vmatprep.subr.mxu0 0.0
  %4499 = vmatpush1.msra.mxu0 0.0
  %4500 = vmatprep.subr.mxu0 0.0
  %4501 = vmatpush1.msra.mxu0 0.0
  %4502 = vmatprep.mubr.f32.mxu0 0.0
  %4503 = vmatmul.mubr.f32.gmra.mrb[0].mxu0 %v1056
  %v4504 = vpop.f32.mrb[0].mxu0
  %v4505 = vadd.f32 %v4436, %v4504
  %v4506 = vpop.f32.mrb[0].mxu0
  %4507 = vmatprep.mubr.f32.mxu0 0.0
  %4508 = vmatmul.mubr.f32.gmra.mrb[0].mxu0 %v1538
  %v4509 = vpop.f32.mrb[0].mxu0
  %v4510 = vadd.f32 %v4436, %v4509
  %v4511 = vpop.f32.mrb[0].mxu0
  %4512 = vmatprep.mubr.f32.mxu0 0.0
  %4513 = vmatmul.mubr.f32.gmra.mrb[0].mxu0 %v2020
  %v4514 = vpop.f32.mrb[0].mxu0
  %v4515 = vadd.f32 %v4436, %v4514
  %v4516 = vpop.f32.mrb[0].mxu0
  %4517 = vmatprep.mubr.f32.mxu0 0.0
  %4518 = vmatmul.mubr.f32.gmra.mrb[0].mxu0 %v2502
  %v4519 = vpop.f32.mrb[0].mxu0
  %v4520 = vadd.f32 %v4436, %v4519
  %v4521 = vpop.f32.mrb[0].mxu0
  %4522 = vmatprep.mubr.f32.mxu0 0.0
  %4523 = vmatmul.mubr.f32.gmra.mrb[0].mxu0 %v2984
  %v4524 = vpop.f32.mrb[0].mxu0
  %v4525 = vadd.f32 %v4436, %v4524
  %v4526 = vpop.f32.mrb[0].mxu0
  %4527 = vmatprep.mubr.f32.mxu0 0.0
  %4528 = vmatmul.mubr.f32.gmra.mrb[0].mxu0 %v3466
  %v4529 = vpop.f32.mrb[0].mxu0
  %v4530 = vadd.f32 %v4436, %v4529
  %v4531 = vpop.f32.mrb[0].mxu0
  %4532 = vmatprep.mubr.f32.mxu0 0.0
  %4533 = vmatmul.mubr.f32.gmra.mrb[0].mxu0 %v3948
  %v4534 = vpop.f32.mrb[0].mxu0
  %v4535 = vadd.f32 %v4436, %v4534
  %v4536 = vpop.f32.mrb[0].mxu0
  %4537 = vmatprep.mubr.f32.mxu0 0.0
  %4538 = vmatmul.mubr.f32.gmra.mrb[0].mxu0 %v4430
  %v4539 = vpop.f32.mrb[0].mxu0
  %v4540 = vadd.f32 %v4436, %v4539
  %v4541 = vpop.f32.mrb[0].mxu0
  %4542 = vdwg.mxu0
  %4543 = vst [vmem:[%s9] sm:$0xff] %v4505
  %4544 = vst [vmem:[%s9 + $0x8] sm:$0xff] %v4510
  %4545 = vst [vmem:[%s9 + $0x10] sm:$0xff] %v4515
  %4546 = vst [vmem:[%s9 + $0x18] sm:$0xff] %v4520
  %4547 = vst [vmem:[%s9 + $0x20] sm:$0xff] %v4525
  %4548 = vst [vmem:[%s9 + $0x28] sm:$0xff] %v4530
  %4549 = vst [vmem:[%s9 + $0x30] sm:$0xff] %v4535
  %4550 = vst [vmem:[%s9 + $0x38] sm:$0xff] %v4540
  // Predicated region
  $region38: #{lstm_model_forward.1} parent=0 // pred_check
    _
  $region39: #{lstm_model_forward.1} parent=0 // pred_check_branch
    %4552 = sbr.rel (0) target = $region41
  $region40: #{lstm_model_forward.1} parent=0 // pred_region
    _
  $region41: #{lstm_model_forward.1} parent=0 // pred_fallthru
    _
  // Predicated region
  $region42: #{lstm_model_forward.1} parent=0 // pred_check
    _
  $region43: #{lstm_model_forward.1} parent=0 // pred_check_branch
    %4554 = sbr.rel (0) target = $region45
  $region44: #{lstm_model_forward.1} parent=0 // pred_region
    _
  $region45: #{lstm_model_forward.1} parent=0 // pred_fallthru
    _

</llo_original>
